<compile_context>
chip_gen: v5e
topology: v5e:2x2
jax: 0.10.0
libtpu: 0.0.40
codegen_flags: <defaults>
</compile_context>

<pallas_src>
import math

import jax
import jax.numpy as jnp
from jax.experimental import pallas as pl
from jax.experimental.pallas import tpu as pltpu  # noqa: F401  (TPU backend)

# ----------------------------- config (small, structure-faithful) ------------
VOCAB = 64
MAX_POS = 32
TYPE_VOCAB = 2
HIDDEN = 128          # BERT-base uses 768; scaled down
NUM_HEADS = 4
HEAD_DIM = HIDDEN // NUM_HEADS
INTERMEDIATE = 256    # BERT-base uses 3072
NUM_LAYERS = 2        # BERT-base uses 12
SEQ = 8               # NOTE: M = BATCH*SEQ = 16 rows -> low MXU M-occupancy;
BATCH = 2             #       batch more sequences per call when scaling up.
PLUS_DIM = 3          # 771 - 768 = 3 extra features concatenated before cls
NUM_CLASSES = 4
LN_EPS = 1e-12


# ----------------------------- fused Pallas kernel ----------------------------
def bert_fused_kernel(
    x_ref,                                   # (B*S, H) f32 summed embeddings
    emb_g_ref, emb_b_ref,                    # (1, H) f32
    qkv_w_ref, qkv_b_ref,                    # (L, H, 3H) bf16 / (L, 1, 3H) f32
    ao_w_ref, ao_b_ref,                      # (L, H, H)  bf16 / (L, 1, H)  f32
    ln1_g_ref, ln1_b_ref,                    # (L, 1, H) f32
    i_w_ref, i_b_ref,                        # (L, H, I)  bf16 / (L, 1, I)  f32
    o_w_ref, o_b_ref,                        # (L, I, H)  bf16 / (L, 1, H)  f32
    ln2_g_ref, ln2_b_ref,                    # (L, 1, H) f32
    pool_w_ref, pool_b_ref,                  # (H, H) bf16 / (1, H) f32
    pooled_ref,                              # out: (B, H) f32  ([CLS] pooled)
):
    def layer_norm(x, g, b):
        mu = jnp.mean(x, axis=-1, keepdims=True)
        d = x - mu
        var = jnp.mean(d * d, axis=-1, keepdims=True)
        return d * jax.lax.rsqrt(var + LN_EPS) * g + b

    def mm(x, w_bf16):
        # bf16 MXU matmul with fp32 accumulation.
        return jnp.dot(x.astype(jnp.bfloat16), w_bf16,
                       preferred_element_type=jnp.float32)

    def gelu(y):
        # TODO(synk): HF BERT uses exact (erf) GELU; tanh approximation used here.
        return 0.5 * y * (1.0 + jnp.tanh(
            0.7978845608028654 * (y + 0.044715 * y * y * y)))

    # ---- embedding LayerNorm ----
    x = layer_norm(x_ref[...], emb_g_ref[...], emb_b_ref[...])       # (B*S, H) f32

    # ---- encoder layers (static unroll; weights indexed by layer) ----
    # TODO(synk): no attention_mask path; all key positions attended (matches
    #   the reference only when called without padding masks).
    for l in range(NUM_LAYERS):
        # fused Q/K/V projection: one (B*S, H) @ (H, 3H) bf16 MXU matmul.
        # The 1/sqrt(HEAD_DIM) score scale is pre-folded into the Q columns
        # of qkv_w / qkv_b host-side, so no in-kernel scale multiply.
        qkv = mm(x, qkv_w_ref[l]) + qkv_b_ref[l]                     # (B*S, 3H) f32
        qkv = qkv.astype(jnp.bfloat16)                               # bf16 MXU inputs

        # lane-aligned (128-multiple) q/k/v splits, batched over B
        q_all = qkv[:, :HIDDEN].reshape(BATCH, SEQ, HIDDEN)          # (B, S, H) bf16
        k_all = qkv[:, HIDDEN:2 * HIDDEN].reshape(BATCH, SEQ, HIDDEN)
        v_all = qkv[:, 2 * HIDDEN:].reshape(BATCH, SEQ, HIDDEN)

        # scaled-dot-product attention: batched over B via 3-D einsums; short
        # static loop over heads (head slices are DH=32 lane extracts).
        head_ctx = []
        for h in range(NUM_HEADS):
            c0 = h * HEAD_DIM
            q = q_all[:, :, c0:c0 + HEAD_DIM]                        # (B, S, DH) bf16
            k = k_all[:, :, c0:c0 + HEAD_DIM]
            v = v_all[:, :, c0:c0 + HEAD_DIM]
            s = jnp.einsum('bsd,btd->bst', q, k,
                           preferred_element_type=jnp.float32)       # (B, S, S) f32
            s = s - jnp.max(s, axis=-1, keepdims=True)
            p = jnp.exp(s)
            # divide -> EUP reciprocal (co-issues with VALU/MXU work)
            p = p * pl.reciprocal(jnp.sum(p, axis=-1, keepdims=True), approx=True)
            head_ctx.append(
                jnp.einsum('bst,btd->bsd', p.astype(jnp.bfloat16), v,
                           preferred_element_type=jnp.float32))      # (B, S, DH)
        ctx = jnp.concatenate(head_ctx, axis=-1)                     # (B, S, H)
        ctx = ctx.reshape(BATCH * SEQ, HIDDEN)                       # (B*S, H)

        # attention output dense + residual + LayerNorm (fused)
        attn_out = mm(ctx, ao_w_ref[l]) + ao_b_ref[l]
        x = layer_norm(attn_out + x, ln1_g_ref[l], ln1_b_ref[l])

        # feed-forward + residual + LayerNorm (fused); dropout = identity (eval)
        inter = gelu(mm(x, i_w_ref[l]) + i_b_ref[l])                 # (B*S, I)
        ffn_out = mm(inter, o_w_ref[l]) + o_b_ref[l]
        x = layer_norm(ffn_out + x, ln2_g_ref[l], ln2_b_ref[l])

    # ---- pooler: Linear(H, H) + tanh on the B [CLS] rows only ----
    # (bert(data)[1]); avoids S x wasted pooler FLOPs / writeback at scale.
    x_cls = jnp.concatenate(
        [x[b * SEQ:b * SEQ + 1, :] for b in range(BATCH)], axis=0)   # (B, H)
    pooled = jnp.tanh(mm(x_cls, pool_w_ref[...]) + pool_b_ref[...])
    pooled_ref[...] = pooled.astype(pooled_ref.dtype)


# ----------------------------- model -----------------------------------------
def bert_base_forward(params, input_ids, plus):
    """Equivalent of: cls(cat(bert(data)[1], plus, -1))"""
    B, S = input_ids.shape

    # embeddings (gather is glue; LayerNorm happens inside the fused kernel)
    we = jnp.take(params["word_emb"], input_ids, axis=0)             # (B, S, H)
    pe = jnp.take(params["pos_emb"], jnp.arange(S), axis=0)[None]    # (1, S, H)
    te = params["type_emb"][0][None, None]                           # token_type_ids = 0
    h = (we + pe + te).reshape(B * S, HIDDEN).astype(jnp.float32)

    pooled = pl.pallas_call(
        bert_fused_kernel,
        out_shape=jax.ShapeDtypeStruct((B, HIDDEN), jnp.float32),
    )(
        h,
        params["emb_ln_g"], params["emb_ln_b"],
        params["qkv_w"], params["qkv_b"],
        params["ao_w"], params["ao_b"],
        params["ln1_g"], params["ln1_b"],
        params["i_w"], params["i_b"],
        params["o_w"], params["o_b"],
        params["ln2_g"], params["ln2_b"],
        params["pool_w"], params["pool_b"],
    )                                                                # (B, H)

    # cls head on cat(pooled, plus): tiny (B, H+3) @ (H+3, 4) — left in XLA,
    # a Pallas kernel here would be pure launch/layout overhead.
    feats = jnp.concatenate([pooled, plus.astype(jnp.float32)], axis=-1)
    logits = feats @ params["cls_w"] + params["cls_b"]               # (B, 4)
    return logits


# ----------------------------- deterministic params ----------------------------
def init_params(key):
    def nrm(k, shape, dtype=jnp.float32):
        return (0.02 * jax.random.normal(k, shape, dtype=jnp.float32)).astype(dtype)

    keys = iter(jax.random.split(key, 64))
    L = NUM_LAYERS
    bf16 = jnp.bfloat16

    # Fused QKV weights with the 1/sqrt(HEAD_DIM) attention-score scale folded
    # into the Q columns (weight AND bias) at parameter-prep time.
    scale = 1.0 / math.sqrt(HEAD_DIM)
    qkv_w = 0.02 * jax.random.normal(next(keys), (L, HIDDEN, 3 * HIDDEN), jnp.float32)
    qkv_w = qkv_w.at[:, :, :HIDDEN].multiply(scale).astype(bf16)
    qkv_b = jnp.zeros((L, 1, 3 * HIDDEN), jnp.float32)
    qkv_b = qkv_b.at[:, :, :HIDDEN].multiply(scale)

    return {
        "word_emb": nrm(next(keys), (VOCAB, HIDDEN)),
        "pos_emb": nrm(next(keys), (MAX_POS, HIDDEN)),
        "type_emb": nrm(next(keys), (TYPE_VOCAB, HIDDEN)),
        "emb_ln_g": jnp.ones((1, HIDDEN), jnp.float32),
        "emb_ln_b": jnp.zeros((1, HIDDEN), jnp.float32),
        # per-layer weights stacked along a leading layer axis; matmul weights bf16
        "qkv_w": qkv_w,
        "qkv_b": qkv_b,
        "ao_w": nrm(next(keys), (L, HIDDEN, HIDDEN), bf16),
        "ao_b": jnp.zeros((L, 1, HIDDEN), jnp.float32),
        "ln1_g": jnp.ones((L, 1, HIDDEN), jnp.float32),
        "ln1_b": jnp.zeros((L, 1, HIDDEN), jnp.float32),
        "i_w": nrm(next(keys), (L, HIDDEN, INTERMEDIATE), bf16),
        "i_b": jnp.zeros((L, 1, INTERMEDIATE), jnp.float32),
        "o_w": nrm(next(keys), (L, INTERMEDIATE, HIDDEN), bf16),
        "o_b": jnp.zeros((L, 1, HIDDEN), jnp.float32),
        "ln2_g": jnp.ones((L, 1, HIDDEN), jnp.float32),
        "ln2_b": jnp.zeros((L, 1, HIDDEN), jnp.float32),
        "pool_w": nrm(next(keys), (HIDDEN, HIDDEN), bf16),
        "pool_b": jnp.zeros((1, HIDDEN), jnp.float32),
        "cls_w": nrm(next(keys), (HIDDEN + PLUS_DIM, NUM_CLASSES)),
        "cls_b": jnp.zeros((NUM_CLASSES,), jnp.float32),
    }


# ----------------------------- main --------------------------------------------
if __name__ == "__main__":
    key = jax.random.PRNGKey(0)
    k_ids, k_plus, k_params = jax.random.split(key, 3)

    data = jax.random.randint(k_ids, (BATCH, SEQ), 0, VOCAB, dtype=jnp.int32)  # token ids
    plus = jax.random.normal(k_plus, (BATCH, PLUS_DIM), dtype=jnp.float32)
    params = init_params(k_params)

    logits = jax.jit(bert_base_forward)(params, data, plus)
    logits = jax.block_until_ready(logits)
    assert logits.shape == (BATCH, NUM_CLASSES)
    assert bool(jnp.all(jnp.isfinite(logits)))
    print("KERNEL_OK")
</pallas_src>

<mosaic_0001>
module attributes {stable_mosaic.version = 11 : i64} {
  func.func @bert_fused_kernel(%arg0: memref<16x128xf32, #tpu.memory_space<vmem>>, %arg1: memref<1x128xf32, #tpu.memory_space<vmem>>, %arg2: memref<1x128xf32, #tpu.memory_space<vmem>>, %arg3: memref<2x128x384xbf16, #tpu.memory_space<vmem>>, %arg4: memref<2x1x384xf32, #tpu.memory_space<vmem>>, %arg5: memref<2x128x128xbf16, #tpu.memory_space<vmem>>, %arg6: memref<2x1x128xf32, #tpu.memory_space<vmem>>, %arg7: memref<2x1x128xf32, #tpu.memory_space<vmem>>, %arg8: memref<2x1x128xf32, #tpu.memory_space<vmem>>, %arg9: memref<2x128x256xbf16, #tpu.memory_space<vmem>>, %arg10: memref<2x1x256xf32, #tpu.memory_space<vmem>>, %arg11: memref<2x256x128xbf16, #tpu.memory_space<vmem>>, %arg12: memref<2x1x128xf32, #tpu.memory_space<vmem>>, %arg13: memref<2x1x128xf32, #tpu.memory_space<vmem>>, %arg14: memref<2x1x128xf32, #tpu.memory_space<vmem>>, %arg15: memref<128x128xbf16, #tpu.memory_space<vmem>>, %arg16: memref<1x128xf32, #tpu.memory_space<vmem>>, %arg17: memref<2x128xf32, #tpu.memory_space<vmem>>) attributes {dimension_semantics = [], scalar_prefetch = 0 : i64, scratch_operands = 0 : i64, tpu.core_type = #tpu.core_type<tc>} {
    %c0 = arith.constant 0 : index
    %c0_0 = arith.constant 0 : index
    %0 = vector.load %arg0[%c0, %c0_0] : memref<16x128xf32, #tpu.memory_space<vmem>>, vector<16x128xf32>
    %c0_1 = arith.constant 0 : index
    %c0_2 = arith.constant 0 : index
    %1 = vector.load %arg1[%c0_1, %c0_2] : memref<1x128xf32, #tpu.memory_space<vmem>>, vector<1x128xf32>
    %c0_3 = arith.constant 0 : index
    %c0_4 = arith.constant 0 : index
    %2 = vector.load %arg2[%c0_3, %c0_4] : memref<1x128xf32, #tpu.memory_space<vmem>>, vector<1x128xf32>
    %cst = arith.constant dense<0.000000e+00> : vector<16xf32>
    %3 = vector.multi_reduction <add>, %0, %cst [1] : vector<16x128xf32> to vector<16xf32>
    %4 = vector.shape_cast %3 : vector<16xf32> to vector<16x1xf32>
    %cst_5 = arith.constant 1.280000e+02 : f32
    %5 = vector.broadcast %cst_5 : f32 to vector<16x1xf32>
    %6 = arith.divf %4, %5 : vector<16x1xf32>
    %7 = vector.broadcast %6 : vector<16x1xf32> to vector<16x128xf32>
    %8 = arith.subf %0, %7 : vector<16x128xf32>
    %9 = arith.mulf %8, %8 : vector<16x128xf32>
    %cst_6 = arith.constant dense<0.000000e+00> : vector<16xf32>
    %10 = vector.multi_reduction <add>, %9, %cst_6 [1] : vector<16x128xf32> to vector<16xf32>
    %11 = vector.shape_cast %10 : vector<16xf32> to vector<16x1xf32>
    %cst_7 = arith.constant 1.280000e+02 : f32
    %12 = vector.broadcast %cst_7 : f32 to vector<16x1xf32>
    %13 = arith.divf %11, %12 : vector<16x1xf32>
    %cst_8 = arith.constant 9.99999996E-13 : f32
    %14 = vector.broadcast %cst_8 : f32 to vector<16x1xf32>
    %15 = arith.addf %13, %14 : vector<16x1xf32>
    %16 = math.rsqrt %15 : vector<16x1xf32>
    %17 = vector.broadcast %16 : vector<16x1xf32> to vector<16x128xf32>
    %18 = arith.mulf %8, %17 : vector<16x128xf32>
    %19 = vector.broadcast %1 : vector<1x128xf32> to vector<16x128xf32>
    %20 = arith.mulf %18, %19 : vector<16x128xf32>
    %21 = vector.broadcast %2 : vector<1x128xf32> to vector<16x128xf32>
    %22 = arith.addf %20, %21 : vector<16x128xf32>
    %c0_9 = arith.constant 0 : index
    %c0_10 = arith.constant 0 : index
    %c0_11 = arith.constant 0 : index
    %23 = vector.load %arg3[%c0_9, %c0_10, %c0_11] : memref<2x128x384xbf16, #tpu.memory_space<vmem>>, vector<1x128x384xbf16>
    %24 = vector.shape_cast %23 : vector<1x128x384xbf16> to vector<128x384xbf16>
    %25 = arith.truncf %22 : vector<16x128xf32> to vector<16x128xbf16>
    %cst_12 = arith.constant dense<0.000000e+00> : vector<16x384xf32>
    %26 = tpu.matmul %25, %24, %cst_12 {dimension_numbers = #tpu.dot_dimension_numbers<[1], [0], [0], [1], [0, 0, 1, 1], [], []>} : vector<16x128xbf16>, vector<128x384xbf16>, vector<16x384xf32> -> vector<16x384xf32>
    %c0_13 = arith.constant 0 : index
    %c0_14 = arith.constant 0 : index
    %c0_15 = arith.constant 0 : index
    %27 = vector.load %arg4[%c0_13, %c0_14, %c0_15] : memref<2x1x384xf32, #tpu.memory_space<vmem>>, vector<1x1x384xf32>
    %28 = vector.shape_cast %27 : vector<1x1x384xf32> to vector<1x384xf32>
    %29 = vector.broadcast %28 : vector<1x384xf32> to vector<16x384xf32>
    %30 = arith.addf %26, %29 : vector<16x384xf32>
    %31 = arith.truncf %30 : vector<16x384xf32> to vector<16x384xbf16>
    %32 = vector.extract_strided_slice %31 {offsets = [0, 0], sizes = [16, 128], strides = [1, 1]} : vector<16x384xbf16> to vector<16x128xbf16>
    %33 = vector.shape_cast %32 : vector<16x128xbf16> to vector<2x8x128xbf16>
    %34 = vector.extract_strided_slice %31 {offsets = [0, 128], sizes = [16, 128], strides = [1, 1]} : vector<16x384xbf16> to vector<16x128xbf16>
    %35 = vector.shape_cast %34 : vector<16x128xbf16> to vector<2x8x128xbf16>
    %36 = vector.extract_strided_slice %31 {offsets = [0, 256], sizes = [16, 128], strides = [1, 1]} : vector<16x384xbf16> to vector<16x128xbf16>
    %37 = vector.shape_cast %36 : vector<16x128xbf16> to vector<2x8x128xbf16>
    %38 = vector.extract_strided_slice %33 {offsets = [0, 0, 0], sizes = [2, 8, 32], strides = [1, 1, 1]} : vector<2x8x128xbf16> to vector<2x8x32xbf16>
    %39 = vector.extract_strided_slice %35 {offsets = [0, 0, 0], sizes = [2, 8, 32], strides = [1, 1, 1]} : vector<2x8x128xbf16> to vector<2x8x32xbf16>
    %40 = vector.extract_strided_slice %37 {offsets = [0, 0, 0], sizes = [2, 8, 32], strides = [1, 1, 1]} : vector<2x8x128xbf16> to vector<2x8x32xbf16>
    "tpu.trace_start"() <{level = 10 : i32, message = "bsd,btd->bst"}> : () -> ()
    %cst_16 = arith.constant dense<0.000000e+00> : vector<2x8x8xf32>
    %41 = tpu.matmul %38, %39, %cst_16 {dimension_numbers = #tpu.dot_dimension_numbers<[2], [2], [1], [1], [0, 0, 0, 1, 1, 1], [0], [0]>} : vector<2x8x32xbf16>, vector<2x8x32xbf16>, vector<2x8x8xf32> -> vector<2x8x8xf32>
    "tpu.trace_stop"() : () -> ()
    %cst_17 = arith.constant dense<0xFF800000> : vector<2x8xf32>
    %42 = vector.multi_reduction <maximumf>, %41, %cst_17 [2] : vector<2x8x8xf32> to vector<2x8xf32>
    %43 = vector.shape_cast %42 : vector<2x8xf32> to vector<2x8x1xf32>
    %44 = vector.broadcast %43 : vector<2x8x1xf32> to vector<2x8x8xf32>
    %45 = arith.subf %41, %44 : vector<2x8x8xf32>
    %46 = math.exp %45 : vector<2x8x8xf32>
    %cst_18 = arith.constant dense<0.000000e+00> : vector<2x8xf32>
    %47 = vector.multi_reduction <add>, %46, %cst_18 [2] : vector<2x8x8xf32> to vector<2x8xf32>
    %48 = vector.shape_cast %47 : vector<2x8xf32> to vector<2x8x1xf32>
    %49 = tpu.reciprocal %48 {approx = true} : vector<2x8x1xf32> -> vector<2x8x1xf32>
    %50 = vector.broadcast %49 : vector<2x8x1xf32> to vector<2x8x8xf32>
    %51 = arith.mulf %46, %50 : vector<2x8x8xf32>
    %52 = arith.truncf %51 : vector<2x8x8xf32> to vector<2x8x8xbf16>
    "tpu.trace_start"() <{level = 10 : i32, message = "bst,btd->bsd"}> : () -> ()
    %cst_19 = arith.constant dense<0.000000e+00> : vector<2x8x32xf32>
    %53 = tpu.matmul %52, %40, %cst_19 {dimension_numbers = #tpu.dot_dimension_numbers<[2], [1], [1], [2], [0, 0, 0, 1, 1, 2], [0], [0]>} : vector<2x8x8xbf16>, vector<2x8x32xbf16>, vector<2x8x32xf32> -> vector<2x8x32xf32>
    "tpu.trace_stop"() : () -> ()
    %54 = vector.extract_strided_slice %33 {offsets = [0, 0, 32], sizes = [2, 8, 32], strides = [1, 1, 1]} : vector<2x8x128xbf16> to vector<2x8x32xbf16>
    %55 = vector.extract_strided_slice %35 {offsets = [0, 0, 32], sizes = [2, 8, 32], strides = [1, 1, 1]} : vector<2x8x128xbf16> to vector<2x8x32xbf16>
    %56 = vector.extract_strided_slice %37 {offsets = [0, 0, 32], sizes = [2, 8, 32], strides = [1, 1, 1]} : vector<2x8x128xbf16> to vector<2x8x32xbf16>
    "tpu.trace_start"() <{level = 10 : i32, message = "bsd,btd->bst"}> : () -> ()
    %cst_20 = arith.constant dense<0.000000e+00> : vector<2x8x8xf32>
    %57 = tpu.matmul %54, %55, %cst_20 {dimension_numbers = #tpu.dot_dimension_numbers<[2], [2], [1], [1], [0, 0, 0, 1, 1, 1], [0], [0]>} : vector<2x8x32xbf16>, vector<2x8x32xbf16>, vector<2x8x8xf32> -> vector<2x8x8xf32>
    "tpu.trace_stop"() : () -> ()
    %cst_21 = arith.constant dense<0xFF800000> : vector<2x8xf32>
    %58 = vector.multi_reduction <maximumf>, %57, %cst_21 [2] : vector<2x8x8xf32> to vector<2x8xf32>
    %59 = vector.shape_cast %58 : vector<2x8xf32> to vector<2x8x1xf32>
    %60 = vector.broadcast %59 : vector<2x8x1xf32> to vector<2x8x8xf32>
    %61 = arith.subf %57, %60 : vector<2x8x8xf32>
    %62 = math.exp %61 : vector<2x8x8xf32>
    %cst_22 = arith.constant dense<0.000000e+00> : vector<2x8xf32>
    %63 = vector.multi_reduction <add>, %62, %cst_22 [2] : vector<2x8x8xf32> to vector<2x8xf32>
    %64 = vector.shape_cast %63 : vector<2x8xf32> to vector<2x8x1xf32>
    %65 = tpu.reciprocal %64 {approx = true} : vector<2x8x1xf32> -> vector<2x8x1xf32>
    %66 = vector.broadcast %65 : vector<2x8x1xf32> to vector<2x8x8xf32>
    %67 = arith.mulf %62, %66 : vector<2x8x8xf32>
    %68 = arith.truncf %67 : vector<2x8x8xf32> to vector<2x8x8xbf16>
    "tpu.trace_start"() <{level = 10 : i32, message = "bst,btd->bsd"}> : () -> ()
    %cst_23 = arith.constant dense<0.000000e+00> : vector<2x8x32xf32>
    %69 = tpu.matmul %68, %56, %cst_23 {dimension_numbers = #tpu.dot_dimension_numbers<[2], [1], [1], [2], [0, 0, 0, 1, 1, 2], [0], [0]>} : vector<2x8x8xbf16>, vector<2x8x32xbf16>, vector<2x8x32xf32> -> vector<2x8x32xf32>
    "tpu.trace_stop"() : () -> ()
    %70 = vector.extract_strided_slice %33 {offsets = [0, 0, 64], sizes = [2, 8, 32], strides = [1, 1, 1]} : vector<2x8x128xbf16> to vector<2x8x32xbf16>
    %71 = vector.extract_strided_slice %35 {offsets = [0, 0, 64], sizes = [2, 8, 32], strides = [1, 1, 1]} : vector<2x8x128xbf16> to vector<2x8x32xbf16>
    %72 = vector.extract_strided_slice %37 {offsets = [0, 0, 64], sizes = [2, 8, 32], strides = [1, 1, 1]} : vector<2x8x128xbf16> to vector<2x8x32xbf16>
    "tpu.trace_start"() <{level = 10 : i32, message = "bsd,btd->bst"}> : () -> ()
    %cst_24 = arith.constant dense<0.000000e+00> : vector<2x8x8xf32>
    %73 = tpu.matmul %70, %71, %cst_24 {dimension_numbers = #tpu.dot_dimension_numbers<[2], [2], [1], [1], [0, 0, 0, 1, 1, 1], [0], [0]>} : vector<2x8x32xbf16>, vector<2x8x32xbf16>, vector<2x8x8xf32> -> vector<2x8x8xf32>
    "tpu.trace_stop"() : () -> ()
    %cst_25 = arith.constant dense<0xFF800000> : vector<2x8xf32>
    %74 = vector.multi_reduction <maximumf>, %73, %cst_25 [2] : vector<2x8x8xf32> to vector<2x8xf32>
    %75 = vector.shape_cast %74 : vector<2x8xf32> to vector<2x8x1xf32>
    %76 = vector.broadcast %75 : vector<2x8x1xf32> to vector<2x8x8xf32>
    %77 = arith.subf %73, %76 : vector<2x8x8xf32>
    %78 = math.exp %77 : vector<2x8x8xf32>
    %cst_26 = arith.constant dense<0.000000e+00> : vector<2x8xf32>
    %79 = vector.multi_reduction <add>, %78, %cst_26 [2] : vector<2x8x8xf32> to vector<2x8xf32>
    %80 = vector.shape_cast %79 : vector<2x8xf32> to vector<2x8x1xf32>
    %81 = tpu.reciprocal %80 {approx = true} : vector<2x8x1xf32> -> vector<2x8x1xf32>
    %82 = vector.broadcast %81 : vector<2x8x1xf32> to vector<2x8x8xf32>
    %83 = arith.mulf %78, %82 : vector<2x8x8xf32>
    %84 = arith.truncf %83 : vector<2x8x8xf32> to vector<2x8x8xbf16>
    "tpu.trace_start"() <{level = 10 : i32, message = "bst,btd->bsd"}> : () -> ()
    %cst_27 = arith.constant dense<0.000000e+00> : vector<2x8x32xf32>
    %85 = tpu.matmul %84, %72, %cst_27 {dimension_numbers = #tpu.dot_dimension_numbers<[2], [1], [1], [2], [0, 0, 0, 1, 1, 2], [0], [0]>} : vector<2x8x8xbf16>, vector<2x8x32xbf16>, vector<2x8x32xf32> -> vector<2x8x32xf32>
    "tpu.trace_stop"() : () -> ()
    %86 = vector.extract_strided_slice %33 {offsets = [0, 0, 96], sizes = [2, 8, 32], strides = [1, 1, 1]} : vector<2x8x128xbf16> to vector<2x8x32xbf16>
    %87 = vector.extract_strided_slice %35 {offsets = [0, 0, 96], sizes = [2, 8, 32], strides = [1, 1, 1]} : vector<2x8x128xbf16> to vector<2x8x32xbf16>
    %88 = vector.extract_strided_slice %37 {offsets = [0, 0, 96], sizes = [2, 8, 32], strides = [1, 1, 1]} : vector<2x8x128xbf16> to vector<2x8x32xbf16>
    "tpu.trace_start"() <{level = 10 : i32, message = "bsd,btd->bst"}> : () -> ()
    %cst_28 = arith.constant dense<0.000000e+00> : vector<2x8x8xf32>
    %89 = tpu.matmul %86, %87, %cst_28 {dimension_numbers = #tpu.dot_dimension_numbers<[2], [2], [1], [1], [0, 0, 0, 1, 1, 1], [0], [0]>} : vector<2x8x32xbf16>, vector<2x8x32xbf16>, vector<2x8x8xf32> -> vector<2x8x8xf32>
    "tpu.trace_stop"() : () -> ()
    %cst_29 = arith.constant dense<0xFF800000> : vector<2x8xf32>
    %90 = vector.multi_reduction <maximumf>, %89, %cst_29 [2] : vector<2x8x8xf32> to vector<2x8xf32>
    %91 = vector.shape_cast %90 : vector<2x8xf32> to vector<2x8x1xf32>
    %92 = vector.broadcast %91 : vector<2x8x1xf32> to vector<2x8x8xf32>
    %93 = arith.subf %89, %92 : vector<2x8x8xf32>
    %94 = math.exp %93 : vector<2x8x8xf32>
    %cst_30 = arith.constant dense<0.000000e+00> : vector<2x8xf32>
    %95 = vector.multi_reduction <add>, %94, %cst_30 [2] : vector<2x8x8xf32> to vector<2x8xf32>
    %96 = vector.shape_cast %95 : vector<2x8xf32> to vector<2x8x1xf32>
    %97 = tpu.reciprocal %96 {approx = true} : vector<2x8x1xf32> -> vector<2x8x1xf32>
    %98 = vector.broadcast %97 : vector<2x8x1xf32> to vector<2x8x8xf32>
    %99 = arith.mulf %94, %98 : vector<2x8x8xf32>
    %100 = arith.truncf %99 : vector<2x8x8xf32> to vector<2x8x8xbf16>
    "tpu.trace_start"() <{level = 10 : i32, message = "bst,btd->bsd"}> : () -> ()
    %cst_31 = arith.constant dense<0.000000e+00> : vector<2x8x32xf32>
    %101 = tpu.matmul %100, %88, %cst_31 {dimension_numbers = #tpu.dot_dimension_numbers<[2], [1], [1], [2], [0, 0, 0, 1, 1, 2], [0], [0]>} : vector<2x8x8xbf16>, vector<2x8x32xbf16>, vector<2x8x32xf32> -> vector<2x8x32xf32>
    "tpu.trace_stop"() : () -> ()
    %102 = tpu.concatenate %53, %69, %85, %101 in 2 : vector<2x8x32xf32>, vector<2x8x32xf32>, vector<2x8x32xf32>, vector<2x8x32xf32> -> vector<2x8x128xf32>
    %103 = vector.shape_cast %102 : vector<2x8x128xf32> to vector<16x128xf32>
    %c0_32 = arith.constant 0 : index
    %c0_33 = arith.constant 0 : index
    %c0_34 = arith.constant 0 : index
    %104 = vector.load %arg5[%c0_32, %c0_33, %c0_34] : memref<2x128x128xbf16, #tpu.memory_space<vmem>>, vector<1x128x128xbf16>
    %105 = vector.shape_cast %104 : vector<1x128x128xbf16> to vector<128x128xbf16>
    %106 = arith.truncf %103 : vector<16x128xf32> to vector<16x128xbf16>
    %cst_35 = arith.constant dense<0.000000e+00> : vector<16x128xf32>
    %107 = tpu.matmul %106, %105, %cst_35 {dimension_numbers = #tpu.dot_dimension_numbers<[1], [0], [0], [1], [0, 0, 1, 1], [], []>} : vector<16x128xbf16>, vector<128x128xbf16>, vector<16x128xf32> -> vector<16x128xf32>
    %c0_36 = arith.constant 0 : index
    %c0_37 = arith.constant 0 : index
    %c0_38 = arith.constant 0 : index
    %108 = vector.load %arg6[%c0_36, %c0_37, %c0_38] : memref<2x1x128xf32, #tpu.memory_space<vmem>>, vector<1x1x128xf32>
    %109 = vector.shape_cast %108 : vector<1x1x128xf32> to vector<1x128xf32>
    %110 = vector.broadcast %109 : vector<1x128xf32> to vector<16x128xf32>
    %111 = arith.addf %107, %110 : vector<16x128xf32>
    %112 = arith.addf %111, %22 : vector<16x128xf32>
    %c0_39 = arith.constant 0 : index
    %c0_40 = arith.constant 0 : index
    %c0_41 = arith.constant 0 : index
    %113 = vector.load %arg7[%c0_39, %c0_40, %c0_41] : memref<2x1x128xf32, #tpu.memory_space<vmem>>, vector<1x1x128xf32>
    %114 = vector.shape_cast %113 : vector<1x1x128xf32> to vector<1x128xf32>
    %c0_42 = arith.constant 0 : index
    %c0_43 = arith.constant 0 : index
    %c0_44 = arith.constant 0 : index
    %115 = vector.load %arg8[%c0_42, %c0_43, %c0_44] : memref<2x1x128xf32, #tpu.memory_space<vmem>>, vector<1x1x128xf32>
    %116 = vector.shape_cast %115 : vector<1x1x128xf32> to vector<1x128xf32>
    %cst_45 = arith.constant dense<0.000000e+00> : vector<16xf32>
    %117 = vector.multi_reduction <add>, %112, %cst_45 [1] : vector<16x128xf32> to vector<16xf32>
    %118 = vector.shape_cast %117 : vector<16xf32> to vector<16x1xf32>
    %cst_46 = arith.constant 1.280000e+02 : f32
    %119 = vector.broadcast %cst_46 : f32 to vector<16x1xf32>
    %120 = arith.divf %118, %119 : vector<16x1xf32>
    %121 = vector.broadcast %120 : vector<16x1xf32> to vector<16x128xf32>
    %122 = arith.subf %112, %121 : vector<16x128xf32>
    %123 = arith.mulf %122, %122 : vector<16x128xf32>
    %cst_47 = arith.constant dense<0.000000e+00> : vector<16xf32>
    %124 = vector.multi_reduction <add>, %123, %cst_47 [1] : vector<16x128xf32> to vector<16xf32>
    %125 = vector.shape_cast %124 : vector<16xf32> to vector<16x1xf32>
    %cst_48 = arith.constant 1.280000e+02 : f32
    %126 = vector.broadcast %cst_48 : f32 to vector<16x1xf32>
    %127 = arith.divf %125, %126 : vector<16x1xf32>
    %cst_49 = arith.constant 9.99999996E-13 : f32
    %128 = vector.broadcast %cst_49 : f32 to vector<16x1xf32>
    %129 = arith.addf %127, %128 : vector<16x1xf32>
    %130 = math.rsqrt %129 : vector<16x1xf32>
    %131 = vector.broadcast %130 : vector<16x1xf32> to vector<16x128xf32>
    %132 = arith.mulf %122, %131 : vector<16x128xf32>
    %133 = vector.broadcast %114 : vector<1x128xf32> to vector<16x128xf32>
    %134 = arith.mulf %132, %133 : vector<16x128xf32>
    %135 = vector.broadcast %116 : vector<1x128xf32> to vector<16x128xf32>
    %136 = arith.addf %134, %135 : vector<16x128xf32>
    %c0_50 = arith.constant 0 : index
    %c0_51 = arith.constant 0 : index
    %c0_52 = arith.constant 0 : index
    %137 = vector.load %arg9[%c0_50, %c0_51, %c0_52] : memref<2x128x256xbf16, #tpu.memory_space<vmem>>, vector<1x128x256xbf16>
    %138 = vector.shape_cast %137 : vector<1x128x256xbf16> to vector<128x256xbf16>
    %139 = arith.truncf %136 : vector<16x128xf32> to vector<16x128xbf16>
    %cst_53 = arith.constant dense<0.000000e+00> : vector<16x256xf32>
    %140 = tpu.matmul %139, %138, %cst_53 {dimension_numbers = #tpu.dot_dimension_numbers<[1], [0], [0], [1], [0, 0, 1, 1], [], []>} : vector<16x128xbf16>, vector<128x256xbf16>, vector<16x256xf32> -> vector<16x256xf32>
    %c0_54 = arith.constant 0 : index
    %c0_55 = arith.constant 0 : index
    %c0_56 = arith.constant 0 : index
    %141 = vector.load %arg10[%c0_54, %c0_55, %c0_56] : memref<2x1x256xf32, #tpu.memory_space<vmem>>, vector<1x1x256xf32>
    %142 = vector.shape_cast %141 : vector<1x1x256xf32> to vector<1x256xf32>
    %143 = vector.broadcast %142 : vector<1x256xf32> to vector<16x256xf32>
    %144 = arith.addf %140, %143 : vector<16x256xf32>
    %cst_57 = arith.constant 5.000000e-01 : f32
    %145 = vector.broadcast %cst_57 : f32 to vector<16x256xf32>
    %146 = arith.mulf %145, %144 : vector<16x256xf32>
    %cst_58 = arith.constant 4.471500e-02 : f32
    %147 = vector.broadcast %cst_58 : f32 to vector<16x256xf32>
    %148 = arith.mulf %147, %144 : vector<16x256xf32>
    %149 = arith.mulf %148, %144 : vector<16x256xf32>
    %150 = arith.mulf %149, %144 : vector<16x256xf32>
    %151 = arith.addf %144, %150 : vector<16x256xf32>
    %cst_59 = arith.constant 0.797884583 : f32
    %152 = vector.broadcast %cst_59 : f32 to vector<16x256xf32>
    %153 = arith.mulf %152, %151 : vector<16x256xf32>
    %154 = math.tanh %153 : vector<16x256xf32>
    %cst_60 = arith.constant 1.000000e+00 : f32
    %155 = vector.broadcast %cst_60 : f32 to vector<16x256xf32>
    %156 = arith.addf %155, %154 : vector<16x256xf32>
    %157 = arith.mulf %146, %156 : vector<16x256xf32>
    %c0_61 = arith.constant 0 : index
    %c0_62 = arith.constant 0 : index
    %c0_63 = arith.constant 0 : index
    %158 = vector.load %arg11[%c0_61, %c0_62, %c0_63] : memref<2x256x128xbf16, #tpu.memory_space<vmem>>, vector<1x256x128xbf16>
    %159 = vector.shape_cast %158 : vector<1x256x128xbf16> to vector<256x128xbf16>
    %160 = arith.truncf %157 : vector<16x256xf32> to vector<16x256xbf16>
    %cst_64 = arith.constant dense<0.000000e+00> : vector<16x128xf32>
    %161 = tpu.matmul %160, %159, %cst_64 {dimension_numbers = #tpu.dot_dimension_numbers<[1], [0], [0], [1], [0, 0, 1, 1], [], []>} : vector<16x256xbf16>, vector<256x128xbf16>, vector<16x128xf32> -> vector<16x128xf32>
    %c0_65 = arith.constant 0 : index
    %c0_66 = arith.constant 0 : index
    %c0_67 = arith.constant 0 : index
    %162 = vector.load %arg12[%c0_65, %c0_66, %c0_67] : memref<2x1x128xf32, #tpu.memory_space<vmem>>, vector<1x1x128xf32>
    %163 = vector.shape_cast %162 : vector<1x1x128xf32> to vector<1x128xf32>
    %164 = vector.broadcast %163 : vector<1x128xf32> to vector<16x128xf32>
    %165 = arith.addf %161, %164 : vector<16x128xf32>
    %166 = arith.addf %165, %136 : vector<16x128xf32>
    %c0_68 = arith.constant 0 : index
    %c0_69 = arith.constant 0 : index
    %c0_70 = arith.constant 0 : index
    %167 = vector.load %arg13[%c0_68, %c0_69, %c0_70] : memref<2x1x128xf32, #tpu.memory_space<vmem>>, vector<1x1x128xf32>
    %168 = vector.shape_cast %167 : vector<1x1x128xf32> to vector<1x128xf32>
    %c0_71 = arith.constant 0 : index
    %c0_72 = arith.constant 0 : index
    %c0_73 = arith.constant 0 : index
    %169 = vector.load %arg14[%c0_71, %c0_72, %c0_73] : memref<2x1x128xf32, #tpu.memory_space<vmem>>, vector<1x1x128xf32>
    %170 = vector.shape_cast %169 : vector<1x1x128xf32> to vector<1x128xf32>
    %cst_74 = arith.constant dense<0.000000e+00> : vector<16xf32>
    %171 = vector.multi_reduction <add>, %166, %cst_74 [1] : vector<16x128xf32> to vector<16xf32>
    %172 = vector.shape_cast %171 : vector<16xf32> to vector<16x1xf32>
    %cst_75 = arith.constant 1.280000e+02 : f32
    %173 = vector.broadcast %cst_75 : f32 to vector<16x1xf32>
    %174 = arith.divf %172, %173 : vector<16x1xf32>
    %175 = vector.broadcast %174 : vector<16x1xf32> to vector<16x128xf32>
    %176 = arith.subf %166, %175 : vector<16x128xf32>
    %177 = arith.mulf %176, %176 : vector<16x128xf32>
    %cst_76 = arith.constant dense<0.000000e+00> : vector<16xf32>
    %178 = vector.multi_reduction <add>, %177, %cst_76 [1] : vector<16x128xf32> to vector<16xf32>
    %179 = vector.shape_cast %178 : vector<16xf32> to vector<16x1xf32>
    %cst_77 = arith.constant 1.280000e+02 : f32
    %180 = vector.broadcast %cst_77 : f32 to vector<16x1xf32>
    %181 = arith.divf %179, %180 : vector<16x1xf32>
    %cst_78 = arith.constant 9.99999996E-13 : f32
    %182 = vector.broadcast %cst_78 : f32 to vector<16x1xf32>
    %183 = arith.addf %181, %182 : vector<16x1xf32>
    %184 = math.rsqrt %183 : vector<16x1xf32>
    %185 = vector.broadcast %184 : vector<16x1xf32> to vector<16x128xf32>
    %186 = arith.mulf %176, %185 : vector<16x128xf32>
    %187 = vector.broadcast %168 : vector<1x128xf32> to vector<16x128xf32>
    %188 = arith.mulf %186, %187 : vector<16x128xf32>
    %189 = vector.broadcast %170 : vector<1x128xf32> to vector<16x128xf32>
    %190 = arith.addf %188, %189 : vector<16x128xf32>
    %c1 = arith.constant 1 : index
    %c0_79 = arith.constant 0 : index
    %c0_80 = arith.constant 0 : index
    %191 = vector.load %arg3[%c1, %c0_79, %c0_80] : memref<2x128x384xbf16, #tpu.memory_space<vmem>>, vector<1x128x384xbf16>
    %192 = vector.shape_cast %191 : vector<1x128x384xbf16> to vector<128x384xbf16>
    %193 = arith.truncf %190 : vector<16x128xf32> to vector<16x128xbf16>
    %cst_81 = arith.constant dense<0.000000e+00> : vector<16x384xf32>
    %194 = tpu.matmul %193, %192, %cst_81 {dimension_numbers = #tpu.dot_dimension_numbers<[1], [0], [0], [1], [0, 0, 1, 1], [], []>} : vector<16x128xbf16>, vector<128x384xbf16>, vector<16x384xf32> -> vector<16x384xf32>
    %c1_82 = arith.constant 1 : index
    %c0_83 = arith.constant 0 : index
    %c0_84 = arith.constant 0 : index
    %195 = vector.load %arg4[%c1_82, %c0_83, %c0_84] : memref<2x1x384xf32, #tpu.memory_space<vmem>>, vector<1x1x384xf32>
    %196 = vector.shape_cast %195 : vector<1x1x384xf32> to vector<1x384xf32>
    %197 = vector.broadcast %196 : vector<1x384xf32> to vector<16x384xf32>
    %198 = arith.addf %194, %197 : vector<16x384xf32>
    %199 = arith.truncf %198 : vector<16x384xf32> to vector<16x384xbf16>
    %200 = vector.extract_strided_slice %199 {offsets = [0, 0], sizes = [16, 128], strides = [1, 1]} : vector<16x384xbf16> to vector<16x128xbf16>
    %201 = vector.shape_cast %200 : vector<16x128xbf16> to vector<2x8x128xbf16>
    %202 = vector.extract_strided_slice %199 {offsets = [0, 128], sizes = [16, 128], strides = [1, 1]} : vector<16x384xbf16> to vector<16x128xbf16>
    %203 = vector.shape_cast %202 : vector<16x128xbf16> to vector<2x8x128xbf16>
    %204 = vector.extract_strided_slice %199 {offsets = [0, 256], sizes = [16, 128], strides = [1, 1]} : vector<16x384xbf16> to vector<16x128xbf16>
    %205 = vector.shape_cast %204 : vector<16x128xbf16> to vector<2x8x128xbf16>
    %206 = vector.extract_strided_slice %201 {offsets = [0, 0, 0], sizes = [2, 8, 32], strides = [1, 1, 1]} : vector<2x8x128xbf16> to vector<2x8x32xbf16>
    %207 = vector.extract_strided_slice %203 {offsets = [0, 0, 0], sizes = [2, 8, 32], strides = [1, 1, 1]} : vector<2x8x128xbf16> to vector<2x8x32xbf16>
    %208 = vector.extract_strided_slice %205 {offsets = [0, 0, 0], sizes = [2, 8, 32], strides = [1, 1, 1]} : vector<2x8x128xbf16> to vector<2x8x32xbf16>
    "tpu.trace_start"() <{level = 10 : i32, message = "bsd,btd->bst"}> : () -> ()
    %cst_85 = arith.constant dense<0.000000e+00> : vector<2x8x8xf32>
    %209 = tpu.matmul %206, %207, %cst_85 {dimension_numbers = #tpu.dot_dimension_numbers<[2], [2], [1], [1], [0, 0, 0, 1, 1, 1], [0], [0]>} : vector<2x8x32xbf16>, vector<2x8x32xbf16>, vector<2x8x8xf32> -> vector<2x8x8xf32>
    "tpu.trace_stop"() : () -> ()
    %cst_86 = arith.constant dense<0xFF800000> : vector<2x8xf32>
    %210 = vector.multi_reduction <maximumf>, %209, %cst_86 [2] : vector<2x8x8xf32> to vector<2x8xf32>
    %211 = vector.shape_cast %210 : vector<2x8xf32> to vector<2x8x1xf32>
    %212 = vector.broadcast %211 : vector<2x8x1xf32> to vector<2x8x8xf32>
    %213 = arith.subf %209, %212 : vector<2x8x8xf32>
    %214 = math.exp %213 : vector<2x8x8xf32>
    %cst_87 = arith.constant dense<0.000000e+00> : vector<2x8xf32>
    %215 = vector.multi_reduction <add>, %214, %cst_87 [2] : vector<2x8x8xf32> to vector<2x8xf32>
    %216 = vector.shape_cast %215 : vector<2x8xf32> to vector<2x8x1xf32>
    %217 = tpu.reciprocal %216 {approx = true} : vector<2x8x1xf32> -> vector<2x8x1xf32>
    %218 = vector.broadcast %217 : vector<2x8x1xf32> to vector<2x8x8xf32>
    %219 = arith.mulf %214, %218 : vector<2x8x8xf32>
    %220 = arith.truncf %219 : vector<2x8x8xf32> to vector<2x8x8xbf16>
    "tpu.trace_start"() <{level = 10 : i32, message = "bst,btd->bsd"}> : () -> ()
    %cst_88 = arith.constant dense<0.000000e+00> : vector<2x8x32xf32>
    %221 = tpu.matmul %220, %208, %cst_88 {dimension_numbers = #tpu.dot_dimension_numbers<[2], [1], [1], [2], [0, 0, 0, 1, 1, 2], [0], [0]>} : vector<2x8x8xbf16>, vector<2x8x32xbf16>, vector<2x8x32xf32> -> vector<2x8x32xf32>
    "tpu.trace_stop"() : () -> ()
    %222 = vector.extract_strided_slice %201 {offsets = [0, 0, 32], sizes = [2, 8, 32], strides = [1, 1, 1]} : vector<2x8x128xbf16> to vector<2x8x32xbf16>
    %223 = vector.extract_strided_slice %203 {offsets = [0, 0, 32], sizes = [2, 8, 32], strides = [1, 1, 1]} : vector<2x8x128xbf16> to vector<2x8x32xbf16>
    %224 = vector.extract_strided_slice %205 {offsets = [0, 0, 32], sizes = [2, 8, 32], strides = [1, 1, 1]} : vector<2x8x128xbf16> to vector<2x8x32xbf16>
    "tpu.trace_start"() <{level = 10 : i32, message = "bsd,btd->bst"}> : () -> ()
    %cst_89 = arith.constant dense<0.000000e+00> : vector<2x8x8xf32>
    %225 = tpu.matmul %222, %223, %cst_89 {dimension_numbers = #tpu.dot_dimension_numbers<[2], [2], [1], [1], [0, 0, 0, 1, 1, 1], [0], [0]>} : vector<2x8x32xbf16>, vector<2x8x32xbf16>, vector<2x8x8xf32> -> vector<2x8x8xf32>
    "tpu.trace_stop"() : () -> ()
    %cst_90 = arith.constant dense<0xFF800000> : vector<2x8xf32>
    %226 = vector.multi_reduction <maximumf>, %225, %cst_90 [2] : vector<2x8x8xf32> to vector<2x8xf32>
    %227 = vector.shape_cast %226 : vector<2x8xf32> to vector<2x8x1xf32>
    %228 = vector.broadcast %227 : vector<2x8x1xf32> to vector<2x8x8xf32>
    %229 = arith.subf %225, %228 : vector<2x8x8xf32>
    %230 = math.exp %229 : vector<2x8x8xf32>
    %cst_91 = arith.constant dense<0.000000e+00> : vector<2x8xf32>
    %231 = vector.multi_reduction <add>, %230, %cst_91 [2] : vector<2x8x8xf32> to vector<2x8xf32>
    %232 = vector.shape_cast %231 : vector<2x8xf32> to vector<2x8x1xf32>
    %233 = tpu.reciprocal %232 {approx = true} : vector<2x8x1xf32> -> vector<2x8x1xf32>
    %234 = vector.broadcast %233 : vector<2x8x1xf32> to vector<2x8x8xf32>
    %235 = arith.mulf %230, %234 : vector<2x8x8xf32>
    %236 = arith.truncf %235 : vector<2x8x8xf32> to vector<2x8x8xbf16>
    "tpu.trace_start"() <{level = 10 : i32, message = "bst,btd->bsd"}> : () -> ()
    %cst_92 = arith.constant dense<0.000000e+00> : vector<2x8x32xf32>
    %237 = tpu.matmul %236, %224, %cst_92 {dimension_numbers = #tpu.dot_dimension_numbers<[2], [1], [1], [2], [0, 0, 0, 1, 1, 2], [0], [0]>} : vector<2x8x8xbf16>, vector<2x8x32xbf16>, vector<2x8x32xf32> -> vector<2x8x32xf32>
    "tpu.trace_stop"() : () -> ()
    %238 = vector.extract_strided_slice %201 {offsets = [0, 0, 64], sizes = [2, 8, 32], strides = [1, 1, 1]} : vector<2x8x128xbf16> to vector<2x8x32xbf16>
    %239 = vector.extract_strided_slice %203 {offsets = [0, 0, 64], sizes = [2, 8, 32], strides = [1, 1, 1]} : vector<2x8x128xbf16> to vector<2x8x32xbf16>
    %240 = vector.extract_strided_slice %205 {offsets = [0, 0, 64], sizes = [2, 8, 32], strides = [1, 1, 1]} : vector<2x8x128xbf16> to vector<2x8x32xbf16>
    "tpu.trace_start"() <{level = 10 : i32, message = "bsd,btd->bst"}> : () -> ()
    %cst_93 = arith.constant dense<0.000000e+00> : vector<2x8x8xf32>
    %241 = tpu.matmul %238, %239, %cst_93 {dimension_numbers = #tpu.dot_dimension_numbers<[2], [2], [1], [1], [0, 0, 0, 1, 1, 1], [0], [0]>} : vector<2x8x32xbf16>, vector<2x8x32xbf16>, vector<2x8x8xf32> -> vector<2x8x8xf32>
    "tpu.trace_stop"() : () -> ()
    %cst_94 = arith.constant dense<0xFF800000> : vector<2x8xf32>
    %242 = vector.multi_reduction <maximumf>, %241, %cst_94 [2] : vector<2x8x8xf32> to vector<2x8xf32>
    %243 = vector.shape_cast %242 : vector<2x8xf32> to vector<2x8x1xf32>
    %244 = vector.broadcast %243 : vector<2x8x1xf32> to vector<2x8x8xf32>
    %245 = arith.subf %241, %244 : vector<2x8x8xf32>
    %246 = math.exp %245 : vector<2x8x8xf32>
    %cst_95 = arith.constant dense<0.000000e+00> : vector<2x8xf32>
    %247 = vector.multi_reduction <add>, %246, %cst_95 [2] : vector<2x8x8xf32> to vector<2x8xf32>
    %248 = vector.shape_cast %247 : vector<2x8xf32> to vector<2x8x1xf32>
    %249 = tpu.reciprocal %248 {approx = true} : vector<2x8x1xf32> -> vector<2x8x1xf32>
    %250 = vector.broadcast %249 : vector<2x8x1xf32> to vector<2x8x8xf32>
    %251 = arith.mulf %246, %250 : vector<2x8x8xf32>
    %252 = arith.truncf %251 : vector<2x8x8xf32> to vector<2x8x8xbf16>
    "tpu.trace_start"() <{level = 10 : i32, message = "bst,btd->bsd"}> : () -> ()
    %cst_96 = arith.constant dense<0.000000e+00> : vector<2x8x32xf32>
    %253 = tpu.matmul %252, %240, %cst_96 {dimension_numbers = #tpu.dot_dimension_numbers<[2], [1], [1], [2], [0, 0, 0, 1, 1, 2], [0], [0]>} : vector<2x8x8xbf16>, vector<2x8x32xbf16>, vector<2x8x32xf32> -> vector<2x8x32xf32>
    "tpu.trace_stop"() : () -> ()
    %254 = vector.extract_strided_slice %201 {offsets = [0, 0, 96], sizes = [2, 8, 32], strides = [1, 1, 1]} : vector<2x8x128xbf16> to vector<2x8x32xbf16>
    %255 = vector.extract_strided_slice %203 {offsets = [0, 0, 96], sizes = [2, 8, 32], strides = [1, 1, 1]} : vector<2x8x128xbf16> to vector<2x8x32xbf16>
    %256 = vector.extract_strided_slice %205 {offsets = [0, 0, 96], sizes = [2, 8, 32], strides = [1, 1, 1]} : vector<2x8x128xbf16> to vector<2x8x32xbf16>
    "tpu.trace_start"() <{level = 10 : i32, message = "bsd,btd->bst"}> : () -> ()
    %cst_97 = arith.constant dense<0.000000e+00> : vector<2x8x8xf32>
    %257 = tpu.matmul %254, %255, %cst_97 {dimension_numbers = #tpu.dot_dimension_numbers<[2], [2], [1], [1], [0, 0, 0, 1, 1, 1], [0], [0]>} : vector<2x8x32xbf16>, vector<2x8x32xbf16>, vector<2x8x8xf32> -> vector<2x8x8xf32>
    "tpu.trace_stop"() : () -> ()
    %cst_98 = arith.constant dense<0xFF800000> : vector<2x8xf32>
    %258 = vector.multi_reduction <maximumf>, %257, %cst_98 [2] : vector<2x8x8xf32> to vector<2x8xf32>
    %259 = vector.shape_cast %258 : vector<2x8xf32> to vector<2x8x1xf32>
    %260 = vector.broadcast %259 : vector<2x8x1xf32> to vector<2x8x8xf32>
    %261 = arith.subf %257, %260 : vector<2x8x8xf32>
    %262 = math.exp %261 : vector<2x8x8xf32>
    %cst_99 = arith.constant dense<0.000000e+00> : vector<2x8xf32>
    %263 = vector.multi_reduction <add>, %262, %cst_99 [2] : vector<2x8x8xf32> to vector<2x8xf32>
    %264 = vector.shape_cast %263 : vector<2x8xf32> to vector<2x8x1xf32>
    %265 = tpu.reciprocal %264 {approx = true} : vector<2x8x1xf32> -> vector<2x8x1xf32>
    %266 = vector.broadcast %265 : vector<2x8x1xf32> to vector<2x8x8xf32>
    %267 = arith.mulf %262, %266 : vector<2x8x8xf32>
    %268 = arith.truncf %267 : vector<2x8x8xf32> to vector<2x8x8xbf16>
    "tpu.trace_start"() <{level = 10 : i32, message = "bst,btd->bsd"}> : () -> ()
    %cst_100 = arith.constant dense<0.000000e+00> : vector<2x8x32xf32>
    %269 = tpu.matmul %268, %256, %cst_100 {dimension_numbers = #tpu.dot_dimension_numbers<[2], [1], [1], [2], [0, 0, 0, 1, 1, 2], [0], [0]>} : vector<2x8x8xbf16>, vector<2x8x32xbf16>, vector<2x8x32xf32> -> vector<2x8x32xf32>
    "tpu.trace_stop"() : () -> ()
    %270 = tpu.concatenate %221, %237, %253, %269 in 2 : vector<2x8x32xf32>, vector<2x8x32xf32>, vector<2x8x32xf32>, vector<2x8x32xf32> -> vector<2x8x128xf32>
    %271 = vector.shape_cast %270 : vector<2x8x128xf32> to vector<16x128xf32>
    %c1_101 = arith.constant 1 : index
    %c0_102 = arith.constant 0 : index
    %c0_103 = arith.constant 0 : index
    %272 = vector.load %arg5[%c1_101, %c0_102, %c0_103] : memref<2x128x128xbf16, #tpu.memory_space<vmem>>, vector<1x128x128xbf16>
    %273 = vector.shape_cast %272 : vector<1x128x128xbf16> to vector<128x128xbf16>
    %274 = arith.truncf %271 : vector<16x128xf32> to vector<16x128xbf16>
    %cst_104 = arith.constant dense<0.000000e+00> : vector<16x128xf32>
    %275 = tpu.matmul %274, %273, %cst_104 {dimension_numbers = #tpu.dot_dimension_numbers<[1], [0], [0], [1], [0, 0, 1, 1], [], []>} : vector<16x128xbf16>, vector<128x128xbf16>, vector<16x128xf32> -> vector<16x128xf32>
    %c1_105 = arith.constant 1 : index
    %c0_106 = arith.constant 0 : index
    %c0_107 = arith.constant 0 : index
    %276 = vector.load %arg6[%c1_105, %c0_106, %c0_107] : memref<2x1x128xf32, #tpu.memory_space<vmem>>, vector<1x1x128xf32>
    %277 = vector.shape_cast %276 : vector<1x1x128xf32> to vector<1x128xf32>
    %278 = vector.broadcast %277 : vector<1x128xf32> to vector<16x128xf32>
    %279 = arith.addf %275, %278 : vector<16x128xf32>
    %280 = arith.addf %279, %190 : vector<16x128xf32>
    %c1_108 = arith.constant 1 : index
    %c0_109 = arith.constant 0 : index
    %c0_110 = arith.constant 0 : index
    %281 = vector.load %arg7[%c1_108, %c0_109, %c0_110] : memref<2x1x128xf32, #tpu.memory_space<vmem>>, vector<1x1x128xf32>
    %282 = vector.shape_cast %281 : vector<1x1x128xf32> to vector<1x128xf32>
    %c1_111 = arith.constant 1 : index
    %c0_112 = arith.constant 0 : index
    %c0_113 = arith.constant 0 : index
    %283 = vector.load %arg8[%c1_111, %c0_112, %c0_113] : memref<2x1x128xf32, #tpu.memory_space<vmem>>, vector<1x1x128xf32>
    %284 = vector.shape_cast %283 : vector<1x1x128xf32> to vector<1x128xf32>
    %cst_114 = arith.constant dense<0.000000e+00> : vector<16xf32>
    %285 = vector.multi_reduction <add>, %280, %cst_114 [1] : vector<16x128xf32> to vector<16xf32>
    %286 = vector.shape_cast %285 : vector<16xf32> to vector<16x1xf32>
    %cst_115 = arith.constant 1.280000e+02 : f32
    %287 = vector.broadcast %cst_115 : f32 to vector<16x1xf32>
    %288 = arith.divf %286, %287 : vector<16x1xf32>
    %289 = vector.broadcast %288 : vector<16x1xf32> to vector<16x128xf32>
    %290 = arith.subf %280, %289 : vector<16x128xf32>
    %291 = arith.mulf %290, %290 : vector<16x128xf32>
    %cst_116 = arith.constant dense<0.000000e+00> : vector<16xf32>
    %292 = vector.multi_reduction <add>, %291, %cst_116 [1] : vector<16x128xf32> to vector<16xf32>
    %293 = vector.shape_cast %292 : vector<16xf32> to vector<16x1xf32>
    %cst_117 = arith.constant 1.280000e+02 : f32
    %294 = vector.broadcast %cst_117 : f32 to vector<16x1xf32>
    %295 = arith.divf %293, %294 : vector<16x1xf32>
    %cst_118 = arith.constant 9.99999996E-13 : f32
    %296 = vector.broadcast %cst_118 : f32 to vector<16x1xf32>
    %297 = arith.addf %295, %296 : vector<16x1xf32>
    %298 = math.rsqrt %297 : vector<16x1xf32>
    %299 = vector.broadcast %298 : vector<16x1xf32> to vector<16x128xf32>
    %300 = arith.mulf %290, %299 : vector<16x128xf32>
    %301 = vector.broadcast %282 : vector<1x128xf32> to vector<16x128xf32>
    %302 = arith.mulf %300, %301 : vector<16x128xf32>
    %303 = vector.broadcast %284 : vector<1x128xf32> to vector<16x128xf32>
    %304 = arith.addf %302, %303 : vector<16x128xf32>
    %c1_119 = arith.constant 1 : index
    %c0_120 = arith.constant 0 : index
    %c0_121 = arith.constant 0 : index
    %305 = vector.load %arg9[%c1_119, %c0_120, %c0_121] : memref<2x128x256xbf16, #tpu.memory_space<vmem>>, vector<1x128x256xbf16>
    %306 = vector.shape_cast %305 : vector<1x128x256xbf16> to vector<128x256xbf16>
    %307 = arith.truncf %304 : vector<16x128xf32> to vector<16x128xbf16>
    %cst_122 = arith.constant dense<0.000000e+00> : vector<16x256xf32>
    %308 = tpu.matmul %307, %306, %cst_122 {dimension_numbers = #tpu.dot_dimension_numbers<[1], [0], [0], [1], [0, 0, 1, 1], [], []>} : vector<16x128xbf16>, vector<128x256xbf16>, vector<16x256xf32> -> vector<16x256xf32>
    %c1_123 = arith.constant 1 : index
    %c0_124 = arith.constant 0 : index
    %c0_125 = arith.constant 0 : index
    %309 = vector.load %arg10[%c1_123, %c0_124, %c0_125] : memref<2x1x256xf32, #tpu.memory_space<vmem>>, vector<1x1x256xf32>
    %310 = vector.shape_cast %309 : vector<1x1x256xf32> to vector<1x256xf32>
    %311 = vector.broadcast %310 : vector<1x256xf32> to vector<16x256xf32>
    %312 = arith.addf %308, %311 : vector<16x256xf32>
    %cst_126 = arith.constant 5.000000e-01 : f32
    %313 = vector.broadcast %cst_126 : f32 to vector<16x256xf32>
    %314 = arith.mulf %313, %312 : vector<16x256xf32>
    %cst_127 = arith.constant 4.471500e-02 : f32
    %315 = vector.broadcast %cst_127 : f32 to vector<16x256xf32>
    %316 = arith.mulf %315, %312 : vector<16x256xf32>
    %317 = arith.mulf %316, %312 : vector<16x256xf32>
    %318 = arith.mulf %317, %312 : vector<16x256xf32>
    %319 = arith.addf %312, %318 : vector<16x256xf32>
    %cst_128 = arith.constant 0.797884583 : f32
    %320 = vector.broadcast %cst_128 : f32 to vector<16x256xf32>
    %321 = arith.mulf %320, %319 : vector<16x256xf32>
    %322 = math.tanh %321 : vector<16x256xf32>
    %cst_129 = arith.constant 1.000000e+00 : f32
    %323 = vector.broadcast %cst_129 : f32 to vector<16x256xf32>
    %324 = arith.addf %323, %322 : vector<16x256xf32>
    %325 = arith.mulf %314, %324 : vector<16x256xf32>
    %c1_130 = arith.constant 1 : index
    %c0_131 = arith.constant 0 : index
    %c0_132 = arith.constant 0 : index
    %326 = vector.load %arg11[%c1_130, %c0_131, %c0_132] : memref<2x256x128xbf16, #tpu.memory_space<vmem>>, vector<1x256x128xbf16>
    %327 = vector.shape_cast %326 : vector<1x256x128xbf16> to vector<256x128xbf16>
    %328 = arith.truncf %325 : vector<16x256xf32> to vector<16x256xbf16>
    %cst_133 = arith.constant dense<0.000000e+00> : vector<16x128xf32>
    %329 = tpu.matmul %328, %327, %cst_133 {dimension_numbers = #tpu.dot_dimension_numbers<[1], [0], [0], [1], [0, 0, 1, 1], [], []>} : vector<16x256xbf16>, vector<256x128xbf16>, vector<16x128xf32> -> vector<16x128xf32>
    %c1_134 = arith.constant 1 : index
    %c0_135 = arith.constant 0 : index
    %c0_136 = arith.constant 0 : index
    %330 = vector.load %arg12[%c1_134, %c0_135, %c0_136] : memref<2x1x128xf32, #tpu.memory_space<vmem>>, vector<1x1x128xf32>
    %331 = vector.shape_cast %330 : vector<1x1x128xf32> to vector<1x128xf32>
    %332 = vector.broadcast %331 : vector<1x128xf32> to vector<16x128xf32>
    %333 = arith.addf %329, %332 : vector<16x128xf32>
    %334 = arith.addf %333, %304 : vector<16x128xf32>
    %c1_137 = arith.constant 1 : index
    %c0_138 = arith.constant 0 : index
    %c0_139 = arith.constant 0 : index
    %335 = vector.load %arg13[%c1_137, %c0_138, %c0_139] : memref<2x1x128xf32, #tpu.memory_space<vmem>>, vector<1x1x128xf32>
    %336 = vector.shape_cast %335 : vector<1x1x128xf32> to vector<1x128xf32>
    %c1_140 = arith.constant 1 : index
    %c0_141 = arith.constant 0 : index
    %c0_142 = arith.constant 0 : index
    %337 = vector.load %arg14[%c1_140, %c0_141, %c0_142] : memref<2x1x128xf32, #tpu.memory_space<vmem>>, vector<1x1x128xf32>
    %338 = vector.shape_cast %337 : vector<1x1x128xf32> to vector<1x128xf32>
    %cst_143 = arith.constant dense<0.000000e+00> : vector<16xf32>
    %339 = vector.multi_reduction <add>, %334, %cst_143 [1] : vector<16x128xf32> to vector<16xf32>
    %340 = vector.shape_cast %339 : vector<16xf32> to vector<16x1xf32>
    %cst_144 = arith.constant 1.280000e+02 : f32
    %341 = vector.broadcast %cst_144 : f32 to vector<16x1xf32>
    %342 = arith.divf %340, %341 : vector<16x1xf32>
    %343 = vector.broadcast %342 : vector<16x1xf32> to vector<16x128xf32>
    %344 = arith.subf %334, %343 : vector<16x128xf32>
    %345 = arith.mulf %344, %344 : vector<16x128xf32>
    %cst_145 = arith.constant dense<0.000000e+00> : vector<16xf32>
    %346 = vector.multi_reduction <add>, %345, %cst_145 [1] : vector<16x128xf32> to vector<16xf32>
    %347 = vector.shape_cast %346 : vector<16xf32> to vector<16x1xf32>
    %cst_146 = arith.constant 1.280000e+02 : f32
    %348 = vector.broadcast %cst_146 : f32 to vector<16x1xf32>
    %349 = arith.divf %347, %348 : vector<16x1xf32>
    %cst_147 = arith.constant 9.99999996E-13 : f32
    %350 = vector.broadcast %cst_147 : f32 to vector<16x1xf32>
    %351 = arith.addf %349, %350 : vector<16x1xf32>
    %352 = math.rsqrt %351 : vector<16x1xf32>
    %353 = vector.broadcast %352 : vector<16x1xf32> to vector<16x128xf32>
    %354 = arith.mulf %344, %353 : vector<16x128xf32>
    %355 = vector.broadcast %336 : vector<1x128xf32> to vector<16x128xf32>
    %356 = arith.mulf %354, %355 : vector<16x128xf32>
    %357 = vector.broadcast %338 : vector<1x128xf32> to vector<16x128xf32>
    %358 = arith.addf %356, %357 : vector<16x128xf32>
    %359 = vector.extract_strided_slice %358 {offsets = [0, 0], sizes = [1, 128], strides = [1, 1]} : vector<16x128xf32> to vector<1x128xf32>
    %360 = vector.extract_strided_slice %358 {offsets = [8, 0], sizes = [1, 128], strides = [1, 1]} : vector<16x128xf32> to vector<1x128xf32>
    %361 = tpu.concatenate %359, %360 in 0 : vector<1x128xf32>, vector<1x128xf32> -> vector<2x128xf32>
    %c0_148 = arith.constant 0 : index
    %c0_149 = arith.constant 0 : index
    %362 = vector.load %arg15[%c0_148, %c0_149] : memref<128x128xbf16, #tpu.memory_space<vmem>>, vector<128x128xbf16>
    %363 = arith.truncf %361 : vector<2x128xf32> to vector<2x128xbf16>
    %cst_150 = arith.constant dense<0.000000e+00> : vector<2x128xf32>
    %364 = tpu.matmul %363, %362, %cst_150 {dimension_numbers = #tpu.dot_dimension_numbers<[1], [0], [0], [1], [0, 0, 1, 1], [], []>} : vector<2x128xbf16>, vector<128x128xbf16>, vector<2x128xf32> -> vector<2x128xf32>
    %c0_151 = arith.constant 0 : index
    %c0_152 = arith.constant 0 : index
    %365 = vector.load %arg16[%c0_151, %c0_152] : memref<1x128xf32, #tpu.memory_space<vmem>>, vector<1x128xf32>
    %366 = vector.broadcast %365 : vector<1x128xf32> to vector<2x128xf32>
    %367 = arith.addf %364, %366 : vector<2x128xf32>
    %368 = math.tanh %367 : vector<2x128xf32>
    %c0_153 = arith.constant 0 : index
    %c0_154 = arith.constant 0 : index
    %369 = vector.load %arg17[%c0_153, %c0_154] : memref<2x128xf32, #tpu.memory_space<vmem>>, vector<2x128xf32>
    tpu.vector_store %arg17[%c0_153, %c0_154], %368 {strides = array<i32>} : memref<2x128xf32, #tpu.memory_space<vmem>>, vector<2x128xf32>,
    return
  }
}

</mosaic_0001>

<llo_original>
// kernel: bert_base_forward.1
$region0: #{bert_base_forward.1}
  #allocation0 [shape = 'u32[]', space=smem, size = 0x4, offset = 0x4, fixed_abs, tag = 'smem constant byte address 0x4 - core index']
  #allocation1 [shape = 'u32[72,128]{1,0:T(1,128)}', space=vmem, size = 0x9000, scoped, tag = 'internal scratch']
  %s0 = inlined_call_operand.vmem [shape: f32[16,128], index: 0, kind: input, shape index: {}]
  %s1 = inlined_call_operand.vmem [shape: f32[1,128], index: 1, kind: input, shape index: {}]
  %s2 = inlined_call_operand.vmem [shape: f32[1,128], index: 2, kind: input, shape index: {}]
  %s3 = inlined_call_operand.hbm [shape: bf16[2,128,384], index: 3, kind: input, shape index: {}]
  %s4 = inlined_call_operand.vmem [shape: f32[2,1,384], index: 4, kind: input, shape index: {}]
  %s5 = inlined_call_operand.vmem [shape: bf16[2,128,128], index: 5, kind: input, shape index: {}]
  %s6 = inlined_call_operand.vmem [shape: f32[2,1,128], index: 6, kind: input, shape index: {}]
  %s7 = inlined_call_operand.vmem [shape: f32[2,1,128], index: 7, kind: input, shape index: {}]
  %s8 = inlined_call_operand.vmem [shape: f32[2,1,128], index: 8, kind: input, shape index: {}]
  %s9 = inlined_call_operand.hbm [shape: bf16[2,128,256], index: 9, kind: input, shape index: {}]
  %s10 = inlined_call_operand.vmem [shape: f32[2,1,256], index: 10, kind: input, shape index: {}]
  %s11 = inlined_call_operand.hbm [shape: bf16[2,256,128], index: 11, kind: input, shape index: {}]
  %s12 = inlined_call_operand.vmem [shape: f32[2,1,128], index: 12, kind: input, shape index: {}]
  %s13 = inlined_call_operand.vmem [shape: f32[2,1,128], index: 13, kind: input, shape index: {}]
  %s14 = inlined_call_operand.vmem [shape: f32[2,1,128], index: 14, kind: input, shape index: {}]
  %s15 = inlined_call_operand.vmem [shape: bf16[128,128], index: 15, kind: input, shape index: {}]
  %s16 = inlined_call_operand.vmem [shape: f32[1,128], index: 16, kind: input, shape index: {}]
  %s17 = inlined_call_operand.vmem [shape: f32[2,128], index: 17, kind: output, shape index: {}]
  %s18 = sld [smem:[#allocation0]]
  $region90: #{bert_base_forward.1} parent=0
    _
  %s20 = ssub.s32 1, %s18
  %s21 = scalar_select 0, %s20, %s18
  $region1: #{bert_base_forward.1} parent=0
    #allocation2 [shape = 'u8[196608]{0}', space=vmem, size = 0x30000, scoped, tag = 'input window, operand 3, single buffered']
    #allocation3 [shape = 's32[1]{0}', space=sflag, size = 0x4, scoped, tag = 'scoped memory for bert_base_forward.1']
    #allocation4 [shape = 'u8[131072]{0}', space=vmem, size = 0x20000, scoped, tag = 'input window, operand 9, single buffered']
    #allocation5 [shape = 's32[1]{0}', space=sflag, size = 0x4, scoped, tag = 'scoped memory for bert_base_forward.1']
    #allocation6 [shape = 'u8[131072]{0}', space=vmem, size = 0x20000, scoped, tag = 'input window, operand 11, single buffered']
    %22 = vsyncpa [#allocation3], 0
    %23 = vsyncpa [#allocation5], 0
    // Predicated region
    $region2: #{bert_base_forward.1} parent=1 // pred_check
      _
    $region3: #{bert_base_forward.1} parent=1 // pred_check_branch
      %25 = sbr.rel (0) target = $region5
    $region4: #{bert_base_forward.1} parent=1 // pred_region
      _
    $region5: #{bert_base_forward.1} parent=1 // pred_fallthru
      _
    // Predicated region
    $region6: #{bert_base_forward.1} parent=1 // pred_check
      _
    $region7: #{bert_base_forward.1} parent=1 // pred_check_branch
      %27 = sbr.rel (0) target = $region9
    $region8: #{bert_base_forward.1} parent=1 // pred_region
      _
    $region9: #{bert_base_forward.1} parent=1 // pred_fallthru
      _
    // Predicated region
    $region10: #{bert_base_forward.1} parent=1 // pred_check
      _
    $region11: #{bert_base_forward.1} parent=1 // pred_check_branch
      %29 = sbr.rel (0) target = $region13
    $region12: #{bert_base_forward.1} parent=1 // pred_region
      _
    $region13: #{bert_base_forward.1} parent=1 // pred_fallthru
      _
    // Predicated region
    $region14: #{bert_base_forward.1} parent=1 // pred_check
      _
    $region15: #{bert_base_forward.1} parent=1 // pred_check_branch
      %31 = sbr.rel (0) target = $region17
    $region16: #{bert_base_forward.1} parent=1 // pred_region
      %33 = vsyncadd [#allocation3], 0
      %s34 = sshll.u32 %s3, 4
      %s35 = int_to_ptr.hbm [resolvable:$true] %s34
      %s36 = sshll.u32 [#allocation2], 4
      %s37 = int_to_ptr.vmem [resolvable:$true] %s36
      %42 = dma.hbm_to_vmem [thread:$0]  %s35, 6144, %s37, [#allocation3], 192, 192, 12
    $region17: #{bert_base_forward.1} parent=1 // pred_fallthru
      _
    // Predicated region
    $region18: #{bert_base_forward.1} parent=1 // pred_check
      _
    $region19: #{bert_base_forward.1} parent=1 // pred_check_branch
      %44 = sbr.rel (0) target = $region21
    $region20: #{bert_base_forward.1} parent=1 // pred_region
      _
    $region21: #{bert_base_forward.1} parent=1 // pred_fallthru
      _
    // Predicated region
    $region22: #{bert_base_forward.1} parent=1 // pred_check
      _
    $region23: #{bert_base_forward.1} parent=1 // pred_check_branch
      %46 = sbr.rel (0) target = $region25
    $region24: #{bert_base_forward.1} parent=1 // pred_region
      _
    $region25: #{bert_base_forward.1} parent=1 // pred_fallthru
      _
    // Predicated region
    $region26: #{bert_base_forward.1} parent=1 // pred_check
      _
    $region27: #{bert_base_forward.1} parent=1 // pred_check_branch
      %48 = sbr.rel (0) target = $region29
    $region28: #{bert_base_forward.1} parent=1 // pred_region
      _
    $region29: #{bert_base_forward.1} parent=1 // pred_fallthru
      _
    // Predicated region
    $region30: #{bert_base_forward.1} parent=1 // pred_check
      _
    $region31: #{bert_base_forward.1} parent=1 // pred_check_branch
      %50 = sbr.rel (0) target = $region33
    $region32: #{bert_base_forward.1} parent=1 // pred_region
      _
    $region33: #{bert_base_forward.1} parent=1 // pred_fallthru
      _
    // Predicated region
    $region34: #{bert_base_forward.1} parent=1 // pred_check
      _
    $region35: #{bert_base_forward.1} parent=1 // pred_check_branch
      %52 = sbr.rel (0) target = $region37
    $region36: #{bert_base_forward.1} parent=1 // pred_region
      _
    $region37: #{bert_base_forward.1} parent=1 // pred_fallthru
      _
    // Predicated region
    $region38: #{bert_base_forward.1} parent=1 // pred_check
      _
    $region39: #{bert_base_forward.1} parent=1 // pred_check_branch
      %54 = sbr.rel (0) target = $region41
    $region40: #{bert_base_forward.1} parent=1 // pred_region
      %56 = vsyncadd [#allocation5], 0
      %s57 = sshll.u32 %s9, 4
      %s58 = int_to_ptr.hbm [resolvable:$true] %s57
      %s59 = sshll.u32 [#allocation4], 4
      %s60 = int_to_ptr.vmem [resolvable:$true] %s59
      %65 = dma.hbm_to_vmem [thread:$0]  %s58, 4096, %s60, [#allocation5], 128, 128, 8
    $region41: #{bert_base_forward.1} parent=1 // pred_fallthru
      _
    // Predicated region
    $region42: #{bert_base_forward.1} parent=1 // pred_check
      _
    $region43: #{bert_base_forward.1} parent=1 // pred_check_branch
      %67 = sbr.rel (0) target = $region45
    $region44: #{bert_base_forward.1} parent=1 // pred_region
      _
    $region45: #{bert_base_forward.1} parent=1 // pred_fallthru
      _
    // Predicated region
    $region46: #{bert_base_forward.1} parent=1 // pred_check
      _
    $region47: #{bert_base_forward.1} parent=1 // pred_check_branch
      %69 = sbr.rel (0) target = $region49
    $region48: #{bert_base_forward.1} parent=1 // pred_region
      %71 = vsyncadd [#allocation5], 0
      %s72 = sshll.u32 %s11, 4
      %s73 = int_to_ptr.hbm [resolvable:$true] %s72
      %s74 = sshll.u32 [#allocation6], 4
      %s75 = int_to_ptr.vmem [resolvable:$true] %s74
      %80 = dma.hbm_to_vmem [thread:$0]  %s73, 4096, %s75, [#allocation5], 64, 64, 4
    $region49: #{bert_base_forward.1} parent=1 // pred_fallthru
      _
    // Predicated region
    $region50: #{bert_base_forward.1} parent=1 // pred_check
      _
    $region51: #{bert_base_forward.1} parent=1 // pred_check_branch
      %82 = sbr.rel (0) target = $region53
    $region52: #{bert_base_forward.1} parent=1 // pred_region
      _
    $region53: #{bert_base_forward.1} parent=1 // pred_fallthru
      _
    // Predicated region
    $region54: #{bert_base_forward.1} parent=1 // pred_check
      _
    $region55: #{bert_base_forward.1} parent=1 // pred_check_branch
      %84 = sbr.rel (0) target = $region57
    $region56: #{bert_base_forward.1} parent=1 // pred_region
      _
    $region57: #{bert_base_forward.1} parent=1 // pred_fallthru
      _
    // Predicated region
    $region58: #{bert_base_forward.1} parent=1 // pred_check
      _
    $region59: #{bert_base_forward.1} parent=1 // pred_check_branch
      %86 = sbr.rel (0) target = $region61
    $region60: #{bert_base_forward.1} parent=1 // pred_region
      _
    $region61: #{bert_base_forward.1} parent=1 // pred_fallthru
      _
    // Predicated region
    $region62: #{bert_base_forward.1} parent=1 // pred_check
      _
    $region63: #{bert_base_forward.1} parent=1 // pred_check_branch
      %88 = sbr.rel (0) target = $region65
    $region64: #{bert_base_forward.1} parent=1 // pred_region
      _
    $region65: #{bert_base_forward.1} parent=1 // pred_fallthru
      _
    // Predicated region
    $region66: #{bert_base_forward.1} parent=1 // pred_check
      _
    $region67: #{bert_base_forward.1} parent=1 // pred_check_branch
      %90 = sbr.rel (0) target = $region69
    $region68: #{bert_base_forward.1} parent=1 // pred_region
      _
    $region69: #{bert_base_forward.1} parent=1 // pred_fallthru
      _
    // Predicated region
    $region70: #{bert_base_forward.1} parent=1 // pred_check
      _
    $region71: #{bert_base_forward.1} parent=1 // pred_check_branch
      %92 = sbr.rel (0) target = $region73
    $region72: #{bert_base_forward.1} parent=1 // pred_region
      %94 = dma.done [#allocation3], 6144
    $region73: #{bert_base_forward.1} parent=1 // pred_fallthru
      _
    // Predicated region
    $region74: #{bert_base_forward.1} parent=1 // pred_check
      _
    $region75: #{bert_base_forward.1} parent=1 // pred_check_branch
      %96 = sbr.rel (0) target = $region77
    $region76: #{bert_base_forward.1} parent=1 // pred_region
      %98 = dma.done [#allocation5], 4096
    $region77: #{bert_base_forward.1} parent=1 // pred_fallthru
      _
    // Predicated region
    $region78: #{bert_base_forward.1} parent=1 // pred_check
      _
    $region79: #{bert_base_forward.1} parent=1 // pred_check_branch
      %100 = sbr.rel (0) target = $region81
    $region80: #{bert_base_forward.1} parent=1 // pred_region
      %102 = dma.done [#allocation5], 4096
    $region81: #{bert_base_forward.1} parent=1 // pred_fallthru
      _
    %v104 = vld [vmem:[%s0] sm:$0xff]
    %v105 = vld [vmem:[%s0 + $0x8] sm:$0xff]
    %v106 = vld [vmem:[%s1] sm:$0x1]
    %v107 = vld [vmem:[%s2] sm:$0x1]
    %108 = vadd.xlane.f32.xlu0 %v104
    %v109 = vpop.xlane.xlu0 %108
    %110 = vadd.xlane.f32.xlu0 %v105
    %v111 = vpop.xlane.xlu0 %110
    %v112 = vrcp.pop 128.0
    %v113 = vmul.f32 128.0, %v112
    %v114 = vsub.f32 1.0, %v113
    %v115 = vmul.f32 %v112, %v114
    %v116 = vadd.f32 %v112, %v115
    %vm117 = vweird.f32 %v112
    %v118 = vsel %vm117, %v112, %v116
    %v119 = vmul.f32 %v109, %v118
    %v120 = vmul.f32 %v111, %v118
    %v121 = vsub.f32 %v104, %v119
    %v122 = vsub.f32 %v105, %v120
    %v123 = vmul.f32 %v121, %v121
    %v124 = vmul.f32 %v122, %v122
    %125 = vadd.xlane.f32.xlu0 %v123
    %v126 = vpop.xlane.xlu0 %125
    %127 = vadd.xlane.f32.xlu0 %v124
    %v128 = vpop.xlane.xlu0 %127
    %v129 = vmul.f32 %v126, %v118
    %v130 = vmul.f32 %v128, %v118
    %v131 = vadd.f32 %v129, 1e-12
    %v132 = vadd.f32 %v130, 1e-12
    %v133 = vrsqrt.pop %v131
    %v134 = vmul.f32 %v133, %v131
    %v135 = vmul.f32 %v134, %v133
    %v136 = vmul.f32 0.5, %v135
    %v137 = vsub.f32 1.5, %v136
    %v138 = vmul.f32 %v133, %v137
    %vm139 = vweird.f32 %v131
    %vm140 = vweird.f32 %v133
    %vm141 = vmor %vm139, %vm140
    %v142 = vsel %vm141, %v133, %v138
    %v143 = vrsqrt.pop %v132
    %v144 = vmul.f32 %v143, %v132
    %v145 = vmul.f32 %v144, %v143
    %v146 = vmul.f32 0.5, %v145
    %v147 = vsub.f32 1.5, %v146
    %v148 = vmul.f32 %v143, %v147
    %vm149 = vweird.f32 %v132
    %vm150 = vweird.f32 %v143
    %vm151 = vmor %vm149, %vm150
    %v152 = vsel %vm151, %v143, %v148
    %v153 = vmul.f32 %v121, %v142
    %v154 = vmul.f32 %v122, %v152
    %v156 = vperm.slane %v106, 0
    %v158 = vmul.f32 %v153, %v156
    %v159 = vmul.f32 %v154, %v156
    %v161 = vperm.slane %v107, 0
    %v163 = vadd.f32 %v158, %v161
    %v164 = vadd.f32 %v159, %v161
    %v165 = vld [vmem:[#allocation2] sm:$0xff]
    %v166 = vld [vmem:[#allocation2 + $0x8] sm:$0xf]
    %v167 = vld [vmem:[#allocation2 + $0xc] sm:$0xff]
    %v168 = vld [vmem:[#allocation2 + $0x14] sm:$0xf]
    %v169 = vld [vmem:[#allocation2 + $0x18] sm:$0xff]
    %v170 = vld [vmem:[#allocation2 + $0x20] sm:$0xf]
    %v171 = vld [vmem:[#allocation2 + $0x24] sm:$0xff]
    %v172 = vld [vmem:[#allocation2 + $0x2c] sm:$0xf]
    %v173 = vld [vmem:[#allocation2 + $0x30] sm:$0xff]
    %v174 = vld [vmem:[#allocation2 + $0x38] sm:$0xf]
    %v175 = vld [vmem:[#allocation2 + $0x3c] sm:$0xff]
    %v176 = vld [vmem:[#allocation2 + $0x44] sm:$0xf]
    %v177 = vld [vmem:[#allocation2 + $0x48] sm:$0xff]
    %v178 = vld [vmem:[#allocation2 + $0x50] sm:$0xf]
    %v179 = vld [vmem:[#allocation2 + $0x54] sm:$0xff]
    %v180 = vld [vmem:[#allocation2 + $0x5c] sm:$0xf]
    %v181 = vld [vmem:[#allocation2 + $0x60] sm:$0xff]
    %v182 = vld [vmem:[#allocation2 + $0x68] sm:$0xf]
    %v183 = vld [vmem:[#allocation2 + $0x6c] sm:$0xff]
    %v184 = vld [vmem:[#allocation2 + $0x74] sm:$0xf]
    %v185 = vld [vmem:[#allocation2 + $0x78] sm:$0xff]
    %v186 = vld [vmem:[#allocation2 + $0x80] sm:$0xf]
    %v187 = vld [vmem:[#allocation2 + $0x84] sm:$0xff]
    %v188 = vld [vmem:[#allocation2 + $0x8c] sm:$0xf]
    %v189 = vld [vmem:[#allocation2 + $0x90] sm:$0xff]
    %v190 = vld [vmem:[#allocation2 + $0x98] sm:$0xf]
    %v191 = vld [vmem:[#allocation2 + $0x9c] sm:$0xff]
    %v192 = vld [vmem:[#allocation2 + $0xa4] sm:$0xf]
    %v193 = vld [vmem:[#allocation2 + $0xa8] sm:$0xff]
    %v194 = vld [vmem:[#allocation2 + $0xb0] sm:$0xf]
    %v195 = vld [vmem:[#allocation2 + $0xb4] sm:$0xff]
    %v196 = vld [vmem:[#allocation2 + $0xbc] sm:$0xf]
    %v197 = vpack.c.bf16 %v164, %v163
    %v198 = vld [vmem:[%s4] sm:$0x7]
    %v200 = vperm.slane %v198, 0
    %v201 = vperm.slane %v198, 1
    %v202 = vperm.slane %v198, 2
    %v238 = vunpack.c.l.b16 %v165
    %v239 = vunpack.c.h.b16 %v165
    %v240 = vunpack.c.l.b16 %v166
    %v241 = vunpack.c.l.b16 %v167
    %v242 = vunpack.c.h.b16 %v167
    %v243 = vunpack.c.l.b16 %v168
    %v244 = vunpack.c.l.b16 %v169
    %v245 = vunpack.c.h.b16 %v169
    %v246 = vunpack.c.l.b16 %v170
    %v247 = vunpack.c.l.b16 %v171
    %v248 = vunpack.c.h.b16 %v171
    %v249 = vunpack.c.l.b16 %v172
    %v250 = vunpack.c.l.b16 %v173
    %v251 = vunpack.c.h.b16 %v173
    %v252 = vunpack.c.l.b16 %v174
    %v253 = vunpack.c.l.b16 %v175
    %v254 = vunpack.c.h.b16 %v175
    %v255 = vunpack.c.l.b16 %v176
    %v256 = vunpack.c.l.b16 %v177
    %v257 = vunpack.c.h.b16 %v177
    %v258 = vunpack.c.l.b16 %v178
    %v259 = vunpack.c.l.b16 %v179
    %v260 = vunpack.c.h.b16 %v179
    %v261 = vunpack.c.l.b16 %v180
    %v262 = vunpack.c.l.b16 %v181
    %v263 = vunpack.c.h.b16 %v181
    %v264 = vunpack.c.l.b16 %v182
    %v265 = vunpack.c.l.b16 %v183
    %v266 = vunpack.c.h.b16 %v183
    %v267 = vunpack.c.l.b16 %v184
    %v268 = vunpack.c.l.b16 %v185
    %v269 = vunpack.c.h.b16 %v185
    %v270 = vunpack.c.l.b16 %v186
    %v271 = vunpack.c.l.b16 %v187
    %v272 = vunpack.c.h.b16 %v187
    %v273 = vunpack.c.l.b16 %v188
    %v274 = vunpack.c.l.b16 %v189
    %v275 = vunpack.c.h.b16 %v189
    %v276 = vunpack.c.l.b16 %v190
    %v277 = vunpack.c.l.b16 %v191
    %v278 = vunpack.c.h.b16 %v191
    %v279 = vunpack.c.l.b16 %v192
    %v280 = vunpack.c.l.b16 %v193
    %v281 = vunpack.c.h.b16 %v193
    %v282 = vunpack.c.l.b16 %v194
    %v283 = vunpack.c.l.b16 %v195
    %v284 = vunpack.c.h.b16 %v195
    %v285 = vunpack.c.l.b16 %v196
    %v286 = vpack.c.b16 %v241, %v238
    %v287 = vpack.c.b16 %v242, %v239
    %v288 = vpack.c.b16 %v243, %v240
    %v289 = vpack.c.b16 %v247, %v244
    %v290 = vpack.c.b16 %v248, %v245
    %v291 = vpack.c.b16 %v249, %v246
    %v292 = vpack.c.b16 %v253, %v250
    %v293 = vpack.c.b16 %v254, %v251
    %v294 = vpack.c.b16 %v255, %v252
    %v295 = vpack.c.b16 %v259, %v256
    %v296 = vpack.c.b16 %v260, %v257
    %v297 = vpack.c.b16 %v261, %v258
    %v298 = vpack.c.b16 %v265, %v262
    %v299 = vpack.c.b16 %v266, %v263
    %v300 = vpack.c.b16 %v267, %v264
    %v301 = vpack.c.b16 %v271, %v268
    %v302 = vpack.c.b16 %v272, %v269
    %v303 = vpack.c.b16 %v273, %v270
    %v304 = vpack.c.b16 %v277, %v274
    %v305 = vpack.c.b16 %v278, %v275
    %v306 = vpack.c.b16 %v279, %v276
    %v307 = vpack.c.b16 %v283, %v280
    %v308 = vpack.c.b16 %v284, %v281
    %v309 = vpack.c.b16 %v285, %v282
    %334 = vmatpush.bf16.msra.mxu0 %v307
    %335 = vmatpush.bf16.msra.mxu0 %v304
    %336 = vmatpush.bf16.msra.mxu0 %v301
    %337 = vmatpush.bf16.msra.mxu0 %v298
    %338 = vmatpush.bf16.msra.mxu0 %v295
    %339 = vmatpush.bf16.msra.mxu0 %v292
    %340 = vmatpush.bf16.msra.mxu0 %v289
    %341 = vmatpush.bf16.msra.mxu0 %v286
    %342 = vmatmul.bf16.gmra.mxu0 %v197
    %v343 = vpop.f32.mrf.mxu0
    %v344 = vadd.f32 %v200, %v343
    %v345 = vpop.f32.mrf.mxu0
    %v346 = vadd.f32 %v200, %v345
    %347 = vdwg.mxu0
    %348 = vmatpush.bf16.msra.mxu0 %v308
    %349 = vmatpush.bf16.msra.mxu0 %v305
    %350 = vmatpush.bf16.msra.mxu0 %v302
    %351 = vmatpush.bf16.msra.mxu0 %v299
    %352 = vmatpush.bf16.msra.mxu0 %v296
    %353 = vmatpush.bf16.msra.mxu0 %v293
    %354 = vmatpush.bf16.msra.mxu0 %v290
    %355 = vmatpush.bf16.msra.mxu0 %v287
    %356 = vmatmul.bf16.gmra.mxu0 %v197
    %v357 = vpop.f32.mrf.mxu0
    %v358 = vadd.f32 %v201, %v357
    %v359 = vpop.f32.mrf.mxu0
    %v360 = vadd.f32 %v201, %v359
    %361 = vdwg.mxu0
    %362 = vmatpush.bf16.msra.mxu0 %v309
    %363 = vmatpush.bf16.msra.mxu0 %v306
    %364 = vmatpush.bf16.msra.mxu0 %v303
    %365 = vmatpush.bf16.msra.mxu0 %v300
    %366 = vmatpush.bf16.msra.mxu0 %v297
    %367 = vmatpush.bf16.msra.mxu0 %v294
    %368 = vmatpush.bf16.msra.mxu0 %v291
    %369 = vmatpush.bf16.msra.mxu0 %v288
    %370 = vmatmul.bf16.gmra.mxu0 %v197
    %v371 = vpop.f32.mrf.mxu0
    %v372 = vadd.f32 %v202, %v371
    %v373 = vpop.f32.mrf.mxu0
    %v374 = vadd.f32 %v202, %v373
    %375 = vdwg.mxu0
    %v376 = vpack.c.bf16 %v358, %v344
    %v377 = vpack.c.bf16 %v372, %v372
    %v378 = vpack.c.bf16 %v360, %v346
    %v379 = vpack.c.bf16 %v374, %v374
    %v382 = vrot.slane %v376, 4
    %v383 = vrot.slane %v378, 4
    %vm384 = vcmask 261120
    %v386 = vsel %vm384, %v376, 0
    %v389 = vsel %vm384, %v382, 0
    %391 = vmatpush.bf16.xpose.msra.mxu0 0
    %392 = vmatpush.bf16.xpose.msra.mxu0 0
    %393 = vmatpush.bf16.xpose.msra.mxu0 0
    %394 = vmatpush.bf16.xpose.msra.mxu0 0
    %395 = vmatpush.bf16.xpose.msra.mxu0 0
    %396 = vmatpush.bf16.xpose.msra.mxu0 0
    %397 = vmatpush.bf16.xpose.msra.mxu0 0
    %398 = vmatpush.bf16.xpose.msra.mxu0 %v389
    %399 = vmatmul.bf16.gmra.mxu0 %v386
    %v400 = vpop.f32.mrf.mxu0
    %v401 = vadd.f32 0.0, %v400
    %v402 = vpop.f32.mrf.mxu0
    %403 = vdwg.mxu0
    %v405 = vsel %vm384, %v378, 0
    %v408 = vsel %vm384, %v383, 0
    %410 = vmatpush.bf16.xpose.msra.mxu0 0
    %411 = vmatpush.bf16.xpose.msra.mxu0 0
    %412 = vmatpush.bf16.xpose.msra.mxu0 0
    %413 = vmatpush.bf16.xpose.msra.mxu0 0
    %414 = vmatpush.bf16.xpose.msra.mxu0 0
    %415 = vmatpush.bf16.xpose.msra.mxu0 0
    %416 = vmatpush.bf16.xpose.msra.mxu0 0
    %417 = vmatpush.bf16.xpose.msra.mxu0 %v408
    %418 = vmatmul.bf16.gmra.mxu0 %v405
    %v419 = vpop.f32.mrf.mxu0
    %v420 = vadd.f32 0.0, %v419
    %v421 = vpop.f32.mrf.mxu0
    %422 = vdwg.mxu0
    %vm423 = vcmask 64512
    %v424 = vsel %vm423, %v401, -inf
    %425 = vmax.xlane.f32.xlu0 %v424
    %v426 = vpop.xlane.xlu0 %425
    %v427 = vsel %vm423, %v420, -inf
    %428 = vmax.xlane.f32.xlu0 %v427
    %v429 = vpop.xlane.xlu0 %428
    %v430 = vsub.f32 %v401, %v426
    %v431 = vsub.f32 %v420, %v429
    %v432 = vmul.f32 %v430, 1.442695
    %v433 = vpow.pop %v432
    %v434 = vmul.f32 %v431, 1.442695
    %v435 = vpow.pop %v434
    %v436 = vsel %vm423, %v433, 0.0
    %437 = vadd.xlane.f32.xlu0 %v436
    %v438 = vpop.xlane.xlu0 %437
    %v439 = vsel %vm423, %v435, 0.0
    %440 = vadd.xlane.f32.xlu0 %v439
    %v441 = vpop.xlane.xlu0 %440
    %v442 = vrcp.pop %v438
    %v443 = vrcp.pop %v441
    %v444 = vmul.f32 %v433, %v442
    %v445 = vmul.f32 %v435, %v443
    %v446 = vpack.c.bf16 %v444, %v444
    %v447 = vpack.c.bf16 %v445, %v445
    %v449 = vsel %vm423, %v446, 0
    %vm451 = vcmask 1043456
    %v453 = vsel %vm451, %v377, 0
    %455 = vmatpush.bf16.msra.mxu0 0
    %456 = vmatpush.bf16.msra.mxu0 0
    %457 = vmatpush.bf16.msra.mxu0 0
    %458 = vmatpush.bf16.msra.mxu0 0
    %459 = vmatpush.bf16.msra.mxu0 0
    %460 = vmatpush.bf16.msra.mxu0 0
    %461 = vmatpush.bf16.msra.mxu0 0
    %462 = vmatpush.bf16.msra.mxu0 %v453
    %463 = vmatmul.bf16.gmra.mxu0 %v449
    %v464 = vpop.f32.mrf.mxu0
    %v465 = vadd.f32 0.0, %v464
    %v466 = vpop.f32.mrf.mxu0
    %467 = vdwg.mxu0
    %v469 = vsel %vm423, %v447, 0
    %v472 = vsel %vm451, %v379, 0
    %474 = vmatpush.bf16.msra.mxu0 0
    %475 = vmatpush.bf16.msra.mxu0 0
    %476 = vmatpush.bf16.msra.mxu0 0
    %477 = vmatpush.bf16.msra.mxu0 0
    %478 = vmatpush.bf16.msra.mxu0 0
    %479 = vmatpush.bf16.msra.mxu0 0
    %480 = vmatpush.bf16.msra.mxu0 0
    %481 = vmatpush.bf16.msra.mxu0 %v472
    %482 = vmatmul.bf16.gmra.mxu0 %v469
    %v483 = vpop.f32.mrf.mxu0
    %v484 = vadd.f32 0.0, %v483
    %v485 = vpop.f32.mrf.mxu0
    %486 = vdwg.mxu0
    %v487 = vunpack.c.l.b16 %v376
    %v488 = vpack.c.b16 %v487, %v487
    %489 = vrot.lane.b32.xlu0 %v488, 96
    %v490 = vpop.permute.xlu0 %489
    %v491 = vunpack.c.l.b16 %v382
    %v492 = vpack.c.b16 %v491, %v491
    %493 = vrot.lane.b32.xlu0 %v492, 96
    %v494 = vpop.permute.xlu0 %493
    %v496 = vsel %vm384, %v490, 0
    %v499 = vsel %vm384, %v494, 0
    %501 = vmatpush.bf16.xpose.msra.mxu0 0
    %502 = vmatpush.bf16.xpose.msra.mxu0 0
    %503 = vmatpush.bf16.xpose.msra.mxu0 0
    %504 = vmatpush.bf16.xpose.msra.mxu0 0
    %505 = vmatpush.bf16.xpose.msra.mxu0 0
    %506 = vmatpush.bf16.xpose.msra.mxu0 0
    %507 = vmatpush.bf16.xpose.msra.mxu0 0
    %508 = vmatpush.bf16.xpose.msra.mxu0 %v499
    %509 = vmatmul.bf16.gmra.mxu0 %v496
    %v510 = vpop.f32.mrf.mxu0
    %v511 = vadd.f32 0.0, %v510
    %v512 = vpop.f32.mrf.mxu0
    %513 = vdwg.mxu0
    %v514 = vunpack.c.l.b16 %v378
    %v515 = vpack.c.b16 %v514, %v514
    %516 = vrot.lane.b32.xlu0 %v515, 96
    %v517 = vpop.permute.xlu0 %516
    %v518 = vunpack.c.l.b16 %v383
    %v519 = vpack.c.b16 %v518, %v518
    %520 = vrot.lane.b32.xlu0 %v519, 96
    %v521 = vpop.permute.xlu0 %520
    %v523 = vsel %vm384, %v517, 0
    %v526 = vsel %vm384, %v521, 0
    %528 = vmatpush.bf16.xpose.msra.mxu0 0
    %529 = vmatpush.bf16.xpose.msra.mxu0 0
    %530 = vmatpush.bf16.xpose.msra.mxu0 0
    %531 = vmatpush.bf16.xpose.msra.mxu0 0
    %532 = vmatpush.bf16.xpose.msra.mxu0 0
    %533 = vmatpush.bf16.xpose.msra.mxu0 0
    %534 = vmatpush.bf16.xpose.msra.mxu0 0
    %535 = vmatpush.bf16.xpose.msra.mxu0 %v526
    %536 = vmatmul.bf16.gmra.mxu0 %v523
    %v537 = vpop.f32.mrf.mxu0
    %v538 = vadd.f32 0.0, %v537
    %v539 = vpop.f32.mrf.mxu0
    %540 = vdwg.mxu0
    %v541 = vsel %vm423, %v511, -inf
    %542 = vmax.xlane.f32.xlu0 %v541
    %v543 = vpop.xlane.xlu0 %542
    %v544 = vsel %vm423, %v538, -inf
    %545 = vmax.xlane.f32.xlu0 %v544
    %v546 = vpop.xlane.xlu0 %545
    %v547 = vsub.f32 %v511, %v543
    %v548 = vsub.f32 %v538, %v546
    %v549 = vmul.f32 %v547, 1.442695
    %v550 = vpow.pop %v549
    %v551 = vmul.f32 %v548, 1.442695
    %v552 = vpow.pop %v551
    %v553 = vsel %vm423, %v550, 0.0
    %554 = vadd.xlane.f32.xlu0 %v553
    %v555 = vpop.xlane.xlu0 %554
    %v556 = vsel %vm423, %v552, 0.0
    %557 = vadd.xlane.f32.xlu0 %v556
    %v558 = vpop.xlane.xlu0 %557
    %v559 = vrcp.pop %v555
    %v560 = vrcp.pop %v558
    %v561 = vmul.f32 %v550, %v559
    %v562 = vmul.f32 %v552, %v560
    %v563 = vpack.c.bf16 %v561, %v561
    %v564 = vpack.c.bf16 %v562, %v562
    %v566 = vunpack.c.l.b16 %v377
    %v567 = vpack.c.b16 %v566, %v566
    %568 = vrot.lane.b32.xlu0 %v567, 96
    %v569 = vpop.permute.xlu0 %568
    %v571 = vsel %vm423, %v563, 0
    %v574 = vsel %vm451, %v569, 0
    %576 = vmatpush.bf16.msra.mxu0 0
    %577 = vmatpush.bf16.msra.mxu0 0
    %578 = vmatpush.bf16.msra.mxu0 0
    %579 = vmatpush.bf16.msra.mxu0 0
    %580 = vmatpush.bf16.msra.mxu0 0
    %581 = vmatpush.bf16.msra.mxu0 0
    %582 = vmatpush.bf16.msra.mxu0 0
    %583 = vmatpush.bf16.msra.mxu0 %v574
    %584 = vmatmul.bf16.gmra.mxu0 %v571
    %v585 = vpop.f32.mrf.mxu0
    %v586 = vadd.f32 0.0, %v585
    %v587 = vpop.f32.mrf.mxu0
    %588 = vdwg.mxu0
    %v590 = vunpack.c.l.b16 %v379
    %v591 = vpack.c.b16 %v590, %v590
    %592 = vrot.lane.b32.xlu0 %v591, 96
    %v593 = vpop.permute.xlu0 %592
    %v595 = vsel %vm423, %v564, 0
    %v598 = vsel %vm451, %v593, 0
    %600 = vmatpush.bf16.msra.mxu0 0
    %601 = vmatpush.bf16.msra.mxu0 0
    %602 = vmatpush.bf16.msra.mxu0 0
    %603 = vmatpush.bf16.msra.mxu0 0
    %604 = vmatpush.bf16.msra.mxu0 0
    %605 = vmatpush.bf16.msra.mxu0 0
    %606 = vmatpush.bf16.msra.mxu0 0
    %607 = vmatpush.bf16.msra.mxu0 %v598
    %608 = vmatmul.bf16.gmra.mxu0 %v595
    %v609 = vpop.f32.mrf.mxu0
    %v610 = vadd.f32 0.0, %v609
    %v611 = vpop.f32.mrf.mxu0
    %612 = vdwg.mxu0
    %613 = vrot.lane.b32.xlu0 %v488, 64
    %v614 = vpop.permute.xlu0 %613
    %615 = vrot.lane.b32.xlu0 %v492, 64
    %v616 = vpop.permute.xlu0 %615
    %v618 = vsel %vm384, %v614, 0
    %v621 = vsel %vm384, %v616, 0
    %623 = vmatpush.bf16.xpose.msra.mxu0 0
    %624 = vmatpush.bf16.xpose.msra.mxu0 0
    %625 = vmatpush.bf16.xpose.msra.mxu0 0
    %626 = vmatpush.bf16.xpose.msra.mxu0 0
    %627 = vmatpush.bf16.xpose.msra.mxu0 0
    %628 = vmatpush.bf16.xpose.msra.mxu0 0
    %629 = vmatpush.bf16.xpose.msra.mxu0 0
    %630 = vmatpush.bf16.xpose.msra.mxu0 %v621
    %631 = vmatmul.bf16.gmra.mxu0 %v618
    %v632 = vpop.f32.mrf.mxu0
    %v633 = vadd.f32 0.0, %v632
    %v634 = vpop.f32.mrf.mxu0
    %635 = vdwg.mxu0
    %636 = vrot.lane.b32.xlu0 %v515, 64
    %v637 = vpop.permute.xlu0 %636
    %638 = vrot.lane.b32.xlu0 %v519, 64
    %v639 = vpop.permute.xlu0 %638
    %v641 = vsel %vm384, %v637, 0
    %v644 = vsel %vm384, %v639, 0
    %646 = vmatpush.bf16.xpose.msra.mxu0 0
    %647 = vmatpush.bf16.xpose.msra.mxu0 0
    %648 = vmatpush.bf16.xpose.msra.mxu0 0
    %649 = vmatpush.bf16.xpose.msra.mxu0 0
    %650 = vmatpush.bf16.xpose.msra.mxu0 0
    %651 = vmatpush.bf16.xpose.msra.mxu0 0
    %652 = vmatpush.bf16.xpose.msra.mxu0 0
    %653 = vmatpush.bf16.xpose.msra.mxu0 %v644
    %654 = vmatmul.bf16.gmra.mxu0 %v641
    %v655 = vpop.f32.mrf.mxu0
    %v656 = vadd.f32 0.0, %v655
    %v657 = vpop.f32.mrf.mxu0
    %658 = vdwg.mxu0
    %v659 = vsel %vm423, %v633, -inf
    %660 = vmax.xlane.f32.xlu0 %v659
    %v661 = vpop.xlane.xlu0 %660
    %v662 = vsel %vm423, %v656, -inf
    %663 = vmax.xlane.f32.xlu0 %v662
    %v664 = vpop.xlane.xlu0 %663
    %v665 = vsub.f32 %v633, %v661
    %v666 = vsub.f32 %v656, %v664
    %v667 = vmul.f32 %v665, 1.442695
    %v668 = vpow.pop %v667
    %v669 = vmul.f32 %v666, 1.442695
    %v670 = vpow.pop %v669
    %v671 = vsel %vm423, %v668, 0.0
    %672 = vadd.xlane.f32.xlu0 %v671
    %v673 = vpop.xlane.xlu0 %672
    %v674 = vsel %vm423, %v670, 0.0
    %675 = vadd.xlane.f32.xlu0 %v674
    %v676 = vpop.xlane.xlu0 %675
    %v677 = vrcp.pop %v673
    %v678 = vrcp.pop %v676
    %v679 = vmul.f32 %v668, %v677
    %v680 = vmul.f32 %v670, %v678
    %v681 = vpack.c.bf16 %v679, %v679
    %v682 = vpack.c.bf16 %v680, %v680
    %683 = vrot.lane.b32.xlu0 %v567, 64
    %v684 = vpop.permute.xlu0 %683
    %v686 = vsel %vm423, %v681, 0
    %v689 = vsel %vm451, %v684, 0
    %691 = vmatpush.bf16.msra.mxu0 0
    %692 = vmatpush.bf16.msra.mxu0 0
    %693 = vmatpush.bf16.msra.mxu0 0
    %694 = vmatpush.bf16.msra.mxu0 0
    %695 = vmatpush.bf16.msra.mxu0 0
    %696 = vmatpush.bf16.msra.mxu0 0
    %697 = vmatpush.bf16.msra.mxu0 0
    %698 = vmatpush.bf16.msra.mxu0 %v689
    %699 = vmatmul.bf16.gmra.mxu0 %v686
    %v700 = vpop.f32.mrf.mxu0
    %v701 = vadd.f32 0.0, %v700
    %v702 = vpop.f32.mrf.mxu0
    %703 = vdwg.mxu0
    %704 = vrot.lane.b32.xlu0 %v591, 64
    %v705 = vpop.permute.xlu0 %704
    %v707 = vsel %vm423, %v682, 0
    %v710 = vsel %vm451, %v705, 0
    %712 = vmatpush.bf16.msra.mxu0 0
    %713 = vmatpush.bf16.msra.mxu0 0
    %714 = vmatpush.bf16.msra.mxu0 0
    %715 = vmatpush.bf16.msra.mxu0 0
    %716 = vmatpush.bf16.msra.mxu0 0
    %717 = vmatpush.bf16.msra.mxu0 0
    %718 = vmatpush.bf16.msra.mxu0 0
    %719 = vmatpush.bf16.msra.mxu0 %v710
    %720 = vmatmul.bf16.gmra.mxu0 %v707
    %v721 = vpop.f32.mrf.mxu0
    %v722 = vadd.f32 0.0, %v721
    %v723 = vpop.f32.mrf.mxu0
    %724 = vdwg.mxu0
    %725 = vrot.lane.b32.xlu0 %v488, 32
    %v726 = vpop.permute.xlu0 %725
    %727 = vrot.lane.b32.xlu0 %v492, 32
    %v728 = vpop.permute.xlu0 %727
    %v730 = vsel %vm384, %v726, 0
    %v733 = vsel %vm384, %v728, 0
    %735 = vmatpush.bf16.xpose.msra.mxu0 0
    %736 = vmatpush.bf16.xpose.msra.mxu0 0
    %737 = vmatpush.bf16.xpose.msra.mxu0 0
    %738 = vmatpush.bf16.xpose.msra.mxu0 0
    %739 = vmatpush.bf16.xpose.msra.mxu0 0
    %740 = vmatpush.bf16.xpose.msra.mxu0 0
    %741 = vmatpush.bf16.xpose.msra.mxu0 0
    %742 = vmatpush.bf16.xpose.msra.mxu0 %v733
    %743 = vmatmul.bf16.gmra.mxu0 %v730
    %v744 = vpop.f32.mrf.mxu0
    %v745 = vadd.f32 0.0, %v744
    %v746 = vpop.f32.mrf.mxu0
    %747 = vdwg.mxu0
    %748 = vrot.lane.b32.xlu0 %v515, 32
    %v749 = vpop.permute.xlu0 %748
    %750 = vrot.lane.b32.xlu0 %v519, 32
    %v751 = vpop.permute.xlu0 %750
    %v753 = vsel %vm384, %v749, 0
    %v756 = vsel %vm384, %v751, 0
    %758 = vmatpush.bf16.xpose.msra.mxu0 0
    %759 = vmatpush.bf16.xpose.msra.mxu0 0
    %760 = vmatpush.bf16.xpose.msra.mxu0 0
    %761 = vmatpush.bf16.xpose.msra.mxu0 0
    %762 = vmatpush.bf16.xpose.msra.mxu0 0
    %763 = vmatpush.bf16.xpose.msra.mxu0 0
    %764 = vmatpush.bf16.xpose.msra.mxu0 0
    %765 = vmatpush.bf16.xpose.msra.mxu0 %v756
    %766 = vmatmul.bf16.gmra.mxu0 %v753
    %v767 = vpop.f32.mrf.mxu0
    %v768 = vadd.f32 0.0, %v767
    %v769 = vpop.f32.mrf.mxu0
    %770 = vdwg.mxu0
    %v771 = vsel %vm423, %v745, -inf
    %772 = vmax.xlane.f32.xlu0 %v771
    %v773 = vpop.xlane.xlu0 %772
    %v774 = vsel %vm423, %v768, -inf
    %775 = vmax.xlane.f32.xlu0 %v774
    %v776 = vpop.xlane.xlu0 %775
    %v777 = vsub.f32 %v745, %v773
    %v778 = vsub.f32 %v768, %v776
    %v779 = vmul.f32 %v777, 1.442695
    %v780 = vpow.pop %v779
    %v781 = vmul.f32 %v778, 1.442695
    %v782 = vpow.pop %v781
    %v783 = vsel %vm423, %v780, 0.0
    %784 = vadd.xlane.f32.xlu0 %v783
    %v785 = vpop.xlane.xlu0 %784
    %v786 = vsel %vm423, %v782, 0.0
    %787 = vadd.xlane.f32.xlu0 %v786
    %v788 = vpop.xlane.xlu0 %787
    %v789 = vrcp.pop %v785
    %v790 = vrcp.pop %v788
    %v791 = vmul.f32 %v780, %v789
    %v792 = vmul.f32 %v782, %v790
    %v793 = vpack.c.bf16 %v791, %v791
    %v794 = vpack.c.bf16 %v792, %v792
    %795 = vrot.lane.b32.xlu0 %v567, 32
    %v796 = vpop.permute.xlu0 %795
    %v798 = vsel %vm423, %v793, 0
    %v801 = vsel %vm451, %v796, 0
    %803 = vmatpush.bf16.msra.mxu0 0
    %804 = vmatpush.bf16.msra.mxu0 0
    %805 = vmatpush.bf16.msra.mxu0 0
    %806 = vmatpush.bf16.msra.mxu0 0
    %807 = vmatpush.bf16.msra.mxu0 0
    %808 = vmatpush.bf16.msra.mxu0 0
    %809 = vmatpush.bf16.msra.mxu0 0
    %810 = vmatpush.bf16.msra.mxu0 %v801
    %811 = vmatmul.bf16.gmra.mxu0 %v798
    %v812 = vpop.f32.mrf.mxu0
    %v813 = vadd.f32 0.0, %v812
    %v814 = vpop.f32.mrf.mxu0
    %815 = vdwg.mxu0
    %816 = vrot.lane.b32.xlu0 %v591, 32
    %v817 = vpop.permute.xlu0 %816
    %v819 = vsel %vm423, %v794, 0
    %v822 = vsel %vm451, %v817, 0
    %824 = vmatpush.bf16.msra.mxu0 0
    %825 = vmatpush.bf16.msra.mxu0 0
    %826 = vmatpush.bf16.msra.mxu0 0
    %827 = vmatpush.bf16.msra.mxu0 0
    %828 = vmatpush.bf16.msra.mxu0 0
    %829 = vmatpush.bf16.msra.mxu0 0
    %830 = vmatpush.bf16.msra.mxu0 0
    %831 = vmatpush.bf16.msra.mxu0 %v822
    %832 = vmatmul.bf16.gmra.mxu0 %v819
    %v833 = vpop.f32.mrf.mxu0
    %v834 = vadd.f32 0.0, %v833
    %v835 = vpop.f32.mrf.mxu0
    %836 = vdwg.mxu0
    %839 = vrot.lane.b32.xlu0 %v586, 32
    %v840 = vpop.permute.xlu0 %839
    %841 = vrot.lane.b32.xlu0 %v610, 32
    %v842 = vpop.permute.xlu0 %841
    %847 = vrot.lane.b32.xlu0 %v701, 64
    %v848 = vpop.permute.xlu0 %847
    %849 = vrot.lane.b32.xlu0 %v722, 64
    %v850 = vpop.permute.xlu0 %849
    %855 = vrot.lane.b32.xlu0 %v813, 96
    %v856 = vpop.permute.xlu0 %855
    %857 = vrot.lane.b32.xlu0 %v834, 96
    %v858 = vpop.permute.xlu0 %857
    %v861 = vsel %vm384, %v465, %v840
    %v862 = vsel %vm384, %v484, %v842
    %vm863 = vcmask 523264
    %v864 = vsel %vm863, %v861, %v848
    %v865 = vsel %vm863, %v862, %v850
    %vm866 = vcmask 785408
    %v867 = vsel %vm866, %v864, %v856
    %v868 = vsel %vm866, %v865, %v858
    %v869 = vld [vmem:[%s5] sm:$0xf]
    %v870 = vld [vmem:[%s5 + $0x4] sm:$0xf]
    %v871 = vld [vmem:[%s5 + $0x8] sm:$0xf]
    %v872 = vld [vmem:[%s5 + $0xc] sm:$0xf]
    %v873 = vld [vmem:[%s5 + $0x10] sm:$0xf]
    %v874 = vld [vmem:[%s5 + $0x14] sm:$0xf]
    %v875 = vld [vmem:[%s5 + $0x18] sm:$0xf]
    %v876 = vld [vmem:[%s5 + $0x1c] sm:$0xf]
    %v877 = vld [vmem:[%s5 + $0x20] sm:$0xf]
    %v878 = vld [vmem:[%s5 + $0x24] sm:$0xf]
    %v879 = vld [vmem:[%s5 + $0x28] sm:$0xf]
    %v880 = vld [vmem:[%s5 + $0x2c] sm:$0xf]
    %v881 = vld [vmem:[%s5 + $0x30] sm:$0xf]
    %v882 = vld [vmem:[%s5 + $0x34] sm:$0xf]
    %v883 = vld [vmem:[%s5 + $0x38] sm:$0xf]
    %v884 = vld [vmem:[%s5 + $0x3c] sm:$0xf]
    %v885 = vpack.c.bf16 %v868, %v867
    %v886 = vld [vmem:[%s6] sm:$0x1]
    %v888 = vperm.slane %v886, 0
    %v906 = vunpack.c.l.b16 %v869
    %v907 = vunpack.c.l.b16 %v870
    %v908 = vunpack.c.l.b16 %v871
    %v909 = vunpack.c.l.b16 %v872
    %v910 = vunpack.c.l.b16 %v873
    %v911 = vunpack.c.l.b16 %v874
    %v912 = vunpack.c.l.b16 %v875
    %v913 = vunpack.c.l.b16 %v876
    %v914 = vunpack.c.l.b16 %v877
    %v915 = vunpack.c.l.b16 %v878
    %v916 = vunpack.c.l.b16 %v879
    %v917 = vunpack.c.l.b16 %v880
    %v918 = vunpack.c.l.b16 %v881
    %v919 = vunpack.c.l.b16 %v882
    %v920 = vunpack.c.l.b16 %v883
    %v921 = vunpack.c.l.b16 %v884
    %v922 = vpack.c.b16 %v907, %v906
    %v923 = vpack.c.b16 %v909, %v908
    %v924 = vpack.c.b16 %v911, %v910
    %v925 = vpack.c.b16 %v913, %v912
    %v926 = vpack.c.b16 %v915, %v914
    %v927 = vpack.c.b16 %v917, %v916
    %v928 = vpack.c.b16 %v919, %v918
    %v929 = vpack.c.b16 %v921, %v920
    %938 = vmatpush.bf16.msra.mxu0 %v929
    %939 = vmatpush.bf16.msra.mxu0 %v928
    %940 = vmatpush.bf16.msra.mxu0 %v927
    %941 = vmatpush.bf16.msra.mxu0 %v926
    %942 = vmatpush.bf16.msra.mxu0 %v925
    %943 = vmatpush.bf16.msra.mxu0 %v924
    %944 = vmatpush.bf16.msra.mxu0 %v923
    %945 = vmatpush.bf16.msra.mxu0 %v922
    %946 = vmatmul.bf16.gmra.mxu0 %v885
    %v947 = vpop.f32.mrf.mxu0
    %v948 = vadd.f32 %v888, %v947
    %v949 = vpop.f32.mrf.mxu0
    %v950 = vadd.f32 %v888, %v949
    %951 = vdwg.mxu0
    %v952 = vadd.f32 %v948, %v163
    %v953 = vadd.f32 %v950, %v164
    %v954 = vld [vmem:[%s7] sm:$0x1]
    %v955 = vld [vmem:[%s8] sm:$0x1]
    %956 = vadd.xlane.f32.xlu0 %v952
    %v957 = vpop.xlane.xlu0 %956
    %958 = vadd.xlane.f32.xlu0 %v953
    %v959 = vpop.xlane.xlu0 %958
    %v960 = vmul.f32 %v957, %v118
    %v961 = vmul.f32 %v959, %v118
    %v962 = vsub.f32 %v952, %v960
    %v963 = vsub.f32 %v953, %v961
    %v964 = vmul.f32 %v962, %v962
    %v965 = vmul.f32 %v963, %v963
    %966 = vadd.xlane.f32.xlu0 %v964
    %v967 = vpop.xlane.xlu0 %966
    %968 = vadd.xlane.f32.xlu0 %v965
    %v969 = vpop.xlane.xlu0 %968
    %v970 = vmul.f32 %v967, %v118
    %v971 = vmul.f32 %v969, %v118
    %v972 = vadd.f32 %v970, 1e-12
    %v973 = vadd.f32 %v971, 1e-12
    %v974 = vrsqrt.pop %v972
    %v975 = vmul.f32 %v974, %v972
    %v976 = vmul.f32 %v975, %v974
    %v977 = vmul.f32 0.5, %v976
    %v978 = vsub.f32 1.5, %v977
    %v979 = vmul.f32 %v974, %v978
    %vm980 = vweird.f32 %v972
    %vm981 = vweird.f32 %v974
    %vm982 = vmor %vm980, %vm981
    %v983 = vsel %vm982, %v974, %v979
    %v984 = vrsqrt.pop %v973
    %v985 = vmul.f32 %v984, %v973
    %v986 = vmul.f32 %v985, %v984
    %v987 = vmul.f32 0.5, %v986
    %v988 = vsub.f32 1.5, %v987
    %v989 = vmul.f32 %v984, %v988
    %vm990 = vweird.f32 %v973
    %vm991 = vweird.f32 %v984
    %vm992 = vmor %vm990, %vm991
    %v993 = vsel %vm992, %v984, %v989
    %v994 = vmul.f32 %v962, %v983
    %v995 = vmul.f32 %v963, %v993
    %v997 = vperm.slane %v954, 0
    %v999 = vmul.f32 %v994, %v997
    %v1000 = vmul.f32 %v995, %v997
    %v1002 = vperm.slane %v955, 0
    %v1004 = vadd.f32 %v999, %v1002
    %v1005 = vadd.f32 %v1000, %v1002
    %v1006 = vld [vmem:[#allocation4] sm:$0xff]
    %v1007 = vld [vmem:[#allocation4 + $0x8] sm:$0xff]
    %v1008 = vld [vmem:[#allocation4 + $0x10] sm:$0xff]
    %v1009 = vld [vmem:[#allocation4 + $0x18] sm:$0xff]
    %v1010 = vld [vmem:[#allocation4 + $0x20] sm:$0xff]
    %v1011 = vld [vmem:[#allocation4 + $0x28] sm:$0xff]
    %v1012 = vld [vmem:[#allocation4 + $0x30] sm:$0xff]
    %v1013 = vld [vmem:[#allocation4 + $0x38] sm:$0xff]
    %v1014 = vld [vmem:[#allocation4 + $0x40] sm:$0xff]
    %v1015 = vld [vmem:[#allocation4 + $0x48] sm:$0xff]
    %v1016 = vld [vmem:[#allocation4 + $0x50] sm:$0xff]
    %v1017 = vld [vmem:[#allocation4 + $0x58] sm:$0xff]
    %v1018 = vld [vmem:[#allocation4 + $0x60] sm:$0xff]
    %v1019 = vld [vmem:[#allocation4 + $0x68] sm:$0xff]
    %v1020 = vld [vmem:[#allocation4 + $0x70] sm:$0xff]
    %v1021 = vld [vmem:[#allocation4 + $0x78] sm:$0xff]
    %v1022 = vpack.c.bf16 %v1005, %v1004
    %v1023 = vld [vmem:[%s10] sm:$0x3]
    %v1025 = vperm.slane %v1023, 0
    %v1026 = vperm.slane %v1023, 1
    %v1045 = vunpack.c.l.b16 %v1006
    %v1046 = vunpack.c.h.b16 %v1006
    %v1047 = vunpack.c.l.b16 %v1007
    %v1048 = vunpack.c.h.b16 %v1007
    %v1049 = vunpack.c.l.b16 %v1008
    %v1050 = vunpack.c.h.b16 %v1008
    %v1051 = vunpack.c.l.b16 %v1009
    %v1052 = vunpack.c.h.b16 %v1009
    %v1053 = vunpack.c.l.b16 %v1010
    %v1054 = vunpack.c.h.b16 %v1010
    %v1055 = vunpack.c.l.b16 %v1011
    %v1056 = vunpack.c.h.b16 %v1011
    %v1057 = vunpack.c.l.b16 %v1012
    %v1058 = vunpack.c.h.b16 %v1012
    %v1059 = vunpack.c.l.b16 %v1013
    %v1060 = vunpack.c.h.b16 %v1013
    %v1061 = vunpack.c.l.b16 %v1014
    %v1062 = vunpack.c.h.b16 %v1014
    %v1063 = vunpack.c.l.b16 %v1015
    %v1064 = vunpack.c.h.b16 %v1015
    %v1065 = vunpack.c.l.b16 %v1016
    %v1066 = vunpack.c.h.b16 %v1016
    %v1067 = vunpack.c.l.b16 %v1017
    %v1068 = vunpack.c.h.b16 %v1017
    %v1069 = vunpack.c.l.b16 %v1018
    %v1070 = vunpack.c.h.b16 %v1018
    %v1071 = vunpack.c.l.b16 %v1019
    %v1072 = vunpack.c.h.b16 %v1019
    %v1073 = vunpack.c.l.b16 %v1020
    %v1074 = vunpack.c.h.b16 %v1020
    %v1075 = vunpack.c.l.b16 %v1021
    %v1076 = vunpack.c.h.b16 %v1021
    %v1077 = vpack.c.b16 %v1047, %v1045
    %v1078 = vpack.c.b16 %v1048, %v1046
    %v1079 = vpack.c.b16 %v1051, %v1049
    %v1080 = vpack.c.b16 %v1052, %v1050
    %v1081 = vpack.c.b16 %v1055, %v1053
    %v1082 = vpack.c.b16 %v1056, %v1054
    %v1083 = vpack.c.b16 %v1059, %v1057
    %v1084 = vpack.c.b16 %v1060, %v1058
    %v1085 = vpack.c.b16 %v1063, %v1061
    %v1086 = vpack.c.b16 %v1064, %v1062
    %v1087 = vpack.c.b16 %v1067, %v1065
    %v1088 = vpack.c.b16 %v1068, %v1066
    %v1089 = vpack.c.b16 %v1071, %v1069
    %v1090 = vpack.c.b16 %v1072, %v1070
    %v1091 = vpack.c.b16 %v1075, %v1073
    %v1092 = vpack.c.b16 %v1076, %v1074
    %1109 = vmatpush.bf16.msra.mxu0 %v1091
    %1110 = vmatpush.bf16.msra.mxu0 %v1089
    %1111 = vmatpush.bf16.msra.mxu0 %v1087
    %1112 = vmatpush.bf16.msra.mxu0 %v1085
    %1113 = vmatpush.bf16.msra.mxu0 %v1083
    %1114 = vmatpush.bf16.msra.mxu0 %v1081
    %1115 = vmatpush.bf16.msra.mxu0 %v1079
    %1116 = vmatpush.bf16.msra.mxu0 %v1077
    %1117 = vmatmul.bf16.gmra.mxu0 %v1022
    %v1118 = vpop.f32.mrf.mxu0
    %v1119 = vadd.f32 %v1025, %v1118
    %v1120 = vpop.f32.mrf.mxu0
    %v1121 = vadd.f32 %v1025, %v1120
    %1122 = vdwg.mxu0
    %1123 = vmatpush.bf16.msra.mxu0 %v1092
    %1124 = vmatpush.bf16.msra.mxu0 %v1090
    %1125 = vmatpush.bf16.msra.mxu0 %v1088
    %1126 = vmatpush.bf16.msra.mxu0 %v1086
    %1127 = vmatpush.bf16.msra.mxu0 %v1084
    %1128 = vmatpush.bf16.msra.mxu0 %v1082
    %1129 = vmatpush.bf16.msra.mxu0 %v1080
    %1130 = vmatpush.bf16.msra.mxu0 %v1078
    %1131 = vmatmul.bf16.gmra.mxu0 %v1022
    %v1132 = vpop.f32.mrf.mxu0
    %v1133 = vadd.f32 %v1026, %v1132
    %v1134 = vpop.f32.mrf.mxu0
    %v1135 = vadd.f32 %v1026, %v1134
    %1136 = vdwg.mxu0
    %v1137 = vmul.f32 %v1119, 0.5
    %v1138 = vmul.f32 %v1133, 0.5
    %v1139 = vmul.f32 %v1121, 0.5
    %v1140 = vmul.f32 %v1135, 0.5
    %v1141 = vmul.f32 %v1119, 0.044715
    %v1142 = vmul.f32 %v1133, 0.044715
    %v1143 = vmul.f32 %v1121, 0.044715
    %v1144 = vmul.f32 %v1135, 0.044715
    %v1145 = vmul.f32 %v1141, %v1119
    %v1146 = vmul.f32 %v1142, %v1133
    %v1147 = vmul.f32 %v1143, %v1121
    %v1148 = vmul.f32 %v1144, %v1135
    %v1149 = vmul.f32 %v1145, %v1119
    %v1150 = vmul.f32 %v1146, %v1133
    %v1151 = vmul.f32 %v1147, %v1121
    %v1152 = vmul.f32 %v1148, %v1135
    %v1153 = vadd.f32 %v1119, %v1149
    %v1154 = vadd.f32 %v1133, %v1150
    %v1155 = vadd.f32 %v1121, %v1151
    %v1156 = vadd.f32 %v1135, %v1152
    %v1157 = vmul.f32 %v1153, 0.7978846
    %v1158 = vmul.f32 %v1154, 0.7978846
    %v1159 = vmul.f32 %v1155, 0.7978846
    %v1160 = vmul.f32 %v1156, 0.7978846
    %v1161 = vtanh.pop %v1157
    %v1162 = vtanh.pop %v1158
    %v1163 = vtanh.pop %v1159
    %v1164 = vtanh.pop %v1160
    %v1165 = vadd.f32 %v1161, 1.0
    %v1166 = vadd.f32 %v1162, 1.0
    %v1167 = vadd.f32 %v1163, 1.0
    %v1168 = vadd.f32 %v1164, 1.0
    %v1169 = vmul.f32 %v1137, %v1165
    %v1170 = vmul.f32 %v1138, %v1166
    %v1171 = vmul.f32 %v1139, %v1167
    %v1172 = vmul.f32 %v1140, %v1168
    %v1173 = vld [vmem:[#allocation6] sm:$0xf]
    %v1174 = vld [vmem:[#allocation6 + $0x4] sm:$0xf]
    %v1175 = vld [vmem:[#allocation6 + $0x8] sm:$0xf]
    %v1176 = vld [vmem:[#allocation6 + $0xc] sm:$0xf]
    %v1177 = vld [vmem:[#allocation6 + $0x10] sm:$0xf]
    %v1178 = vld [vmem:[#allocation6 + $0x14] sm:$0xf]
    %v1179 = vld [vmem:[#allocation6 + $0x18] sm:$0xf]
    %v1180 = vld [vmem:[#allocation6 + $0x1c] sm:$0xf]
    %v1181 = vld [vmem:[#allocation6 + $0x20] sm:$0xf]
    %v1182 = vld [vmem:[#allocation6 + $0x24] sm:$0xf]
    %v1183 = vld [vmem:[#allocation6 + $0x28] sm:$0xf]
    %v1184 = vld [vmem:[#allocation6 + $0x2c] sm:$0xf]
    %v1185 = vld [vmem:[#allocation6 + $0x30] sm:$0xf]
    %v1186 = vld [vmem:[#allocation6 + $0x34] sm:$0xf]
    %v1187 = vld [vmem:[#allocation6 + $0x38] sm:$0xf]
    %v1188 = vld [vmem:[#allocation6 + $0x3c] sm:$0xf]
    %v1189 = vld [vmem:[#allocation6 + $0x40] sm:$0xf]
    %v1190 = vld [vmem:[#allocation6 + $0x44] sm:$0xf]
    %v1191 = vld [vmem:[#allocation6 + $0x48] sm:$0xf]
    %v1192 = vld [vmem:[#allocation6 + $0x4c] sm:$0xf]
    %v1193 = vld [vmem:[#allocation6 + $0x50] sm:$0xf]
    %v1194 = vld [vmem:[#allocation6 + $0x54] sm:$0xf]
    %v1195 = vld [vmem:[#allocation6 + $0x58] sm:$0xf]
    %v1196 = vld [vmem:[#allocation6 + $0x5c] sm:$0xf]
    %v1197 = vld [vmem:[#allocation6 + $0x60] sm:$0xf]
    %v1198 = vld [vmem:[#allocation6 + $0x64] sm:$0xf]
    %v1199 = vld [vmem:[#allocation6 + $0x68] sm:$0xf]
    %v1200 = vld [vmem:[#allocation6 + $0x6c] sm:$0xf]
    %v1201 = vld [vmem:[#allocation6 + $0x70] sm:$0xf]
    %v1202 = vld [vmem:[#allocation6 + $0x74] sm:$0xf]
    %v1203 = vld [vmem:[#allocation6 + $0x78] sm:$0xf]
    %v1204 = vld [vmem:[#allocation6 + $0x7c] sm:$0xf]
    %v1205 = vpack.c.bf16 %v1171, %v1169
    %v1206 = vpack.c.bf16 %v1172, %v1170
    %v1207 = vld [vmem:[%s12] sm:$0x1]
    %v1209 = vperm.slane %v1207, 0
    %v1243 = vunpack.c.l.b16 %v1173
    %v1244 = vunpack.c.l.b16 %v1174
    %v1245 = vunpack.c.l.b16 %v1175
    %v1246 = vunpack.c.l.b16 %v1176
    %v1247 = vunpack.c.l.b16 %v1177
    %v1248 = vunpack.c.l.b16 %v1178
    %v1249 = vunpack.c.l.b16 %v1179
    %v1250 = vunpack.c.l.b16 %v1180
    %v1251 = vunpack.c.l.b16 %v1181
    %v1252 = vunpack.c.l.b16 %v1182
    %v1253 = vunpack.c.l.b16 %v1183
    %v1254 = vunpack.c.l.b16 %v1184
    %v1255 = vunpack.c.l.b16 %v1185
    %v1256 = vunpack.c.l.b16 %v1186
    %v1257 = vunpack.c.l.b16 %v1187
    %v1258 = vunpack.c.l.b16 %v1188
    %v1259 = vunpack.c.l.b16 %v1189
    %v1260 = vunpack.c.l.b16 %v1190
    %v1261 = vunpack.c.l.b16 %v1191
    %v1262 = vunpack.c.l.b16 %v1192
    %v1263 = vunpack.c.l.b16 %v1193
    %v1264 = vunpack.c.l.b16 %v1194
    %v1265 = vunpack.c.l.b16 %v1195
    %v1266 = vunpack.c.l.b16 %v1196
    %v1267 = vunpack.c.l.b16 %v1197
    %v1268 = vunpack.c.l.b16 %v1198
    %v1269 = vunpack.c.l.b16 %v1199
    %v1270 = vunpack.c.l.b16 %v1200
    %v1271 = vunpack.c.l.b16 %v1201
    %v1272 = vunpack.c.l.b16 %v1202
    %v1273 = vunpack.c.l.b16 %v1203
    %v1274 = vunpack.c.l.b16 %v1204
    %v1275 = vpack.c.b16 %v1244, %v1243
    %v1276 = vpack.c.b16 %v1246, %v1245
    %v1277 = vpack.c.b16 %v1248, %v1247
    %v1278 = vpack.c.b16 %v1250, %v1249
    %v1279 = vpack.c.b16 %v1252, %v1251
    %v1280 = vpack.c.b16 %v1254, %v1253
    %v1281 = vpack.c.b16 %v1256, %v1255
    %v1282 = vpack.c.b16 %v1258, %v1257
    %v1283 = vpack.c.b16 %v1260, %v1259
    %v1284 = vpack.c.b16 %v1262, %v1261
    %v1285 = vpack.c.b16 %v1264, %v1263
    %v1286 = vpack.c.b16 %v1266, %v1265
    %v1287 = vpack.c.b16 %v1268, %v1267
    %v1288 = vpack.c.b16 %v1270, %v1269
    %v1289 = vpack.c.b16 %v1272, %v1271
    %v1290 = vpack.c.b16 %v1274, %v1273
    %1307 = vmatpush.bf16.msra.mxu0 %v1282
    %1308 = vmatpush.bf16.msra.mxu0 %v1281
    %1309 = vmatpush.bf16.msra.mxu0 %v1280
    %1310 = vmatpush.bf16.msra.mxu0 %v1279
    %1311 = vmatpush.bf16.msra.mxu0 %v1278
    %1312 = vmatpush.bf16.msra.mxu0 %v1277
    %1313 = vmatpush.bf16.msra.mxu0 %v1276
    %1314 = vmatpush.bf16.msra.mxu0 %v1275
    %1315 = vmatmul.bf16.gmra.mxu0 %v1205
    %v1316 = vpop.f32.mrf.mxu0
    %v1317 = vadd.f32 %v1209, %v1316
    %v1318 = vpop.f32.mrf.mxu0
    %v1319 = vadd.f32 %v1209, %v1318
    %1320 = vdwg.mxu0
    %1321 = vmatpush.bf16.msra.mxu0 %v1290
    %1322 = vmatpush.bf16.msra.mxu0 %v1289
    %1323 = vmatpush.bf16.msra.mxu0 %v1288
    %1324 = vmatpush.bf16.msra.mxu0 %v1287
    %1325 = vmatpush.bf16.msra.mxu0 %v1286
    %1326 = vmatpush.bf16.msra.mxu0 %v1285
    %1327 = vmatpush.bf16.msra.mxu0 %v1284
    %1328 = vmatpush.bf16.msra.mxu0 %v1283
    %1329 = vmatmul.bf16.gmra.mxu0 %v1206
    %v1330 = vpop.f32.mrf.mxu0
    %v1331 = vadd.f32 %v1317, %v1330
    %v1332 = vpop.f32.mrf.mxu0
    %v1333 = vadd.f32 %v1319, %v1332
    %1334 = vdwg.mxu0
    %v1335 = vadd.f32 %v1331, %v1004
    %v1336 = vadd.f32 %v1333, %v1005
    %v1337 = vld [vmem:[%s13] sm:$0x1]
    %v1338 = vld [vmem:[%s14] sm:$0x1]
    %1339 = vadd.xlane.f32.xlu0 %v1335
    %v1340 = vpop.xlane.xlu0 %1339
    %1341 = vadd.xlane.f32.xlu0 %v1336
    %v1342 = vpop.xlane.xlu0 %1341
    %v1343 = vmul.f32 %v1340, %v118
    %v1344 = vmul.f32 %v1342, %v118
    %v1345 = vsub.f32 %v1335, %v1343
    %v1346 = vsub.f32 %v1336, %v1344
    %v1347 = vmul.f32 %v1345, %v1345
    %v1348 = vmul.f32 %v1346, %v1346
    %1349 = vadd.xlane.f32.xlu0 %v1347
    %v1350 = vpop.xlane.xlu0 %1349
    %1351 = vadd.xlane.f32.xlu0 %v1348
    %v1352 = vpop.xlane.xlu0 %1351
    %v1353 = vmul.f32 %v1350, %v118
    %v1354 = vmul.f32 %v1352, %v118
    %v1355 = vadd.f32 %v1353, 1e-12
    %v1356 = vadd.f32 %v1354, 1e-12
    %v1357 = vrsqrt.pop %v1355
    %v1358 = vmul.f32 %v1357, %v1355
    %v1359 = vmul.f32 %v1358, %v1357
    %v1360 = vmul.f32 0.5, %v1359
    %v1361 = vsub.f32 1.5, %v1360
    %v1362 = vmul.f32 %v1357, %v1361
    %vm1363 = vweird.f32 %v1355
    %vm1364 = vweird.f32 %v1357
    %vm1365 = vmor %vm1363, %vm1364
    %v1366 = vsel %vm1365, %v1357, %v1362
    %v1367 = vrsqrt.pop %v1356
    %v1368 = vmul.f32 %v1367, %v1356
    %v1369 = vmul.f32 %v1368, %v1367
    %v1370 = vmul.f32 0.5, %v1369
    %v1371 = vsub.f32 1.5, %v1370
    %v1372 = vmul.f32 %v1367, %v1371
    %vm1373 = vweird.f32 %v1356
    %vm1374 = vweird.f32 %v1367
    %vm1375 = vmor %vm1373, %vm1374
    %v1376 = vsel %vm1375, %v1367, %v1372
    %v1377 = vmul.f32 %v1345, %v1366
    %v1378 = vmul.f32 %v1346, %v1376
    %v1380 = vperm.slane %v1337, 0
    %v1382 = vmul.f32 %v1377, %v1380
    %v1383 = vmul.f32 %v1378, %v1380
    %v1385 = vperm.slane %v1338, 0
    %v1387 = vadd.f32 %v1382, %v1385
    %v1388 = vadd.f32 %v1383, %v1385
    %s1389 = scalar_lea.vmem [#allocation2], 192
    %v1390 = vld [vmem:[%s1389] sm:$0xff]
    %v1391 = vld [vmem:[%s1389 + $0x8] sm:$0xf]
    %v1392 = vld [vmem:[%s1389 + $0xc] sm:$0xff]
    %v1393 = vld [vmem:[%s1389 + $0x14] sm:$0xf]
    %v1394 = vld [vmem:[%s1389 + $0x18] sm:$0xff]
    %v1395 = vld [vmem:[%s1389 + $0x20] sm:$0xf]
    %v1396 = vld [vmem:[%s1389 + $0x24] sm:$0xff]
    %v1397 = vld [vmem:[%s1389 + $0x2c] sm:$0xf]
    %v1398 = vld [vmem:[%s1389 + $0x30] sm:$0xff]
    %v1399 = vld [vmem:[%s1389 + $0x38] sm:$0xf]
    %v1400 = vld [vmem:[%s1389 + $0x3c] sm:$0xff]
    %v1401 = vld [vmem:[%s1389 + $0x44] sm:$0xf]
    %v1402 = vld [vmem:[%s1389 + $0x48] sm:$0xff]
    %v1403 = vld [vmem:[%s1389 + $0x50] sm:$0xf]
    %v1404 = vld [vmem:[%s1389 + $0x54] sm:$0xff]
    %v1405 = vld [vmem:[%s1389 + $0x5c] sm:$0xf]
    %v1406 = vld [vmem:[%s1389 + $0x60] sm:$0xff]
    %v1407 = vld [vmem:[%s1389 + $0x68] sm:$0xf]
    %v1408 = vld [vmem:[%s1389 + $0x6c] sm:$0xff]
    %v1409 = vld [vmem:[%s1389 + $0x74] sm:$0xf]
    %v1410 = vld [vmem:[%s1389 + $0x78] sm:$0xff]
    %v1411 = vld [vmem:[%s1389 + $0x80] sm:$0xf]
    %v1412 = vld [vmem:[%s1389 + $0x84] sm:$0xff]
    %v1413 = vld [vmem:[%s1389 + $0x8c] sm:$0xf]
    %v1414 = vld [vmem:[%s1389 + $0x90] sm:$0xff]
    %v1415 = vld [vmem:[%s1389 + $0x98] sm:$0xf]
    %v1416 = vld [vmem:[%s1389 + $0x9c] sm:$0xff]
    %v1417 = vld [vmem:[%s1389 + $0xa4] sm:$0xf]
    %v1418 = vld [vmem:[%s1389 + $0xa8] sm:$0xff]
    %v1419 = vld [vmem:[%s1389 + $0xb0] sm:$0xf]
    %v1420 = vld [vmem:[%s1389 + $0xb4] sm:$0xff]
    %v1421 = vld [vmem:[%s1389 + $0xbc] sm:$0xf]
    %v1422 = vpack.c.bf16 %v1388, %v1387
    %s1423 = scalar_lea.vmem %s4, 3
    %v1424 = vld [vmem:[%s1423] sm:$0x7]
    %v1426 = vperm.slane %v1424, 0
    %v1427 = vperm.slane %v1424, 1
    %v1428 = vperm.slane %v1424, 2
    %v1464 = vunpack.c.l.b16 %v1390
    %v1465 = vunpack.c.h.b16 %v1390
    %v1466 = vunpack.c.l.b16 %v1391
    %v1467 = vunpack.c.l.b16 %v1392
    %v1468 = vunpack.c.h.b16 %v1392
    %v1469 = vunpack.c.l.b16 %v1393
    %v1470 = vunpack.c.l.b16 %v1394
    %v1471 = vunpack.c.h.b16 %v1394
    %v1472 = vunpack.c.l.b16 %v1395
    %v1473 = vunpack.c.l.b16 %v1396
    %v1474 = vunpack.c.h.b16 %v1396
    %v1475 = vunpack.c.l.b16 %v1397
    %v1476 = vunpack.c.l.b16 %v1398
    %v1477 = vunpack.c.h.b16 %v1398
    %v1478 = vunpack.c.l.b16 %v1399
    %v1479 = vunpack.c.l.b16 %v1400
    %v1480 = vunpack.c.h.b16 %v1400
    %v1481 = vunpack.c.l.b16 %v1401
    %v1482 = vunpack.c.l.b16 %v1402
    %v1483 = vunpack.c.h.b16 %v1402
    %v1484 = vunpack.c.l.b16 %v1403
    %v1485 = vunpack.c.l.b16 %v1404
    %v1486 = vunpack.c.h.b16 %v1404
    %v1487 = vunpack.c.l.b16 %v1405
    %v1488 = vunpack.c.l.b16 %v1406
    %v1489 = vunpack.c.h.b16 %v1406
    %v1490 = vunpack.c.l.b16 %v1407
    %v1491 = vunpack.c.l.b16 %v1408
    %v1492 = vunpack.c.h.b16 %v1408
    %v1493 = vunpack.c.l.b16 %v1409
    %v1494 = vunpack.c.l.b16 %v1410
    %v1495 = vunpack.c.h.b16 %v1410
    %v1496 = vunpack.c.l.b16 %v1411
    %v1497 = vunpack.c.l.b16 %v1412
    %v1498 = vunpack.c.h.b16 %v1412
    %v1499 = vunpack.c.l.b16 %v1413
    %v1500 = vunpack.c.l.b16 %v1414
    %v1501 = vunpack.c.h.b16 %v1414
    %v1502 = vunpack.c.l.b16 %v1415
    %v1503 = vunpack.c.l.b16 %v1416
    %v1504 = vunpack.c.h.b16 %v1416
    %v1505 = vunpack.c.l.b16 %v1417
    %v1506 = vunpack.c.l.b16 %v1418
    %v1507 = vunpack.c.h.b16 %v1418
    %v1508 = vunpack.c.l.b16 %v1419
    %v1509 = vunpack.c.l.b16 %v1420
    %v1510 = vunpack.c.h.b16 %v1420
    %v1511 = vunpack.c.l.b16 %v1421
    %v1512 = vpack.c.b16 %v1467, %v1464
    %v1513 = vpack.c.b16 %v1468, %v1465
    %v1514 = vpack.c.b16 %v1469, %v1466
    %v1515 = vpack.c.b16 %v1473, %v1470
    %v1516 = vpack.c.b16 %v1474, %v1471
    %v1517 = vpack.c.b16 %v1475, %v1472
    %v1518 = vpack.c.b16 %v1479, %v1476
    %v1519 = vpack.c.b16 %v1480, %v1477
    %v1520 = vpack.c.b16 %v1481, %v1478
    %v1521 = vpack.c.b16 %v1485, %v1482
    %v1522 = vpack.c.b16 %v1486, %v1483
    %v1523 = vpack.c.b16 %v1487, %v1484
    %v1524 = vpack.c.b16 %v1491, %v1488
    %v1525 = vpack.c.b16 %v1492, %v1489
    %v1526 = vpack.c.b16 %v1493, %v1490
    %v1527 = vpack.c.b16 %v1497, %v1494
    %v1528 = vpack.c.b16 %v1498, %v1495
    %v1529 = vpack.c.b16 %v1499, %v1496
    %v1530 = vpack.c.b16 %v1503, %v1500
    %v1531 = vpack.c.b16 %v1504, %v1501
    %v1532 = vpack.c.b16 %v1505, %v1502
    %v1533 = vpack.c.b16 %v1509, %v1506
    %v1534 = vpack.c.b16 %v1510, %v1507
    %v1535 = vpack.c.b16 %v1511, %v1508
    %1560 = vmatpush.bf16.msra.mxu0 %v1533
    %1561 = vmatpush.bf16.msra.mxu0 %v1530
    %1562 = vmatpush.bf16.msra.mxu0 %v1527
    %1563 = vmatpush.bf16.msra.mxu0 %v1524
    %1564 = vmatpush.bf16.msra.mxu0 %v1521
    %1565 = vmatpush.bf16.msra.mxu0 %v1518
    %1566 = vmatpush.bf16.msra.mxu0 %v1515
    %1567 = vmatpush.bf16.msra.mxu0 %v1512
    %1568 = vmatmul.bf16.gmra.mxu0 %v1422
    %v1569 = vpop.f32.mrf.mxu0
    %v1570 = vadd.f32 %v1426, %v1569
    %v1571 = vpop.f32.mrf.mxu0
    %v1572 = vadd.f32 %v1426, %v1571
    %1573 = vdwg.mxu0
    %1574 = vmatpush.bf16.msra.mxu0 %v1534
    %1575 = vmatpush.bf16.msra.mxu0 %v1531
    %1576 = vmatpush.bf16.msra.mxu0 %v1528
    %1577 = vmatpush.bf16.msra.mxu0 %v1525
    %1578 = vmatpush.bf16.msra.mxu0 %v1522
    %1579 = vmatpush.bf16.msra.mxu0 %v1519
    %1580 = vmatpush.bf16.msra.mxu0 %v1516
    %1581 = vmatpush.bf16.msra.mxu0 %v1513
    %1582 = vmatmul.bf16.gmra.mxu0 %v1422
    %v1583 = vpop.f32.mrf.mxu0
    %v1584 = vadd.f32 %v1427, %v1583
    %v1585 = vpop.f32.mrf.mxu0
    %v1586 = vadd.f32 %v1427, %v1585
    %1587 = vdwg.mxu0
    %1588 = vmatpush.bf16.msra.mxu0 %v1535
    %1589 = vmatpush.bf16.msra.mxu0 %v1532
    %1590 = vmatpush.bf16.msra.mxu0 %v1529
    %1591 = vmatpush.bf16.msra.mxu0 %v1526
    %1592 = vmatpush.bf16.msra.mxu0 %v1523
    %1593 = vmatpush.bf16.msra.mxu0 %v1520
    %1594 = vmatpush.bf16.msra.mxu0 %v1517
    %1595 = vmatpush.bf16.msra.mxu0 %v1514
    %1596 = vmatmul.bf16.gmra.mxu0 %v1422
    %v1597 = vpop.f32.mrf.mxu0
    %v1598 = vadd.f32 %v1428, %v1597
    %v1599 = vpop.f32.mrf.mxu0
    %v1600 = vadd.f32 %v1428, %v1599
    %1601 = vdwg.mxu0
    %v1602 = vpack.c.bf16 %v1584, %v1570
    %v1603 = vpack.c.bf16 %v1598, %v1598
    %v1604 = vpack.c.bf16 %v1586, %v1572
    %v1605 = vpack.c.bf16 %v1600, %v1600
    %v1608 = vrot.slane %v1602, 4
    %v1609 = vrot.slane %v1604, 4
    %v1611 = vsel %vm384, %v1602, 0
    %v1614 = vsel %vm384, %v1608, 0
    %1616 = vmatpush.bf16.xpose.msra.mxu0 0
    %1617 = vmatpush.bf16.xpose.msra.mxu0 0
    %1618 = vmatpush.bf16.xpose.msra.mxu0 0
    %1619 = vmatpush.bf16.xpose.msra.mxu0 0
    %1620 = vmatpush.bf16.xpose.msra.mxu0 0
    %1621 = vmatpush.bf16.xpose.msra.mxu0 0
    %1622 = vmatpush.bf16.xpose.msra.mxu0 0
    %1623 = vmatpush.bf16.xpose.msra.mxu0 %v1614
    %1624 = vmatmul.bf16.gmra.mxu0 %v1611
    %v1625 = vpop.f32.mrf.mxu0
    %v1626 = vadd.f32 0.0, %v1625
    %v1627 = vpop.f32.mrf.mxu0
    %1628 = vdwg.mxu0
    %v1630 = vsel %vm384, %v1604, 0
    %v1633 = vsel %vm384, %v1609, 0
    %1635 = vmatpush.bf16.xpose.msra.mxu0 0
    %1636 = vmatpush.bf16.xpose.msra.mxu0 0
    %1637 = vmatpush.bf16.xpose.msra.mxu0 0
    %1638 = vmatpush.bf16.xpose.msra.mxu0 0
    %1639 = vmatpush.bf16.xpose.msra.mxu0 0
    %1640 = vmatpush.bf16.xpose.msra.mxu0 0
    %1641 = vmatpush.bf16.xpose.msra.mxu0 0
    %1642 = vmatpush.bf16.xpose.msra.mxu0 %v1633
    %1643 = vmatmul.bf16.gmra.mxu0 %v1630
    %v1644 = vpop.f32.mrf.mxu0
    %v1645 = vadd.f32 0.0, %v1644
    %v1646 = vpop.f32.mrf.mxu0
    %1647 = vdwg.mxu0
    %v1648 = vsel %vm423, %v1626, -inf
    %1649 = vmax.xlane.f32.xlu0 %v1648
    %v1650 = vpop.xlane.xlu0 %1649
    %v1651 = vsel %vm423, %v1645, -inf
    %1652 = vmax.xlane.f32.xlu0 %v1651
    %v1653 = vpop.xlane.xlu0 %1652
    %v1654 = vsub.f32 %v1626, %v1650
    %v1655 = vsub.f32 %v1645, %v1653
    %v1656 = vmul.f32 %v1654, 1.442695
    %v1657 = vpow.pop %v1656
    %v1658 = vmul.f32 %v1655, 1.442695
    %v1659 = vpow.pop %v1658
    %v1660 = vsel %vm423, %v1657, 0.0
    %1661 = vadd.xlane.f32.xlu0 %v1660
    %v1662 = vpop.xlane.xlu0 %1661
    %v1663 = vsel %vm423, %v1659, 0.0
    %1664 = vadd.xlane.f32.xlu0 %v1663
    %v1665 = vpop.xlane.xlu0 %1664
    %v1666 = vrcp.pop %v1662
    %v1667 = vrcp.pop %v1665
    %v1668 = vmul.f32 %v1657, %v1666
    %v1669 = vmul.f32 %v1659, %v1667
    %v1670 = vpack.c.bf16 %v1668, %v1668
    %v1671 = vpack.c.bf16 %v1669, %v1669
    %v1673 = vsel %vm423, %v1670, 0
    %v1676 = vsel %vm451, %v1603, 0
    %1678 = vmatpush.bf16.msra.mxu0 0
    %1679 = vmatpush.bf16.msra.mxu0 0
    %1680 = vmatpush.bf16.msra.mxu0 0
    %1681 = vmatpush.bf16.msra.mxu0 0
    %1682 = vmatpush.bf16.msra.mxu0 0
    %1683 = vmatpush.bf16.msra.mxu0 0
    %1684 = vmatpush.bf16.msra.mxu0 0
    %1685 = vmatpush.bf16.msra.mxu0 %v1676
    %1686 = vmatmul.bf16.gmra.mxu0 %v1673
    %v1687 = vpop.f32.mrf.mxu0
    %v1688 = vadd.f32 0.0, %v1687
    %v1689 = vpop.f32.mrf.mxu0
    %1690 = vdwg.mxu0
    %v1692 = vsel %vm423, %v1671, 0
    %v1695 = vsel %vm451, %v1605, 0
    %1697 = vmatpush.bf16.msra.mxu0 0
    %1698 = vmatpush.bf16.msra.mxu0 0
    %1699 = vmatpush.bf16.msra.mxu0 0
    %1700 = vmatpush.bf16.msra.mxu0 0
    %1701 = vmatpush.bf16.msra.mxu0 0
    %1702 = vmatpush.bf16.msra.mxu0 0
    %1703 = vmatpush.bf16.msra.mxu0 0
    %1704 = vmatpush.bf16.msra.mxu0 %v1695
    %1705 = vmatmul.bf16.gmra.mxu0 %v1692
    %v1706 = vpop.f32.mrf.mxu0
    %v1707 = vadd.f32 0.0, %v1706
    %v1708 = vpop.f32.mrf.mxu0
    %1709 = vdwg.mxu0
    %v1710 = vunpack.c.l.b16 %v1602
    %v1711 = vpack.c.b16 %v1710, %v1710
    %1712 = vrot.lane.b32.xlu0 %v1711, 96
    %v1713 = vpop.permute.xlu0 %1712
    %v1714 = vunpack.c.l.b16 %v1608
    %v1715 = vpack.c.b16 %v1714, %v1714
    %1716 = vrot.lane.b32.xlu0 %v1715, 96
    %v1717 = vpop.permute.xlu0 %1716
    %v1719 = vsel %vm384, %v1713, 0
    %v1722 = vsel %vm384, %v1717, 0
    %1724 = vmatpush.bf16.xpose.msra.mxu0 0
    %1725 = vmatpush.bf16.xpose.msra.mxu0 0
    %1726 = vmatpush.bf16.xpose.msra.mxu0 0
    %1727 = vmatpush.bf16.xpose.msra.mxu0 0
    %1728 = vmatpush.bf16.xpose.msra.mxu0 0
    %1729 = vmatpush.bf16.xpose.msra.mxu0 0
    %1730 = vmatpush.bf16.xpose.msra.mxu0 0
    %1731 = vmatpush.bf16.xpose.msra.mxu0 %v1722
    %1732 = vmatmul.bf16.gmra.mxu0 %v1719
    %v1733 = vpop.f32.mrf.mxu0
    %v1734 = vadd.f32 0.0, %v1733
    %v1735 = vpop.f32.mrf.mxu0
    %1736 = vdwg.mxu0
    %v1737 = vunpack.c.l.b16 %v1604
    %v1738 = vpack.c.b16 %v1737, %v1737
    %1739 = vrot.lane.b32.xlu0 %v1738, 96
    %v1740 = vpop.permute.xlu0 %1739
    %v1741 = vunpack.c.l.b16 %v1609
    %v1742 = vpack.c.b16 %v1741, %v1741
    %1743 = vrot.lane.b32.xlu0 %v1742, 96
    %v1744 = vpop.permute.xlu0 %1743
    %v1746 = vsel %vm384, %v1740, 0
    %v1749 = vsel %vm384, %v1744, 0
    %1751 = vmatpush.bf16.xpose.msra.mxu0 0
    %1752 = vmatpush.bf16.xpose.msra.mxu0 0
    %1753 = vmatpush.bf16.xpose.msra.mxu0 0
    %1754 = vmatpush.bf16.xpose.msra.mxu0 0
    %1755 = vmatpush.bf16.xpose.msra.mxu0 0
    %1756 = vmatpush.bf16.xpose.msra.mxu0 0
    %1757 = vmatpush.bf16.xpose.msra.mxu0 0
    %1758 = vmatpush.bf16.xpose.msra.mxu0 %v1749
    %1759 = vmatmul.bf16.gmra.mxu0 %v1746
    %v1760 = vpop.f32.mrf.mxu0
    %v1761 = vadd.f32 0.0, %v1760
    %v1762 = vpop.f32.mrf.mxu0
    %1763 = vdwg.mxu0
    %v1764 = vsel %vm423, %v1734, -inf
    %1765 = vmax.xlane.f32.xlu0 %v1764
    %v1766 = vpop.xlane.xlu0 %1765
    %v1767 = vsel %vm423, %v1761, -inf
    %1768 = vmax.xlane.f32.xlu0 %v1767
    %v1769 = vpop.xlane.xlu0 %1768
    %v1770 = vsub.f32 %v1734, %v1766
    %v1771 = vsub.f32 %v1761, %v1769
    %v1772 = vmul.f32 %v1770, 1.442695
    %v1773 = vpow.pop %v1772
    %v1774 = vmul.f32 %v1771, 1.442695
    %v1775 = vpow.pop %v1774
    %v1776 = vsel %vm423, %v1773, 0.0
    %1777 = vadd.xlane.f32.xlu0 %v1776
    %v1778 = vpop.xlane.xlu0 %1777
    %v1779 = vsel %vm423, %v1775, 0.0
    %1780 = vadd.xlane.f32.xlu0 %v1779
    %v1781 = vpop.xlane.xlu0 %1780
    %v1782 = vrcp.pop %v1778
    %v1783 = vrcp.pop %v1781
    %v1784 = vmul.f32 %v1773, %v1782
    %v1785 = vmul.f32 %v1775, %v1783
    %v1786 = vpack.c.bf16 %v1784, %v1784
    %v1787 = vpack.c.bf16 %v1785, %v1785
    %v1789 = vunpack.c.l.b16 %v1603
    %v1790 = vpack.c.b16 %v1789, %v1789
    %1791 = vrot.lane.b32.xlu0 %v1790, 96
    %v1792 = vpop.permute.xlu0 %1791
    %v1794 = vsel %vm423, %v1786, 0
    %v1797 = vsel %vm451, %v1792, 0
    %1799 = vmatpush.bf16.msra.mxu0 0
    %1800 = vmatpush.bf16.msra.mxu0 0
    %1801 = vmatpush.bf16.msra.mxu0 0
    %1802 = vmatpush.bf16.msra.mxu0 0
    %1803 = vmatpush.bf16.msra.mxu0 0
    %1804 = vmatpush.bf16.msra.mxu0 0
    %1805 = vmatpush.bf16.msra.mxu0 0
    %1806 = vmatpush.bf16.msra.mxu0 %v1797
    %1807 = vmatmul.bf16.gmra.mxu0 %v1794
    %v1808 = vpop.f32.mrf.mxu0
    %v1809 = vadd.f32 0.0, %v1808
    %v1810 = vpop.f32.mrf.mxu0
    %1811 = vdwg.mxu0
    %v1813 = vunpack.c.l.b16 %v1605
    %v1814 = vpack.c.b16 %v1813, %v1813
    %1815 = vrot.lane.b32.xlu0 %v1814, 96
    %v1816 = vpop.permute.xlu0 %1815
    %v1818 = vsel %vm423, %v1787, 0
    %v1821 = vsel %vm451, %v1816, 0
    %1823 = vmatpush.bf16.msra.mxu0 0
    %1824 = vmatpush.bf16.msra.mxu0 0
    %1825 = vmatpush.bf16.msra.mxu0 0
    %1826 = vmatpush.bf16.msra.mxu0 0
    %1827 = vmatpush.bf16.msra.mxu0 0
    %1828 = vmatpush.bf16.msra.mxu0 0
    %1829 = vmatpush.bf16.msra.mxu0 0
    %1830 = vmatpush.bf16.msra.mxu0 %v1821
    %1831 = vmatmul.bf16.gmra.mxu0 %v1818
    %v1832 = vpop.f32.mrf.mxu0
    %v1833 = vadd.f32 0.0, %v1832
    %v1834 = vpop.f32.mrf.mxu0
    %1835 = vdwg.mxu0
    %1836 = vrot.lane.b32.xlu0 %v1711, 64
    %v1837 = vpop.permute.xlu0 %1836
    %1838 = vrot.lane.b32.xlu0 %v1715, 64
    %v1839 = vpop.permute.xlu0 %1838
    %v1841 = vsel %vm384, %v1837, 0
    %v1844 = vsel %vm384, %v1839, 0
    %1846 = vmatpush.bf16.xpose.msra.mxu0 0
    %1847 = vmatpush.bf16.xpose.msra.mxu0 0
    %1848 = vmatpush.bf16.xpose.msra.mxu0 0
    %1849 = vmatpush.bf16.xpose.msra.mxu0 0
    %1850 = vmatpush.bf16.xpose.msra.mxu0 0
    %1851 = vmatpush.bf16.xpose.msra.mxu0 0
    %1852 = vmatpush.bf16.xpose.msra.mxu0 0
    %1853 = vmatpush.bf16.xpose.msra.mxu0 %v1844
    %1854 = vmatmul.bf16.gmra.mxu0 %v1841
    %v1855 = vpop.f32.mrf.mxu0
    %v1856 = vadd.f32 0.0, %v1855
    %v1857 = vpop.f32.mrf.mxu0
    %1858 = vdwg.mxu0
    %1859 = vrot.lane.b32.xlu0 %v1738, 64
    %v1860 = vpop.permute.xlu0 %1859
    %1861 = vrot.lane.b32.xlu0 %v1742, 64
    %v1862 = vpop.permute.xlu0 %1861
    %v1864 = vsel %vm384, %v1860, 0
    %v1867 = vsel %vm384, %v1862, 0
    %1869 = vmatpush.bf16.xpose.msra.mxu0 0
    %1870 = vmatpush.bf16.xpose.msra.mxu0 0
    %1871 = vmatpush.bf16.xpose.msra.mxu0 0
    %1872 = vmatpush.bf16.xpose.msra.mxu0 0
    %1873 = vmatpush.bf16.xpose.msra.mxu0 0
    %1874 = vmatpush.bf16.xpose.msra.mxu0 0
    %1875 = vmatpush.bf16.xpose.msra.mxu0 0
    %1876 = vmatpush.bf16.xpose.msra.mxu0 %v1867
    %1877 = vmatmul.bf16.gmra.mxu0 %v1864
    %v1878 = vpop.f32.mrf.mxu0
    %v1879 = vadd.f32 0.0, %v1878
    %v1880 = vpop.f32.mrf.mxu0
    %1881 = vdwg.mxu0
    %v1882 = vsel %vm423, %v1856, -inf
    %1883 = vmax.xlane.f32.xlu0 %v1882
    %v1884 = vpop.xlane.xlu0 %1883
    %v1885 = vsel %vm423, %v1879, -inf
    %1886 = vmax.xlane.f32.xlu0 %v1885
    %v1887 = vpop.xlane.xlu0 %1886
    %v1888 = vsub.f32 %v1856, %v1884
    %v1889 = vsub.f32 %v1879, %v1887
    %v1890 = vmul.f32 %v1888, 1.442695
    %v1891 = vpow.pop %v1890
    %v1892 = vmul.f32 %v1889, 1.442695
    %v1893 = vpow.pop %v1892
    %v1894 = vsel %vm423, %v1891, 0.0
    %1895 = vadd.xlane.f32.xlu0 %v1894
    %v1896 = vpop.xlane.xlu0 %1895
    %v1897 = vsel %vm423, %v1893, 0.0
    %1898 = vadd.xlane.f32.xlu0 %v1897
    %v1899 = vpop.xlane.xlu0 %1898
    %v1900 = vrcp.pop %v1896
    %v1901 = vrcp.pop %v1899
    %v1902 = vmul.f32 %v1891, %v1900
    %v1903 = vmul.f32 %v1893, %v1901
    %v1904 = vpack.c.bf16 %v1902, %v1902
    %v1905 = vpack.c.bf16 %v1903, %v1903
    %1906 = vrot.lane.b32.xlu0 %v1790, 64
    %v1907 = vpop.permute.xlu0 %1906
    %v1909 = vsel %vm423, %v1904, 0
    %v1912 = vsel %vm451, %v1907, 0
    %1914 = vmatpush.bf16.msra.mxu0 0
    %1915 = vmatpush.bf16.msra.mxu0 0
    %1916 = vmatpush.bf16.msra.mxu0 0
    %1917 = vmatpush.bf16.msra.mxu0 0
    %1918 = vmatpush.bf16.msra.mxu0 0
    %1919 = vmatpush.bf16.msra.mxu0 0
    %1920 = vmatpush.bf16.msra.mxu0 0
    %1921 = vmatpush.bf16.msra.mxu0 %v1912
    %1922 = vmatmul.bf16.gmra.mxu0 %v1909
    %v1923 = vpop.f32.mrf.mxu0
    %v1924 = vadd.f32 0.0, %v1923
    %v1925 = vpop.f32.mrf.mxu0
    %1926 = vdwg.mxu0
    %1927 = vrot.lane.b32.xlu0 %v1814, 64
    %v1928 = vpop.permute.xlu0 %1927
    %v1930 = vsel %vm423, %v1905, 0
    %v1933 = vsel %vm451, %v1928, 0
    %1935 = vmatpush.bf16.msra.mxu0 0
    %1936 = vmatpush.bf16.msra.mxu0 0
    %1937 = vmatpush.bf16.msra.mxu0 0
    %1938 = vmatpush.bf16.msra.mxu0 0
    %1939 = vmatpush.bf16.msra.mxu0 0
    %1940 = vmatpush.bf16.msra.mxu0 0
    %1941 = vmatpush.bf16.msra.mxu0 0
    %1942 = vmatpush.bf16.msra.mxu0 %v1933
    %1943 = vmatmul.bf16.gmra.mxu0 %v1930
    %v1944 = vpop.f32.mrf.mxu0
    %v1945 = vadd.f32 0.0, %v1944
    %v1946 = vpop.f32.mrf.mxu0
    %1947 = vdwg.mxu0
    %1948 = vrot.lane.b32.xlu0 %v1711, 32
    %v1949 = vpop.permute.xlu0 %1948
    %1950 = vrot.lane.b32.xlu0 %v1715, 32
    %v1951 = vpop.permute.xlu0 %1950
    %v1953 = vsel %vm384, %v1949, 0
    %v1956 = vsel %vm384, %v1951, 0
    %1958 = vmatpush.bf16.xpose.msra.mxu0 0
    %1959 = vmatpush.bf16.xpose.msra.mxu0 0
    %1960 = vmatpush.bf16.xpose.msra.mxu0 0
    %1961 = vmatpush.bf16.xpose.msra.mxu0 0
    %1962 = vmatpush.bf16.xpose.msra.mxu0 0
    %1963 = vmatpush.bf16.xpose.msra.mxu0 0
    %1964 = vmatpush.bf16.xpose.msra.mxu0 0
    %1965 = vmatpush.bf16.xpose.msra.mxu0 %v1956
    %1966 = vmatmul.bf16.gmra.mxu0 %v1953
    %v1967 = vpop.f32.mrf.mxu0
    %v1968 = vadd.f32 0.0, %v1967
    %v1969 = vpop.f32.mrf.mxu0
    %1970 = vdwg.mxu0
    %1971 = vrot.lane.b32.xlu0 %v1738, 32
    %v1972 = vpop.permute.xlu0 %1971
    %1973 = vrot.lane.b32.xlu0 %v1742, 32
    %v1974 = vpop.permute.xlu0 %1973
    %v1976 = vsel %vm384, %v1972, 0
    %v1979 = vsel %vm384, %v1974, 0
    %1981 = vmatpush.bf16.xpose.msra.mxu0 0
    %1982 = vmatpush.bf16.xpose.msra.mxu0 0
    %1983 = vmatpush.bf16.xpose.msra.mxu0 0
    %1984 = vmatpush.bf16.xpose.msra.mxu0 0
    %1985 = vmatpush.bf16.xpose.msra.mxu0 0
    %1986 = vmatpush.bf16.xpose.msra.mxu0 0
    %1987 = vmatpush.bf16.xpose.msra.mxu0 0
    %1988 = vmatpush.bf16.xpose.msra.mxu0 %v1979
    %1989 = vmatmul.bf16.gmra.mxu0 %v1976
    %v1990 = vpop.f32.mrf.mxu0
    %v1991 = vadd.f32 0.0, %v1990
    %v1992 = vpop.f32.mrf.mxu0
    %1993 = vdwg.mxu0
    %v1994 = vsel %vm423, %v1968, -inf
    %1995 = vmax.xlane.f32.xlu0 %v1994
    %v1996 = vpop.xlane.xlu0 %1995
    %v1997 = vsel %vm423, %v1991, -inf
    %1998 = vmax.xlane.f32.xlu0 %v1997
    %v1999 = vpop.xlane.xlu0 %1998
    %v2000 = vsub.f32 %v1968, %v1996
    %v2001 = vsub.f32 %v1991, %v1999
    %v2002 = vmul.f32 %v2000, 1.442695
    %v2003 = vpow.pop %v2002
    %v2004 = vmul.f32 %v2001, 1.442695
    %v2005 = vpow.pop %v2004
    %v2006 = vsel %vm423, %v2003, 0.0
    %2007 = vadd.xlane.f32.xlu0 %v2006
    %v2008 = vpop.xlane.xlu0 %2007
    %v2009 = vsel %vm423, %v2005, 0.0
    %2010 = vadd.xlane.f32.xlu0 %v2009
    %v2011 = vpop.xlane.xlu0 %2010
    %v2012 = vrcp.pop %v2008
    %v2013 = vrcp.pop %v2011
    %v2014 = vmul.f32 %v2003, %v2012
    %v2015 = vmul.f32 %v2005, %v2013
    %v2016 = vpack.c.bf16 %v2014, %v2014
    %v2017 = vpack.c.bf16 %v2015, %v2015
    %2018 = vrot.lane.b32.xlu0 %v1790, 32
    %v2019 = vpop.permute.xlu0 %2018
    %v2021 = vsel %vm423, %v2016, 0
    %v2024 = vsel %vm451, %v2019, 0
    %2026 = vmatpush.bf16.msra.mxu0 0
    %2027 = vmatpush.bf16.msra.mxu0 0
    %2028 = vmatpush.bf16.msra.mxu0 0
    %2029 = vmatpush.bf16.msra.mxu0 0
    %2030 = vmatpush.bf16.msra.mxu0 0
    %2031 = vmatpush.bf16.msra.mxu0 0
    %2032 = vmatpush.bf16.msra.mxu0 0
    %2033 = vmatpush.bf16.msra.mxu0 %v2024
    %2034 = vmatmul.bf16.gmra.mxu0 %v2021
    %v2035 = vpop.f32.mrf.mxu0
    %v2036 = vadd.f32 0.0, %v2035
    %v2037 = vpop.f32.mrf.mxu0
    %2038 = vdwg.mxu0
    %2039 = vrot.lane.b32.xlu0 %v1814, 32
    %v2040 = vpop.permute.xlu0 %2039
    %v2042 = vsel %vm423, %v2017, 0
    %v2045 = vsel %vm451, %v2040, 0
    %2047 = vmatpush.bf16.msra.mxu0 0
    %2048 = vmatpush.bf16.msra.mxu0 0
    %2049 = vmatpush.bf16.msra.mxu0 0
    %2050 = vmatpush.bf16.msra.mxu0 0
    %2051 = vmatpush.bf16.msra.mxu0 0
    %2052 = vmatpush.bf16.msra.mxu0 0
    %2053 = vmatpush.bf16.msra.mxu0 0
    %2054 = vmatpush.bf16.msra.mxu0 %v2045
    %2055 = vmatmul.bf16.gmra.mxu0 %v2042
    %v2056 = vpop.f32.mrf.mxu0
    %v2057 = vadd.f32 0.0, %v2056
    %v2058 = vpop.f32.mrf.mxu0
    %2059 = vdwg.mxu0
    %2062 = vrot.lane.b32.xlu0 %v1809, 32
    %v2063 = vpop.permute.xlu0 %2062
    %2064 = vrot.lane.b32.xlu0 %v1833, 32
    %v2065 = vpop.permute.xlu0 %2064
    %2070 = vrot.lane.b32.xlu0 %v1924, 64
    %v2071 = vpop.permute.xlu0 %2070
    %2072 = vrot.lane.b32.xlu0 %v1945, 64
    %v2073 = vpop.permute.xlu0 %2072
    %2078 = vrot.lane.b32.xlu0 %v2036, 96
    %v2079 = vpop.permute.xlu0 %2078
    %2080 = vrot.lane.b32.xlu0 %v2057, 96
    %v2081 = vpop.permute.xlu0 %2080
    %v2084 = vsel %vm384, %v1688, %v2063
    %v2085 = vsel %vm384, %v1707, %v2065
    %v2086 = vsel %vm863, %v2084, %v2071
    %v2087 = vsel %vm863, %v2085, %v2073
    %v2088 = vsel %vm866, %v2086, %v2079
    %v2089 = vsel %vm866, %v2087, %v2081
    %s2090 = scalar_lea.vmem %s5, 64
    %v2091 = vld [vmem:[%s2090] sm:$0xf]
    %v2092 = vld [vmem:[%s2090 + $0x4] sm:$0xf]
    %v2093 = vld [vmem:[%s2090 + $0x8] sm:$0xf]
    %v2094 = vld [vmem:[%s2090 + $0xc] sm:$0xf]
    %v2095 = vld [vmem:[%s2090 + $0x10] sm:$0xf]
    %v2096 = vld [vmem:[%s2090 + $0x14] sm:$0xf]
    %v2097 = vld [vmem:[%s2090 + $0x18] sm:$0xf]
    %v2098 = vld [vmem:[%s2090 + $0x1c] sm:$0xf]
    %v2099 = vld [vmem:[%s2090 + $0x20] sm:$0xf]
    %v2100 = vld [vmem:[%s2090 + $0x24] sm:$0xf]
    %v2101 = vld [vmem:[%s2090 + $0x28] sm:$0xf]
    %v2102 = vld [vmem:[%s2090 + $0x2c] sm:$0xf]
    %v2103 = vld [vmem:[%s2090 + $0x30] sm:$0xf]
    %v2104 = vld [vmem:[%s2090 + $0x34] sm:$0xf]
    %v2105 = vld [vmem:[%s2090 + $0x38] sm:$0xf]
    %v2106 = vld [vmem:[%s2090 + $0x3c] sm:$0xf]
    %v2107 = vpack.c.bf16 %v2089, %v2088
    %s2108 = scalar_lea.vmem %s6, 1
    %v2109 = vld [vmem:[%s2108] sm:$0x1]
    %v2111 = vperm.slane %v2109, 0
    %v2129 = vunpack.c.l.b16 %v2091
    %v2130 = vunpack.c.l.b16 %v2092
    %v2131 = vunpack.c.l.b16 %v2093
    %v2132 = vunpack.c.l.b16 %v2094
    %v2133 = vunpack.c.l.b16 %v2095
    %v2134 = vunpack.c.l.b16 %v2096
    %v2135 = vunpack.c.l.b16 %v2097
    %v2136 = vunpack.c.l.b16 %v2098
    %v2137 = vunpack.c.l.b16 %v2099
    %v2138 = vunpack.c.l.b16 %v2100
    %v2139 = vunpack.c.l.b16 %v2101
    %v2140 = vunpack.c.l.b16 %v2102
    %v2141 = vunpack.c.l.b16 %v2103
    %v2142 = vunpack.c.l.b16 %v2104
    %v2143 = vunpack.c.l.b16 %v2105
    %v2144 = vunpack.c.l.b16 %v2106
    %v2145 = vpack.c.b16 %v2130, %v2129
    %v2146 = vpack.c.b16 %v2132, %v2131
    %v2147 = vpack.c.b16 %v2134, %v2133
    %v2148 = vpack.c.b16 %v2136, %v2135
    %v2149 = vpack.c.b16 %v2138, %v2137
    %v2150 = vpack.c.b16 %v2140, %v2139
    %v2151 = vpack.c.b16 %v2142, %v2141
    %v2152 = vpack.c.b16 %v2144, %v2143
    %2161 = vmatpush.bf16.msra.mxu0 %v2152
    %2162 = vmatpush.bf16.msra.mxu0 %v2151
    %2163 = vmatpush.bf16.msra.mxu0 %v2150
    %2164 = vmatpush.bf16.msra.mxu0 %v2149
    %2165 = vmatpush.bf16.msra.mxu0 %v2148
    %2166 = vmatpush.bf16.msra.mxu0 %v2147
    %2167 = vmatpush.bf16.msra.mxu0 %v2146
    %2168 = vmatpush.bf16.msra.mxu0 %v2145
    %2169 = vmatmul.bf16.gmra.mxu0 %v2107
    %v2170 = vpop.f32.mrf.mxu0
    %v2171 = vadd.f32 %v2111, %v2170
    %v2172 = vpop.f32.mrf.mxu0
    %v2173 = vadd.f32 %v2111, %v2172
    %2174 = vdwg.mxu0
    %v2175 = vadd.f32 %v2171, %v1387
    %v2176 = vadd.f32 %v2173, %v1388
    %s2177 = scalar_lea.vmem %s7, 1
    %v2178 = vld [vmem:[%s2177] sm:$0x1]
    %s2179 = scalar_lea.vmem %s8, 1
    %v2180 = vld [vmem:[%s2179] sm:$0x1]
    %2181 = vadd.xlane.f32.xlu0 %v2175
    %v2182 = vpop.xlane.xlu0 %2181
    %2183 = vadd.xlane.f32.xlu0 %v2176
    %v2184 = vpop.xlane.xlu0 %2183
    %v2185 = vmul.f32 %v2182, %v118
    %v2186 = vmul.f32 %v2184, %v118
    %v2187 = vsub.f32 %v2175, %v2185
    %v2188 = vsub.f32 %v2176, %v2186
    %v2189 = vmul.f32 %v2187, %v2187
    %v2190 = vmul.f32 %v2188, %v2188
    %2191 = vadd.xlane.f32.xlu0 %v2189
    %v2192 = vpop.xlane.xlu0 %2191
    %2193 = vadd.xlane.f32.xlu0 %v2190
    %v2194 = vpop.xlane.xlu0 %2193
    %v2195 = vmul.f32 %v2192, %v118
    %v2196 = vmul.f32 %v2194, %v118
    %v2197 = vadd.f32 %v2195, 1e-12
    %v2198 = vadd.f32 %v2196, 1e-12
    %v2199 = vrsqrt.pop %v2197
    %v2200 = vmul.f32 %v2199, %v2197
    %v2201 = vmul.f32 %v2200, %v2199
    %v2202 = vmul.f32 0.5, %v2201
    %v2203 = vsub.f32 1.5, %v2202
    %v2204 = vmul.f32 %v2199, %v2203
    %vm2205 = vweird.f32 %v2197
    %vm2206 = vweird.f32 %v2199
    %vm2207 = vmor %vm2205, %vm2206
    %v2208 = vsel %vm2207, %v2199, %v2204
    %v2209 = vrsqrt.pop %v2198
    %v2210 = vmul.f32 %v2209, %v2198
    %v2211 = vmul.f32 %v2210, %v2209
    %v2212 = vmul.f32 0.5, %v2211
    %v2213 = vsub.f32 1.5, %v2212
    %v2214 = vmul.f32 %v2209, %v2213
    %vm2215 = vweird.f32 %v2198
    %vm2216 = vweird.f32 %v2209
    %vm2217 = vmor %vm2215, %vm2216
    %v2218 = vsel %vm2217, %v2209, %v2214
    %v2219 = vmul.f32 %v2187, %v2208
    %v2220 = vmul.f32 %v2188, %v2218
    %v2222 = vperm.slane %v2178, 0
    %v2224 = vmul.f32 %v2219, %v2222
    %v2225 = vmul.f32 %v2220, %v2222
    %v2227 = vperm.slane %v2180, 0
    %v2229 = vadd.f32 %v2224, %v2227
    %v2230 = vadd.f32 %v2225, %v2227
    %s2231 = scalar_lea.vmem [#allocation4], 128
    %v2232 = vld [vmem:[%s2231] sm:$0xff]
    %v2233 = vld [vmem:[%s2231 + $0x8] sm:$0xff]
    %v2234 = vld [vmem:[%s2231 + $0x10] sm:$0xff]
    %v2235 = vld [vmem:[%s2231 + $0x18] sm:$0xff]
    %v2236 = vld [vmem:[%s2231 + $0x20] sm:$0xff]
    %v2237 = vld [vmem:[%s2231 + $0x28] sm:$0xff]
    %v2238 = vld [vmem:[%s2231 + $0x30] sm:$0xff]
    %v2239 = vld [vmem:[%s2231 + $0x38] sm:$0xff]
    %v2240 = vld [vmem:[%s2231 + $0x40] sm:$0xff]
    %v2241 = vld [vmem:[%s2231 + $0x48] sm:$0xff]
    %v2242 = vld [vmem:[%s2231 + $0x50] sm:$0xff]
    %v2243 = vld [vmem:[%s2231 + $0x58] sm:$0xff]
    %v2244 = vld [vmem:[%s2231 + $0x60] sm:$0xff]
    %v2245 = vld [vmem:[%s2231 + $0x68] sm:$0xff]
    %v2246 = vld [vmem:[%s2231 + $0x70] sm:$0xff]
    %v2247 = vld [vmem:[%s2231 + $0x78] sm:$0xff]
    %v2248 = vpack.c.bf16 %v2230, %v2229
    %s2249 = scalar_lea.vmem %s10, 2
    %v2250 = vld [vmem:[%s2249] sm:$0x3]
    %v2252 = vperm.slane %v2250, 0
    %v2253 = vperm.slane %v2250, 1
    %v2272 = vunpack.c.l.b16 %v2232
    %v2273 = vunpack.c.h.b16 %v2232
    %v2274 = vunpack.c.l.b16 %v2233
    %v2275 = vunpack.c.h.b16 %v2233
    %v2276 = vunpack.c.l.b16 %v2234
    %v2277 = vunpack.c.h.b16 %v2234
    %v2278 = vunpack.c.l.b16 %v2235
    %v2279 = vunpack.c.h.b16 %v2235
    %v2280 = vunpack.c.l.b16 %v2236
    %v2281 = vunpack.c.h.b16 %v2236
    %v2282 = vunpack.c.l.b16 %v2237
    %v2283 = vunpack.c.h.b16 %v2237
    %v2284 = vunpack.c.l.b16 %v2238
    %v2285 = vunpack.c.h.b16 %v2238
    %v2286 = vunpack.c.l.b16 %v2239
    %v2287 = vunpack.c.h.b16 %v2239
    %v2288 = vunpack.c.l.b16 %v2240
    %v2289 = vunpack.c.h.b16 %v2240
    %v2290 = vunpack.c.l.b16 %v2241
    %v2291 = vunpack.c.h.b16 %v2241
    %v2292 = vunpack.c.l.b16 %v2242
    %v2293 = vunpack.c.h.b16 %v2242
    %v2294 = vunpack.c.l.b16 %v2243
    %v2295 = vunpack.c.h.b16 %v2243
    %v2296 = vunpack.c.l.b16 %v2244
    %v2297 = vunpack.c.h.b16 %v2244
    %v2298 = vunpack.c.l.b16 %v2245
    %v2299 = vunpack.c.h.b16 %v2245
    %v2300 = vunpack.c.l.b16 %v2246
    %v2301 = vunpack.c.h.b16 %v2246
    %v2302 = vunpack.c.l.b16 %v2247
    %v2303 = vunpack.c.h.b16 %v2247
    %v2304 = vpack.c.b16 %v2274, %v2272
    %v2305 = vpack.c.b16 %v2275, %v2273
    %v2306 = vpack.c.b16 %v2278, %v2276
    %v2307 = vpack.c.b16 %v2279, %v2277
    %v2308 = vpack.c.b16 %v2282, %v2280
    %v2309 = vpack.c.b16 %v2283, %v2281
    %v2310 = vpack.c.b16 %v2286, %v2284
    %v2311 = vpack.c.b16 %v2287, %v2285
    %v2312 = vpack.c.b16 %v2290, %v2288
    %v2313 = vpack.c.b16 %v2291, %v2289
    %v2314 = vpack.c.b16 %v2294, %v2292
    %v2315 = vpack.c.b16 %v2295, %v2293
    %v2316 = vpack.c.b16 %v2298, %v2296
    %v2317 = vpack.c.b16 %v2299, %v2297
    %v2318 = vpack.c.b16 %v2302, %v2300
    %v2319 = vpack.c.b16 %v2303, %v2301
    %2336 = vmatpush.bf16.msra.mxu0 %v2318
    %2337 = vmatpush.bf16.msra.mxu0 %v2316
    %2338 = vmatpush.bf16.msra.mxu0 %v2314
    %2339 = vmatpush.bf16.msra.mxu0 %v2312
    %2340 = vmatpush.bf16.msra.mxu0 %v2310
    %2341 = vmatpush.bf16.msra.mxu0 %v2308
    %2342 = vmatpush.bf16.msra.mxu0 %v2306
    %2343 = vmatpush.bf16.msra.mxu0 %v2304
    %2344 = vmatmul.bf16.gmra.mxu0 %v2248
    %v2345 = vpop.f32.mrf.mxu0
    %v2346 = vadd.f32 %v2252, %v2345
    %v2347 = vpop.f32.mrf.mxu0
    %v2348 = vadd.f32 %v2252, %v2347
    %2349 = vdwg.mxu0
    %2350 = vmatpush.bf16.msra.mxu0 %v2319
    %2351 = vmatpush.bf16.msra.mxu0 %v2317
    %2352 = vmatpush.bf16.msra.mxu0 %v2315
    %2353 = vmatpush.bf16.msra.mxu0 %v2313
    %2354 = vmatpush.bf16.msra.mxu0 %v2311
    %2355 = vmatpush.bf16.msra.mxu0 %v2309
    %2356 = vmatpush.bf16.msra.mxu0 %v2307
    %2357 = vmatpush.bf16.msra.mxu0 %v2305
    %2358 = vmatmul.bf16.gmra.mxu0 %v2248
    %v2359 = vpop.f32.mrf.mxu0
    %v2360 = vadd.f32 %v2253, %v2359
    %v2361 = vpop.f32.mrf.mxu0
    %v2362 = vadd.f32 %v2253, %v2361
    %2363 = vdwg.mxu0
    %v2364 = vmul.f32 %v2346, 0.5
    %v2365 = vmul.f32 %v2360, 0.5
    %v2366 = vmul.f32 %v2348, 0.5
    %v2367 = vmul.f32 %v2362, 0.5
    %v2368 = vmul.f32 %v2346, 0.044715
    %v2369 = vmul.f32 %v2360, 0.044715
    %v2370 = vmul.f32 %v2348, 0.044715
    %v2371 = vmul.f32 %v2362, 0.044715
    %v2372 = vmul.f32 %v2368, %v2346
    %v2373 = vmul.f32 %v2369, %v2360
    %v2374 = vmul.f32 %v2370, %v2348
    %v2375 = vmul.f32 %v2371, %v2362
    %v2376 = vmul.f32 %v2372, %v2346
    %v2377 = vmul.f32 %v2373, %v2360
    %v2378 = vmul.f32 %v2374, %v2348
    %v2379 = vmul.f32 %v2375, %v2362
    %v2380 = vadd.f32 %v2346, %v2376
    %v2381 = vadd.f32 %v2360, %v2377
    %v2382 = vadd.f32 %v2348, %v2378
    %v2383 = vadd.f32 %v2362, %v2379
    %v2384 = vmul.f32 %v2380, 0.7978846
    %v2385 = vmul.f32 %v2381, 0.7978846
    %v2386 = vmul.f32 %v2382, 0.7978846
    %v2387 = vmul.f32 %v2383, 0.7978846
    %v2388 = vtanh.pop %v2384
    %v2389 = vtanh.pop %v2385
    %v2390 = vtanh.pop %v2386
    %v2391 = vtanh.pop %v2387
    %v2392 = vadd.f32 %v2388, 1.0
    %v2393 = vadd.f32 %v2389, 1.0
    %v2394 = vadd.f32 %v2390, 1.0
    %v2395 = vadd.f32 %v2391, 1.0
    %v2396 = vmul.f32 %v2364, %v2392
    %v2397 = vmul.f32 %v2365, %v2393
    %v2398 = vmul.f32 %v2366, %v2394
    %v2399 = vmul.f32 %v2367, %v2395
    %s2400 = scalar_lea.vmem [#allocation6], 128
    %v2401 = vld [vmem:[%s2400] sm:$0xf]
    %v2402 = vld [vmem:[%s2400 + $0x4] sm:$0xf]
    %v2403 = vld [vmem:[%s2400 + $0x8] sm:$0xf]
    %v2404 = vld [vmem:[%s2400 + $0xc] sm:$0xf]
    %v2405 = vld [vmem:[%s2400 + $0x10] sm:$0xf]
    %v2406 = vld [vmem:[%s2400 + $0x14] sm:$0xf]
    %v2407 = vld [vmem:[%s2400 + $0x18] sm:$0xf]
    %v2408 = vld [vmem:[%s2400 + $0x1c] sm:$0xf]
    %v2409 = vld [vmem:[%s2400 + $0x20] sm:$0xf]
    %v2410 = vld [vmem:[%s2400 + $0x24] sm:$0xf]
    %v2411 = vld [vmem:[%s2400 + $0x28] sm:$0xf]
    %v2412 = vld [vmem:[%s2400 + $0x2c] sm:$0xf]
    %v2413 = vld [vmem:[%s2400 + $0x30] sm:$0xf]
    %v2414 = vld [vmem:[%s2400 + $0x34] sm:$0xf]
    %v2415 = vld [vmem:[%s2400 + $0x38] sm:$0xf]
    %v2416 = vld [vmem:[%s2400 + $0x3c] sm:$0xf]
    %v2417 = vld [vmem:[%s2400 + $0x40] sm:$0xf]
    %v2418 = vld [vmem:[%s2400 + $0x44] sm:$0xf]
    %v2419 = vld [vmem:[%s2400 + $0x48] sm:$0xf]
    %v2420 = vld [vmem:[%s2400 + $0x4c] sm:$0xf]
    %v2421 = vld [vmem:[%s2400 + $0x50] sm:$0xf]
    %v2422 = vld [vmem:[%s2400 + $0x54] sm:$0xf]
    %v2423 = vld [vmem:[%s2400 + $0x58] sm:$0xf]
    %v2424 = vld [vmem:[%s2400 + $0x5c] sm:$0xf]
    %v2425 = vld [vmem:[%s2400 + $0x60] sm:$0xf]
    %v2426 = vld [vmem:[%s2400 + $0x64] sm:$0xf]
    %v2427 = vld [vmem:[%s2400 + $0x68] sm:$0xf]
    %v2428 = vld [vmem:[%s2400 + $0x6c] sm:$0xf]
    %v2429 = vld [vmem:[%s2400 + $0x70] sm:$0xf]
    %v2430 = vld [vmem:[%s2400 + $0x74] sm:$0xf]
    %v2431 = vld [vmem:[%s2400 + $0x78] sm:$0xf]
    %v2432 = vld [vmem:[%s2400 + $0x7c] sm:$0xf]
    %v2433 = vpack.c.bf16 %v2398, %v2396
    %v2434 = vpack.c.bf16 %v2399, %v2397
    %s2435 = scalar_lea.vmem %s12, 1
    %v2436 = vld [vmem:[%s2435] sm:$0x1]
    %v2438 = vperm.slane %v2436, 0
    %v2472 = vunpack.c.l.b16 %v2401
    %v2473 = vunpack.c.l.b16 %v2402
    %v2474 = vunpack.c.l.b16 %v2403
    %v2475 = vunpack.c.l.b16 %v2404
    %v2476 = vunpack.c.l.b16 %v2405
    %v2477 = vunpack.c.l.b16 %v2406
    %v2478 = vunpack.c.l.b16 %v2407
    %v2479 = vunpack.c.l.b16 %v2408
    %v2480 = vunpack.c.l.b16 %v2409
    %v2481 = vunpack.c.l.b16 %v2410
    %v2482 = vunpack.c.l.b16 %v2411
    %v2483 = vunpack.c.l.b16 %v2412
    %v2484 = vunpack.c.l.b16 %v2413
    %v2485 = vunpack.c.l.b16 %v2414
    %v2486 = vunpack.c.l.b16 %v2415
    %v2487 = vunpack.c.l.b16 %v2416
    %v2488 = vunpack.c.l.b16 %v2417
    %v2489 = vunpack.c.l.b16 %v2418
    %v2490 = vunpack.c.l.b16 %v2419
    %v2491 = vunpack.c.l.b16 %v2420
    %v2492 = vunpack.c.l.b16 %v2421
    %v2493 = vunpack.c.l.b16 %v2422
    %v2494 = vunpack.c.l.b16 %v2423
    %v2495 = vunpack.c.l.b16 %v2424
    %v2496 = vunpack.c.l.b16 %v2425
    %v2497 = vunpack.c.l.b16 %v2426
    %v2498 = vunpack.c.l.b16 %v2427
    %v2499 = vunpack.c.l.b16 %v2428
    %v2500 = vunpack.c.l.b16 %v2429
    %v2501 = vunpack.c.l.b16 %v2430
    %v2502 = vunpack.c.l.b16 %v2431
    %v2503 = vunpack.c.l.b16 %v2432
    %v2504 = vpack.c.b16 %v2473, %v2472
    %v2505 = vpack.c.b16 %v2475, %v2474
    %v2506 = vpack.c.b16 %v2477, %v2476
    %v2507 = vpack.c.b16 %v2479, %v2478
    %v2508 = vpack.c.b16 %v2481, %v2480
    %v2509 = vpack.c.b16 %v2483, %v2482
    %v2510 = vpack.c.b16 %v2485, %v2484
    %v2511 = vpack.c.b16 %v2487, %v2486
    %v2512 = vpack.c.b16 %v2489, %v2488
    %v2513 = vpack.c.b16 %v2491, %v2490
    %v2514 = vpack.c.b16 %v2493, %v2492
    %v2515 = vpack.c.b16 %v2495, %v2494
    %v2516 = vpack.c.b16 %v2497, %v2496
    %v2517 = vpack.c.b16 %v2499, %v2498
    %v2518 = vpack.c.b16 %v2501, %v2500
    %v2519 = vpack.c.b16 %v2503, %v2502
    %2536 = vmatpush.bf16.msra.mxu0 %v2511
    %2537 = vmatpush.bf16.msra.mxu0 %v2510
    %2538 = vmatpush.bf16.msra.mxu0 %v2509
    %2539 = vmatpush.bf16.msra.mxu0 %v2508
    %2540 = vmatpush.bf16.msra.mxu0 %v2507
    %2541 = vmatpush.bf16.msra.mxu0 %v2506
    %2542 = vmatpush.bf16.msra.mxu0 %v2505
    %2543 = vmatpush.bf16.msra.mxu0 %v2504
    %2544 = vmatmul.bf16.gmra.mxu0 %v2433
    %v2545 = vpop.f32.mrf.mxu0
    %v2546 = vadd.f32 %v2438, %v2545
    %v2547 = vpop.f32.mrf.mxu0
    %v2548 = vadd.f32 %v2438, %v2547
    %2549 = vdwg.mxu0
    %2550 = vmatpush.bf16.msra.mxu0 %v2519
    %2551 = vmatpush.bf16.msra.mxu0 %v2518
    %2552 = vmatpush.bf16.msra.mxu0 %v2517
    %2553 = vmatpush.bf16.msra.mxu0 %v2516
    %2554 = vmatpush.bf16.msra.mxu0 %v2515
    %2555 = vmatpush.bf16.msra.mxu0 %v2514
    %2556 = vmatpush.bf16.msra.mxu0 %v2513
    %2557 = vmatpush.bf16.msra.mxu0 %v2512
    %2558 = vmatmul.bf16.gmra.mxu0 %v2434
    %v2559 = vpop.f32.mrf.mxu0
    %v2560 = vadd.f32 %v2546, %v2559
    %v2561 = vpop.f32.mrf.mxu0
    %v2562 = vadd.f32 %v2548, %v2561
    %2563 = vdwg.mxu0
    %v2564 = vadd.f32 %v2560, %v2229
    %v2565 = vadd.f32 %v2562, %v2230
    %s2566 = scalar_lea.vmem %s13, 1
    %v2567 = vld [vmem:[%s2566] sm:$0x1]
    %s2568 = scalar_lea.vmem %s14, 1
    %v2569 = vld [vmem:[%s2568] sm:$0x1]
    %2570 = vadd.xlane.f32.xlu0 %v2564
    %v2571 = vpop.xlane.xlu0 %2570
    %2572 = vadd.xlane.f32.xlu0 %v2565
    %v2573 = vpop.xlane.xlu0 %2572
    %v2574 = vmul.f32 %v2571, %v118
    %v2575 = vmul.f32 %v2573, %v118
    %v2576 = vsub.f32 %v2564, %v2574
    %v2577 = vsub.f32 %v2565, %v2575
    %v2578 = vmul.f32 %v2576, %v2576
    %v2579 = vmul.f32 %v2577, %v2577
    %2580 = vadd.xlane.f32.xlu0 %v2578
    %v2581 = vpop.xlane.xlu0 %2580
    %2582 = vadd.xlane.f32.xlu0 %v2579
    %v2583 = vpop.xlane.xlu0 %2582
    %v2584 = vmul.f32 %v2581, %v118
    %v2585 = vmul.f32 %v2583, %v118
    %v2586 = vadd.f32 %v2584, 1e-12
    %v2587 = vadd.f32 %v2585, 1e-12
    %v2588 = vrsqrt.pop %v2586
    %v2589 = vmul.f32 %v2588, %v2586
    %v2590 = vmul.f32 %v2589, %v2588
    %v2591 = vmul.f32 0.5, %v2590
    %v2592 = vsub.f32 1.5, %v2591
    %v2593 = vmul.f32 %v2588, %v2592
    %vm2594 = vweird.f32 %v2586
    %vm2595 = vweird.f32 %v2588
    %vm2596 = vmor %vm2594, %vm2595
    %v2597 = vsel %vm2596, %v2588, %v2593
    %v2598 = vrsqrt.pop %v2587
    %v2599 = vmul.f32 %v2598, %v2587
    %v2600 = vmul.f32 %v2599, %v2598
    %v2601 = vmul.f32 0.5, %v2600
    %v2602 = vsub.f32 1.5, %v2601
    %v2603 = vmul.f32 %v2598, %v2602
    %vm2604 = vweird.f32 %v2587
    %vm2605 = vweird.f32 %v2598
    %vm2606 = vmor %vm2604, %vm2605
    %v2607 = vsel %vm2606, %v2598, %v2603
    %v2608 = vmul.f32 %v2576, %v2597
    %v2609 = vmul.f32 %v2577, %v2607
    %v2611 = vperm.slane %v2567, 0
    %v2613 = vmul.f32 %v2608, %v2611
    %v2614 = vmul.f32 %v2609, %v2611
    %v2616 = vperm.slane %v2569, 0
    %v2618 = vadd.f32 %v2613, %v2616
    %v2619 = vadd.f32 %v2614, %v2616
    %v2621 = vrot.slane %v2619, 7
    %vm2623 = vcmask 1040384
    %v2624 = vsel %vm2623, %v2618, %v2621
    %v2625 = vld [vmem:[%s15] sm:$0xf]
    %v2626 = vld [vmem:[%s15 + $0x4] sm:$0xf]
    %v2627 = vld [vmem:[%s15 + $0x8] sm:$0xf]
    %v2628 = vld [vmem:[%s15 + $0xc] sm:$0xf]
    %v2629 = vld [vmem:[%s15 + $0x10] sm:$0xf]
    %v2630 = vld [vmem:[%s15 + $0x14] sm:$0xf]
    %v2631 = vld [vmem:[%s15 + $0x18] sm:$0xf]
    %v2632 = vld [vmem:[%s15 + $0x1c] sm:$0xf]
    %v2633 = vld [vmem:[%s15 + $0x20] sm:$0xf]
    %v2634 = vld [vmem:[%s15 + $0x24] sm:$0xf]
    %v2635 = vld [vmem:[%s15 + $0x28] sm:$0xf]
    %v2636 = vld [vmem:[%s15 + $0x2c] sm:$0xf]
    %v2637 = vld [vmem:[%s15 + $0x30] sm:$0xf]
    %v2638 = vld [vmem:[%s15 + $0x34] sm:$0xf]
    %v2639 = vld [vmem:[%s15 + $0x38] sm:$0xf]
    %v2640 = vld [vmem:[%s15 + $0x3c] sm:$0xf]
    %v2641 = vpack.c.bf16 %v2624, %v2624
    %v2642 = vld [vmem:[%s16] sm:$0x1]
    %v2644 = vperm.slane %v2642, 0
    %v2662 = vunpack.c.l.b16 %v2625
    %v2663 = vunpack.c.l.b16 %v2626
    %v2664 = vunpack.c.l.b16 %v2627
    %v2665 = vunpack.c.l.b16 %v2628
    %v2666 = vunpack.c.l.b16 %v2629
    %v2667 = vunpack.c.l.b16 %v2630
    %v2668 = vunpack.c.l.b16 %v2631
    %v2669 = vunpack.c.l.b16 %v2632
    %v2670 = vunpack.c.l.b16 %v2633
    %v2671 = vunpack.c.l.b16 %v2634
    %v2672 = vunpack.c.l.b16 %v2635
    %v2673 = vunpack.c.l.b16 %v2636
    %v2674 = vunpack.c.l.b16 %v2637
    %v2675 = vunpack.c.l.b16 %v2638
    %v2676 = vunpack.c.l.b16 %v2639
    %v2677 = vunpack.c.l.b16 %v2640
    %v2678 = vpack.c.b16 %v2663, %v2662
    %v2679 = vpack.c.b16 %v2665, %v2664
    %v2680 = vpack.c.b16 %v2667, %v2666
    %v2681 = vpack.c.b16 %v2669, %v2668
    %v2682 = vpack.c.b16 %v2671, %v2670
    %v2683 = vpack.c.b16 %v2673, %v2672
    %v2684 = vpack.c.b16 %v2675, %v2674
    %v2685 = vpack.c.b16 %v2677, %v2676
    %2694 = vmatpush.bf16.msra.mxu0 %v2685
    %2695 = vmatpush.bf16.msra.mxu0 %v2684
    %2696 = vmatpush.bf16.msra.mxu0 %v2683
    %2697 = vmatpush.bf16.msra.mxu0 %v2682
    %2698 = vmatpush.bf16.msra.mxu0 %v2681
    %2699 = vmatpush.bf16.msra.mxu0 %v2680
    %2700 = vmatpush.bf16.msra.mxu0 %v2679
    %2701 = vmatpush.bf16.msra.mxu0 %v2678
    %2702 = vmatmul.bf16.gmra.mxu0 %v2641
    %v2703 = vpop.f32.mrf.mxu0
    %v2704 = vadd.f32 %v2644, %v2703
    %v2705 = vpop.f32.mrf.mxu0
    %2706 = vdwg.mxu0
    %v2707 = vtanh.pop %v2704
    %2708 = vst [vmem:[%s17] sm:$0x3] %v2707
    // Predicated region
    $region82: #{bert_base_forward.1} parent=1 // pred_check
      _
    $region83: #{bert_base_forward.1} parent=1 // pred_check_branch
      %2710 = sbr.rel (0) target = $region85
    $region84: #{bert_base_forward.1} parent=1 // pred_region
      _
    $region85: #{bert_base_forward.1} parent=1 // pred_fallthru
      _
    // Predicated region
    $region86: #{bert_base_forward.1} parent=1 // pred_check
      _
    $region87: #{bert_base_forward.1} parent=1 // pred_check_branch
      %2712 = sbr.rel (0) target = $region89
    $region88: #{bert_base_forward.1} parent=1 // pred_region
      _
    $region89: #{bert_base_forward.1} parent=1 // pred_fallthru
      _
    %2713 = vsyncpa [#allocation3], 1
    %2714 = vsyncpa [#allocation5], 1

</llo_original>
